<compile_context>
chip_gen: v7x
topology: tpu7x:2x2x1
jax: 0.10.0
libtpu: 0.0.40
codegen_flags: <defaults>
</compile_context>

<pallas_src>
import functools

import jax
import jax.numpy as jnp
from jax import lax
from jax.experimental import pallas as pl
from jax.experimental.pallas import tpu as pltpu

N_EMBED = 512
NUM_HEADS = 8
H_SIZE = 64  # H_SIZE * NUM_HEADS == N_EMBED


# ----------------------------------------------------------------------------
# Kernel bodies
# ----------------------------------------------------------------------------
def _heads_attend(q_p, k_p, v_p, *, num_heads, h_size, scale, compute_dtype):
    """Per-head scaled-dot-product attention on VMEM values.

    q_p: (T_q, num_heads*h_size) f32, k_p/v_p: (T_k, num_heads*h_size) f32.
    Returns the merged head outputs (T_q, num_heads*h_size) in f32.
    """
    outs = []
    for h in range(num_heads):  # static unroll: all heads handled in one grid step
        sl = slice(h * h_size, (h + 1) * h_size)
        qh = q_p[:, sl].astype(compute_dtype)
        kh = k_p[:, sl].astype(compute_dtype)
        vh = v_p[:, sl].astype(compute_dtype)
        # Contract the last dim of both operands -> no materialized k transpose.
        s = lax.dot_general(qh, kh, (((1,), (1,)), ((), ())),
                            preferred_element_type=jnp.float32) * scale
        m = jnp.max(s, axis=-1, keepdims=True)
        p = jnp.exp(s - m)
        p = p * pl.reciprocal(jnp.sum(p, axis=-1, keepdims=True), approx=True)
        outs.append(jnp.dot(p.astype(compute_dtype), vh,
                            preferred_element_type=jnp.float32))
    return jnp.concatenate(outs, axis=-1)  # (T_q, num_heads*h_size)


def _mha_self_kernel(x_ref, wqkv_ref, bqkv_ref, wo_ref, bo_ref, o_ref, *,
                     num_heads, h_size, scale, compute_dtype):
    """Fused MHA forward for one batch row, self-attention (k = v = q = x)."""
    inner = num_heads * h_size
    x = x_ref[0]  # (T, E), read from HBM exactly once per batch row
    qkv = jnp.dot(x, wqkv_ref[...],
                  preferred_element_type=jnp.float32) + bqkv_ref[...]
    q_p = qkv[:, 0 * inner:1 * inner]
    k_p = qkv[:, 1 * inner:2 * inner]
    v_p = qkv[:, 2 * inner:3 * inner]
    merged = _heads_attend(q_p, k_p, v_p, num_heads=num_heads, h_size=h_size,
                           scale=scale, compute_dtype=compute_dtype)
    out = jnp.dot(merged.astype(compute_dtype), wo_ref[...],
                  preferred_element_type=jnp.float32) + bo_ref[...]
    o_ref[0] = out.astype(o_ref.dtype)  # lane-dense (T, n_embed=512) store


def _mha_cross_kernel(q_ref, k_ref, v_ref, wqkv_ref, bqkv_ref, wo_ref, bo_ref,
                      o_ref, *, num_heads, h_size, scale, compute_dtype):
    """Fused MHA forward for one batch row, separate q / k / v sources."""
    inner = num_heads * h_size

    def proj(src_ref, i):
        w = wqkv_ref[:, i * inner:(i + 1) * inner]
        b = bqkv_ref[:, i * inner:(i + 1) * inner]
        return jnp.dot(src_ref[0], w, preferred_element_type=jnp.float32) + b

    q_p = proj(q_ref, 0)
    k_p = proj(k_ref, 1)
    v_p = proj(v_ref, 2)
    merged = _heads_attend(q_p, k_p, v_p, num_heads=num_heads, h_size=h_size,
                           scale=scale, compute_dtype=compute_dtype)
    out = jnp.dot(merged.astype(compute_dtype), wo_ref[...],
                  preferred_element_type=jnp.float32) + bo_ref[...]
    o_ref[0] = out.astype(o_ref.dtype)


# ----------------------------------------------------------------------------
# pallas_call wrappers
# ----------------------------------------------------------------------------
def _mha_compiler_params():
    return pltpu.CompilerParams(
        dimension_semantics=("parallel",),      # batch axis split across TCs
        vmem_limit_bytes=32 * 1024 * 1024,      # explicit; safe on v5e/v6e/v7x
    )


def _fused_self_call(x, w_qkv, b_qkv, w_o, b_o, *, num_heads, h_size, scale,
                     compute_dtype, out_dtype):
    B, T, E = x.shape
    inner = num_heads * h_size
    n_out = w_o.shape[1]
    kernel = functools.partial(_mha_self_kernel, num_heads=num_heads,
                               h_size=h_size, scale=scale,
                               compute_dtype=compute_dtype)
    return pl.pallas_call(
        kernel,
        out_shape=jax.ShapeDtypeStruct((B, T, n_out), out_dtype),
        grid_spec=pltpu.PrefetchScalarGridSpec(
            num_scalar_prefetch=0,
            grid=(B,),
            in_specs=[
                pl.BlockSpec((1, T, E), lambda b: (b, 0, 0)),
                # Constant index_maps -> weights/biases stay VMEM-resident.
                pl.BlockSpec((E, 3 * inner), lambda b: (0, 0)),
                pl.BlockSpec((1, 3 * inner), lambda b: (0, 0)),
                pl.BlockSpec((inner, n_out), lambda b: (0, 0)),
                pl.BlockSpec((1, n_out), lambda b: (0, 0)),
            ],
            out_specs=pl.BlockSpec((1, T, n_out), lambda b: (b, 0, 0)),
        ),
        compiler_params=_mha_compiler_params(),
    )(x, w_qkv, b_qkv, w_o, b_o)


def _fused_cross_call(q, k, v, w_qkv, b_qkv, w_o, b_o, *, num_heads, h_size,
                      scale, compute_dtype, out_dtype):
    B, T_q, E = q.shape
    T_k = k.shape[1]
    inner = num_heads * h_size
    n_out = w_o.shape[1]
    kernel = functools.partial(_mha_cross_kernel, num_heads=num_heads,
                               h_size=h_size, scale=scale,
                               compute_dtype=compute_dtype)
    return pl.pallas_call(
        kernel,
        out_shape=jax.ShapeDtypeStruct((B, T_q, n_out), out_dtype),
        grid_spec=pltpu.PrefetchScalarGridSpec(
            num_scalar_prefetch=0,
            grid=(B,),
            in_specs=[
                pl.BlockSpec((1, T_q, E), lambda b: (b, 0, 0)),
                pl.BlockSpec((1, T_k, E), lambda b: (b, 0, 0)),
                pl.BlockSpec((1, T_k, E), lambda b: (b, 0, 0)),
                pl.BlockSpec((E, 3 * inner), lambda b: (0, 0)),
                pl.BlockSpec((1, 3 * inner), lambda b: (0, 0)),
                pl.BlockSpec((inner, n_out), lambda b: (0, 0)),
                pl.BlockSpec((1, n_out), lambda b: (0, 0)),
            ],
            out_specs=pl.BlockSpec((1, T_q, n_out), lambda b: (b, 0, 0)),
        ),
        compiler_params=_mha_compiler_params(),
    )(q, k, v, w_qkv, b_qkv, w_o, b_o)


# ----------------------------------------------------------------------------
# Parameter init (mimics PyTorch nn.Linear default: U(-1/sqrt(in), 1/sqrt(in)))
# ----------------------------------------------------------------------------
def init_linear_params(key, in_dim, out_dim):
    kw, kb = jax.random.split(key)
    bound = 1.0 / (in_dim ** 0.5)
    w = jax.random.uniform(kw, (in_dim, out_dim), jnp.float32, -bound, bound)
    b = jax.random.uniform(kb, (out_dim,), jnp.float32, -bound, bound)
    return w, b


def init_mha_params(key, h_size=H_SIZE, num_heads=NUM_HEADS, n_embed=N_EMBED):
    keys = jax.random.split(key, 4)
    inner = h_size * num_heads
    return {
        "q": init_linear_params(keys[0], n_embed, inner),
        "k": init_linear_params(keys[1], n_embed, inner),
        "v": init_linear_params(keys[2], n_embed, inner),
        "out": init_linear_params(keys[3], inner, n_embed),
    }


# ----------------------------------------------------------------------------
# Forward pass (entire MHA forward is one fused Pallas kernel per call)
# ----------------------------------------------------------------------------
def multi_head_attention(params, q, k=None, v=None, h_size=H_SIZE,
                         num_heads=NUM_HEADS, compute_dtype=None):
    """MultiHeadAttention.forward; dropout layers are identity (eval mode)."""
    if k is None and v is None:
        k = v = q
    elif v is None:
        v = k

    self_attn = (k is q) and (v is q)
    out_dtype = q.dtype
    scale = float(h_size) ** -0.5

    (wq, bq), (wk, bk), (wv, bv) = params["q"], params["k"], params["v"]
    wo, bo = params["out"]

    # Fuse the three projection weights -> single weight-stationary QKV matmul.
    w_qkv = jnp.concatenate([wq, wk, wv], axis=1)            # (E, 3*inner)
    b_qkv = jnp.concatenate([bq, bk, bv], axis=0)[None, :]   # (1, 3*inner), f32
    b_o = bo[None, :]                                        # (1, n_embed), f32

    cdt = out_dtype if compute_dtype is None else compute_dtype
    if compute_dtype is not None:
        # bf16 MXU operands; accumulation and softmax stats stay f32 in-kernel.
        q = q.astype(cdt)
        if not self_attn:
            k = k.astype(cdt)
            v = v.astype(cdt)
        w_qkv = w_qkv.astype(cdt)
        wo = wo.astype(cdt)

    if self_attn:
        # Self-attention: x is read from HBM once, one wide (E, 3*inner) matmul.
        return _fused_self_call(q, w_qkv, b_qkv, wo, b_o,
                                num_heads=num_heads, h_size=h_size, scale=scale,
                                compute_dtype=cdt, out_dtype=out_dtype)
    return _fused_cross_call(q, k, v, w_qkv, b_qkv, wo, b_o,
                             num_heads=num_heads, h_size=h_size, scale=scale,
                             compute_dtype=cdt, out_dtype=out_dtype)


# ----------------------------------------------------------------------------
# Pure-JAX reference (mirrors the PyTorch module in eval mode)
# ----------------------------------------------------------------------------
def mha_reference(params, q, k, v, h_size=H_SIZE, num_heads=NUM_HEADS):
    B, T_q, _ = q.shape
    T_k = k.shape[1]
    (qw, qb), (kw, kb), (vw, vb) = params["q"], params["k"], params["v"]
    ow, ob = params["out"]
    qp = (q @ qw + qb).reshape(B, T_q, num_heads, h_size).transpose(0, 2, 1, 3)
    kp = (k @ kw + kb).reshape(B, T_k, num_heads, h_size).transpose(0, 2, 1, 3)
    vp = (v @ vw + vb).reshape(B, T_k, num_heads, h_size).transpose(0, 2, 1, 3)
    s = jnp.einsum("bhqd,bhkd->bhqk", qp, kp) * (h_size ** -0.5)
    p = jax.nn.softmax(s, axis=-1)
    o = jnp.einsum("bhqk,bhkd->bhqd", p, vp)
    o = o.transpose(0, 2, 1, 3).reshape(B, T_q, num_heads * h_size)
    return o @ ow + ob


# ----------------------------------------------------------------------------
if __name__ == "__main__":
    key = jax.random.PRNGKey(0)
    k_params, k_x, k_kv = jax.random.split(key, 3)

    B, T = 2, 8  # small batch / sequence; n_embed fixed at 512 by the module
    x = jax.random.normal(k_x, (B, T, N_EMBED), dtype=jnp.float32)
    params = init_mha_params(k_params)

    # 1) Self-attention (module default path), f32 MXU operands.
    out = multi_head_attention(params, x)
    out = jax.block_until_ready(out)
    ref = mha_reference(params, x, x, x)
    assert out.shape == (B, T, N_EMBED)
    assert jnp.allclose(out, ref, atol=5e-3, rtol=5e-3), "self-attn mismatch"

    # 2) Same path with bf16 MXU operands (f32 accumulation) - looser tolerance.
    out_bf16 = multi_head_attention(params, x, compute_dtype=jnp.bfloat16)
    out_bf16 = jax.block_until_ready(out_bf16)
    assert out_bf16.shape == (B, T, N_EMBED)
    assert jnp.allclose(out_bf16, ref, atol=1e-1, rtol=1e-1), "bf16 mismatch"

    # 3) Cross-attention path (k = v from a different source / sequence length).
    T_k = 16
    kv = jax.random.normal(k_kv, (B, T_k, N_EMBED), dtype=jnp.float32)
    out_x = multi_head_attention(params, x, kv)
    out_x = jax.block_until_ready(out_x)
    ref_x = mha_reference(params, x, kv, kv)
    assert out_x.shape == (B, T, N_EMBED)
    assert jnp.allclose(out_x, ref_x, atol=5e-3, rtol=5e-3), "cross-attn mismatch"

    print("KERNEL_OK")
</pallas_src>

<mosaic_0001>
module attributes {stable_mosaic.version = 11 : i64} {
  func.func @_mha_self_kernel(%arg0: i32, %arg1: memref<1x8x512xf32, #tpu.memory_space<vmem>>, %arg2: memref<512x1536xf32, #tpu.memory_space<vmem>>, %arg3: memref<1x1536xf32, #tpu.memory_space<vmem>>, %arg4: memref<512x512xf32, #tpu.memory_space<vmem>>, %arg5: memref<1x512xf32, #tpu.memory_space<vmem>>, %arg6: memref<1x8x512xf32, #tpu.memory_space<vmem>>) attributes {dimension_semantics = [#tpu.dimension_semantics<parallel>], iteration_bounds = array<i64: 2>, scalar_prefetch = 0 : i64, scratch_operands = 0 : i64, tpu.core_type = #tpu.core_type<tc>, window_params = [{transform_indices = @transform_0, window_bounds = array<i64: 1, 8, 512>}, {pipeline_mode = #tpu.pipeline_mode<synchronous>, transform_indices = @transform_1, window_bounds = array<i64: 512, 1536>}, {pipeline_mode = #tpu.pipeline_mode<synchronous>, transform_indices = @transform_2, window_bounds = array<i64: 1, 1536>}, {pipeline_mode = #tpu.pipeline_mode<synchronous>, transform_indices = @transform_3, window_bounds = array<i64: 512, 512>}, {pipeline_mode = #tpu.pipeline_mode<synchronous>, transform_indices = @transform_4, window_bounds = array<i64: 1, 512>}, {transform_indices = @transform_5, window_bounds = array<i64: 1, 8, 512>}]} {
    %c0 = arith.constant 0 : index
    %c0_0 = arith.constant 0 : index
    %c0_1 = arith.constant 0 : index
    %0 = vector.load %arg1[%c0, %c0_0, %c0_1] : memref<1x8x512xf32, #tpu.memory_space<vmem>>, vector<1x8x512xf32>
    %1 = vector.shape_cast %0 : vector<1x8x512xf32> to vector<8x512xf32>
    %c0_2 = arith.constant 0 : index
    %c0_3 = arith.constant 0 : index
    %2 = vector.load %arg2[%c0_2, %c0_3] : memref<512x1536xf32, #tpu.memory_space<vmem>>, vector<512x1536xf32>
    %cst = arith.constant dense<0.000000e+00> : vector<8x1536xf32>
    %3 = tpu.matmul %1, %2, %cst {dimension_numbers = #tpu.dot_dimension_numbers<[1], [0], [0], [1], [0, 0, 1, 1], [], []>} : vector<8x512xf32>, vector<512x1536xf32>, vector<8x1536xf32> -> vector<8x1536xf32>
    %c0_4 = arith.constant 0 : index
    %c0_5 = arith.constant 0 : index
    %4 = vector.load %arg3[%c0_4, %c0_5] : memref<1x1536xf32, #tpu.memory_space<vmem>>, vector<1x1536xf32>
    %5 = vector.broadcast %4 : vector<1x1536xf32> to vector<8x1536xf32>
    %6 = arith.addf %3, %5 : vector<8x1536xf32>
    %7 = vector.extract_strided_slice %6 {offsets = [0, 0], sizes = [8, 512], strides = [1, 1]} : vector<8x1536xf32> to vector<8x512xf32>
    %8 = vector.extract_strided_slice %6 {offsets = [0, 512], sizes = [8, 512], strides = [1, 1]} : vector<8x1536xf32> to vector<8x512xf32>
    %9 = vector.extract_strided_slice %6 {offsets = [0, 1024], sizes = [8, 512], strides = [1, 1]} : vector<8x1536xf32> to vector<8x512xf32>
    %10 = vector.extract_strided_slice %7 {offsets = [0, 0], sizes = [8, 64], strides = [1, 1]} : vector<8x512xf32> to vector<8x64xf32>
    %11 = vector.extract_strided_slice %8 {offsets = [0, 0], sizes = [8, 64], strides = [1, 1]} : vector<8x512xf32> to vector<8x64xf32>
    %12 = vector.extract_strided_slice %9 {offsets = [0, 0], sizes = [8, 64], strides = [1, 1]} : vector<8x512xf32> to vector<8x64xf32>
    %cst_6 = arith.constant dense<0.000000e+00> : vector<8x8xf32>
    %13 = tpu.matmul %10, %11, %cst_6 {dimension_numbers = #tpu.dot_dimension_numbers<[1], [1], [0], [0], [0, 0, 1, 0], [], []>} : vector<8x64xf32>, vector<8x64xf32>, vector<8x8xf32> -> vector<8x8xf32>
    %cst_7 = arith.constant 1.250000e-01 : f32
    %14 = vector.broadcast %cst_7 : f32 to vector<8x8xf32>
    %15 = arith.mulf %13, %14 : vector<8x8xf32>
    %cst_8 = arith.constant dense<0xFF800000> : vector<8xf32>
    %16 = vector.multi_reduction <maximumf>, %15, %cst_8 [1] : vector<8x8xf32> to vector<8xf32>
    %17 = vector.shape_cast %16 : vector<8xf32> to vector<8x1xf32>
    %18 = vector.broadcast %17 : vector<8x1xf32> to vector<8x8xf32>
    %19 = arith.subf %15, %18 : vector<8x8xf32>
    %20 = math.exp %19 : vector<8x8xf32>
    %cst_9 = arith.constant dense<0.000000e+00> : vector<8xf32>
    %21 = vector.multi_reduction <add>, %20, %cst_9 [1] : vector<8x8xf32> to vector<8xf32>
    %22 = vector.shape_cast %21 : vector<8xf32> to vector<8x1xf32>
    %23 = tpu.reciprocal %22 {approx = true} : vector<8x1xf32> -> vector<8x1xf32>
    %24 = vector.broadcast %23 : vector<8x1xf32> to vector<8x8xf32>
    %25 = arith.mulf %20, %24 : vector<8x8xf32>
    %cst_10 = arith.constant dense<0.000000e+00> : vector<8x64xf32>
    %26 = tpu.matmul %25, %12, %cst_10 {dimension_numbers = #tpu.dot_dimension_numbers<[1], [0], [0], [1], [0, 0, 1, 1], [], []>} : vector<8x8xf32>, vector<8x64xf32>, vector<8x64xf32> -> vector<8x64xf32>
    %27 = vector.extract_strided_slice %7 {offsets = [0, 64], sizes = [8, 64], strides = [1, 1]} : vector<8x512xf32> to vector<8x64xf32>
    %28 = vector.extract_strided_slice %8 {offsets = [0, 64], sizes = [8, 64], strides = [1, 1]} : vector<8x512xf32> to vector<8x64xf32>
    %29 = vector.extract_strided_slice %9 {offsets = [0, 64], sizes = [8, 64], strides = [1, 1]} : vector<8x512xf32> to vector<8x64xf32>
    %cst_11 = arith.constant dense<0.000000e+00> : vector<8x8xf32>
    %30 = tpu.matmul %27, %28, %cst_11 {dimension_numbers = #tpu.dot_dimension_numbers<[1], [1], [0], [0], [0, 0, 1, 0], [], []>} : vector<8x64xf32>, vector<8x64xf32>, vector<8x8xf32> -> vector<8x8xf32>
    %cst_12 = arith.constant 1.250000e-01 : f32
    %31 = vector.broadcast %cst_12 : f32 to vector<8x8xf32>
    %32 = arith.mulf %30, %31 : vector<8x8xf32>
    %cst_13 = arith.constant dense<0xFF800000> : vector<8xf32>
    %33 = vector.multi_reduction <maximumf>, %32, %cst_13 [1] : vector<8x8xf32> to vector<8xf32>
    %34 = vector.shape_cast %33 : vector<8xf32> to vector<8x1xf32>
    %35 = vector.broadcast %34 : vector<8x1xf32> to vector<8x8xf32>
    %36 = arith.subf %32, %35 : vector<8x8xf32>
    %37 = math.exp %36 : vector<8x8xf32>
    %cst_14 = arith.constant dense<0.000000e+00> : vector<8xf32>
    %38 = vector.multi_reduction <add>, %37, %cst_14 [1] : vector<8x8xf32> to vector<8xf32>
    %39 = vector.shape_cast %38 : vector<8xf32> to vector<8x1xf32>
    %40 = tpu.reciprocal %39 {approx = true} : vector<8x1xf32> -> vector<8x1xf32>
    %41 = vector.broadcast %40 : vector<8x1xf32> to vector<8x8xf32>
    %42 = arith.mulf %37, %41 : vector<8x8xf32>
    %cst_15 = arith.constant dense<0.000000e+00> : vector<8x64xf32>
    %43 = tpu.matmul %42, %29, %cst_15 {dimension_numbers = #tpu.dot_dimension_numbers<[1], [0], [0], [1], [0, 0, 1, 1], [], []>} : vector<8x8xf32>, vector<8x64xf32>, vector<8x64xf32> -> vector<8x64xf32>
    %44 = vector.extract_strided_slice %7 {offsets = [0, 128], sizes = [8, 64], strides = [1, 1]} : vector<8x512xf32> to vector<8x64xf32>
    %45 = vector.extract_strided_slice %8 {offsets = [0, 128], sizes = [8, 64], strides = [1, 1]} : vector<8x512xf32> to vector<8x64xf32>
    %46 = vector.extract_strided_slice %9 {offsets = [0, 128], sizes = [8, 64], strides = [1, 1]} : vector<8x512xf32> to vector<8x64xf32>
    %cst_16 = arith.constant dense<0.000000e+00> : vector<8x8xf32>
    %47 = tpu.matmul %44, %45, %cst_16 {dimension_numbers = #tpu.dot_dimension_numbers<[1], [1], [0], [0], [0, 0, 1, 0], [], []>} : vector<8x64xf32>, vector<8x64xf32>, vector<8x8xf32> -> vector<8x8xf32>
    %cst_17 = arith.constant 1.250000e-01 : f32
    %48 = vector.broadcast %cst_17 : f32 to vector<8x8xf32>
    %49 = arith.mulf %47, %48 : vector<8x8xf32>
    %cst_18 = arith.constant dense<0xFF800000> : vector<8xf32>
    %50 = vector.multi_reduction <maximumf>, %49, %cst_18 [1] : vector<8x8xf32> to vector<8xf32>
    %51 = vector.shape_cast %50 : vector<8xf32> to vector<8x1xf32>
    %52 = vector.broadcast %51 : vector<8x1xf32> to vector<8x8xf32>
    %53 = arith.subf %49, %52 : vector<8x8xf32>
    %54 = math.exp %53 : vector<8x8xf32>
    %cst_19 = arith.constant dense<0.000000e+00> : vector<8xf32>
    %55 = vector.multi_reduction <add>, %54, %cst_19 [1] : vector<8x8xf32> to vector<8xf32>
    %56 = vector.shape_cast %55 : vector<8xf32> to vector<8x1xf32>
    %57 = tpu.reciprocal %56 {approx = true} : vector<8x1xf32> -> vector<8x1xf32>
    %58 = vector.broadcast %57 : vector<8x1xf32> to vector<8x8xf32>
    %59 = arith.mulf %54, %58 : vector<8x8xf32>
    %cst_20 = arith.constant dense<0.000000e+00> : vector<8x64xf32>
    %60 = tpu.matmul %59, %46, %cst_20 {dimension_numbers = #tpu.dot_dimension_numbers<[1], [0], [0], [1], [0, 0, 1, 1], [], []>} : vector<8x8xf32>, vector<8x64xf32>, vector<8x64xf32> -> vector<8x64xf32>
    %61 = vector.extract_strided_slice %7 {offsets = [0, 192], sizes = [8, 64], strides = [1, 1]} : vector<8x512xf32> to vector<8x64xf32>
    %62 = vector.extract_strided_slice %8 {offsets = [0, 192], sizes = [8, 64], strides = [1, 1]} : vector<8x512xf32> to vector<8x64xf32>
    %63 = vector.extract_strided_slice %9 {offsets = [0, 192], sizes = [8, 64], strides = [1, 1]} : vector<8x512xf32> to vector<8x64xf32>
    %cst_21 = arith.constant dense<0.000000e+00> : vector<8x8xf32>
    %64 = tpu.matmul %61, %62, %cst_21 {dimension_numbers = #tpu.dot_dimension_numbers<[1], [1], [0], [0], [0, 0, 1, 0], [], []>} : vector<8x64xf32>, vector<8x64xf32>, vector<8x8xf32> -> vector<8x8xf32>
    %cst_22 = arith.constant 1.250000e-01 : f32
    %65 = vector.broadcast %cst_22 : f32 to vector<8x8xf32>
    %66 = arith.mulf %64, %65 : vector<8x8xf32>
    %cst_23 = arith.constant dense<0xFF800000> : vector<8xf32>
    %67 = vector.multi_reduction <maximumf>, %66, %cst_23 [1] : vector<8x8xf32> to vector<8xf32>
    %68 = vector.shape_cast %67 : vector<8xf32> to vector<8x1xf32>
    %69 = vector.broadcast %68 : vector<8x1xf32> to vector<8x8xf32>
    %70 = arith.subf %66, %69 : vector<8x8xf32>
    %71 = math.exp %70 : vector<8x8xf32>
    %cst_24 = arith.constant dense<0.000000e+00> : vector<8xf32>
    %72 = vector.multi_reduction <add>, %71, %cst_24 [1] : vector<8x8xf32> to vector<8xf32>
    %73 = vector.shape_cast %72 : vector<8xf32> to vector<8x1xf32>
    %74 = tpu.reciprocal %73 {approx = true} : vector<8x1xf32> -> vector<8x1xf32>
    %75 = vector.broadcast %74 : vector<8x1xf32> to vector<8x8xf32>
    %76 = arith.mulf %71, %75 : vector<8x8xf32>
    %cst_25 = arith.constant dense<0.000000e+00> : vector<8x64xf32>
    %77 = tpu.matmul %76, %63, %cst_25 {dimension_numbers = #tpu.dot_dimension_numbers<[1], [0], [0], [1], [0, 0, 1, 1], [], []>} : vector<8x8xf32>, vector<8x64xf32>, vector<8x64xf32> -> vector<8x64xf32>
    %78 = vector.extract_strided_slice %7 {offsets = [0, 256], sizes = [8, 64], strides = [1, 1]} : vector<8x512xf32> to vector<8x64xf32>
    %79 = vector.extract_strided_slice %8 {offsets = [0, 256], sizes = [8, 64], strides = [1, 1]} : vector<8x512xf32> to vector<8x64xf32>
    %80 = vector.extract_strided_slice %9 {offsets = [0, 256], sizes = [8, 64], strides = [1, 1]} : vector<8x512xf32> to vector<8x64xf32>
    %cst_26 = arith.constant dense<0.000000e+00> : vector<8x8xf32>
    %81 = tpu.matmul %78, %79, %cst_26 {dimension_numbers = #tpu.dot_dimension_numbers<[1], [1], [0], [0], [0, 0, 1, 0], [], []>} : vector<8x64xf32>, vector<8x64xf32>, vector<8x8xf32> -> vector<8x8xf32>
    %cst_27 = arith.constant 1.250000e-01 : f32
    %82 = vector.broadcast %cst_27 : f32 to vector<8x8xf32>
    %83 = arith.mulf %81, %82 : vector<8x8xf32>
    %cst_28 = arith.constant dense<0xFF800000> : vector<8xf32>
    %84 = vector.multi_reduction <maximumf>, %83, %cst_28 [1] : vector<8x8xf32> to vector<8xf32>
    %85 = vector.shape_cast %84 : vector<8xf32> to vector<8x1xf32>
    %86 = vector.broadcast %85 : vector<8x1xf32> to vector<8x8xf32>
    %87 = arith.subf %83, %86 : vector<8x8xf32>
    %88 = math.exp %87 : vector<8x8xf32>
    %cst_29 = arith.constant dense<0.000000e+00> : vector<8xf32>
    %89 = vector.multi_reduction <add>, %88, %cst_29 [1] : vector<8x8xf32> to vector<8xf32>
    %90 = vector.shape_cast %89 : vector<8xf32> to vector<8x1xf32>
    %91 = tpu.reciprocal %90 {approx = true} : vector<8x1xf32> -> vector<8x1xf32>
    %92 = vector.broadcast %91 : vector<8x1xf32> to vector<8x8xf32>
    %93 = arith.mulf %88, %92 : vector<8x8xf32>
    %cst_30 = arith.constant dense<0.000000e+00> : vector<8x64xf32>
    %94 = tpu.matmul %93, %80, %cst_30 {dimension_numbers = #tpu.dot_dimension_numbers<[1], [0], [0], [1], [0, 0, 1, 1], [], []>} : vector<8x8xf32>, vector<8x64xf32>, vector<8x64xf32> -> vector<8x64xf32>
    %95 = vector.extract_strided_slice %7 {offsets = [0, 320], sizes = [8, 64], strides = [1, 1]} : vector<8x512xf32> to vector<8x64xf32>
    %96 = vector.extract_strided_slice %8 {offsets = [0, 320], sizes = [8, 64], strides = [1, 1]} : vector<8x512xf32> to vector<8x64xf32>
    %97 = vector.extract_strided_slice %9 {offsets = [0, 320], sizes = [8, 64], strides = [1, 1]} : vector<8x512xf32> to vector<8x64xf32>
    %cst_31 = arith.constant dense<0.000000e+00> : vector<8x8xf32>
    %98 = tpu.matmul %95, %96, %cst_31 {dimension_numbers = #tpu.dot_dimension_numbers<[1], [1], [0], [0], [0, 0, 1, 0], [], []>} : vector<8x64xf32>, vector<8x64xf32>, vector<8x8xf32> -> vector<8x8xf32>
    %cst_32 = arith.constant 1.250000e-01 : f32
    %99 = vector.broadcast %cst_32 : f32 to vector<8x8xf32>
    %100 = arith.mulf %98, %99 : vector<8x8xf32>
    %cst_33 = arith.constant dense<0xFF800000> : vector<8xf32>
    %101 = vector.multi_reduction <maximumf>, %100, %cst_33 [1] : vector<8x8xf32> to vector<8xf32>
    %102 = vector.shape_cast %101 : vector<8xf32> to vector<8x1xf32>
    %103 = vector.broadcast %102 : vector<8x1xf32> to vector<8x8xf32>
    %104 = arith.subf %100, %103 : vector<8x8xf32>
    %105 = math.exp %104 : vector<8x8xf32>
    %cst_34 = arith.constant dense<0.000000e+00> : vector<8xf32>
    %106 = vector.multi_reduction <add>, %105, %cst_34 [1] : vector<8x8xf32> to vector<8xf32>
    %107 = vector.shape_cast %106 : vector<8xf32> to vector<8x1xf32>
    %108 = tpu.reciprocal %107 {approx = true} : vector<8x1xf32> -> vector<8x1xf32>
    %109 = vector.broadcast %108 : vector<8x1xf32> to vector<8x8xf32>
    %110 = arith.mulf %105, %109 : vector<8x8xf32>
    %cst_35 = arith.constant dense<0.000000e+00> : vector<8x64xf32>
    %111 = tpu.matmul %110, %97, %cst_35 {dimension_numbers = #tpu.dot_dimension_numbers<[1], [0], [0], [1], [0, 0, 1, 1], [], []>} : vector<8x8xf32>, vector<8x64xf32>, vector<8x64xf32> -> vector<8x64xf32>
    %112 = vector.extract_strided_slice %7 {offsets = [0, 384], sizes = [8, 64], strides = [1, 1]} : vector<8x512xf32> to vector<8x64xf32>
    %113 = vector.extract_strided_slice %8 {offsets = [0, 384], sizes = [8, 64], strides = [1, 1]} : vector<8x512xf32> to vector<8x64xf32>
    %114 = vector.extract_strided_slice %9 {offsets = [0, 384], sizes = [8, 64], strides = [1, 1]} : vector<8x512xf32> to vector<8x64xf32>
    %cst_36 = arith.constant dense<0.000000e+00> : vector<8x8xf32>
    %115 = tpu.matmul %112, %113, %cst_36 {dimension_numbers = #tpu.dot_dimension_numbers<[1], [1], [0], [0], [0, 0, 1, 0], [], []>} : vector<8x64xf32>, vector<8x64xf32>, vector<8x8xf32> -> vector<8x8xf32>
    %cst_37 = arith.constant 1.250000e-01 : f32
    %116 = vector.broadcast %cst_37 : f32 to vector<8x8xf32>
    %117 = arith.mulf %115, %116 : vector<8x8xf32>
    %cst_38 = arith.constant dense<0xFF800000> : vector<8xf32>
    %118 = vector.multi_reduction <maximumf>, %117, %cst_38 [1] : vector<8x8xf32> to vector<8xf32>
    %119 = vector.shape_cast %118 : vector<8xf32> to vector<8x1xf32>
    %120 = vector.broadcast %119 : vector<8x1xf32> to vector<8x8xf32>
    %121 = arith.subf %117, %120 : vector<8x8xf32>
    %122 = math.exp %121 : vector<8x8xf32>
    %cst_39 = arith.constant dense<0.000000e+00> : vector<8xf32>
    %123 = vector.multi_reduction <add>, %122, %cst_39 [1] : vector<8x8xf32> to vector<8xf32>
    %124 = vector.shape_cast %123 : vector<8xf32> to vector<8x1xf32>
    %125 = tpu.reciprocal %124 {approx = true} : vector<8x1xf32> -> vector<8x1xf32>
    %126 = vector.broadcast %125 : vector<8x1xf32> to vector<8x8xf32>
    %127 = arith.mulf %122, %126 : vector<8x8xf32>
    %cst_40 = arith.constant dense<0.000000e+00> : vector<8x64xf32>
    %128 = tpu.matmul %127, %114, %cst_40 {dimension_numbers = #tpu.dot_dimension_numbers<[1], [0], [0], [1], [0, 0, 1, 1], [], []>} : vector<8x8xf32>, vector<8x64xf32>, vector<8x64xf32> -> vector<8x64xf32>
    %129 = vector.extract_strided_slice %7 {offsets = [0, 448], sizes = [8, 64], strides = [1, 1]} : vector<8x512xf32> to vector<8x64xf32>
    %130 = vector.extract_strided_slice %8 {offsets = [0, 448], sizes = [8, 64], strides = [1, 1]} : vector<8x512xf32> to vector<8x64xf32>
    %131 = vector.extract_strided_slice %9 {offsets = [0, 448], sizes = [8, 64], strides = [1, 1]} : vector<8x512xf32> to vector<8x64xf32>
    %cst_41 = arith.constant dense<0.000000e+00> : vector<8x8xf32>
    %132 = tpu.matmul %129, %130, %cst_41 {dimension_numbers = #tpu.dot_dimension_numbers<[1], [1], [0], [0], [0, 0, 1, 0], [], []>} : vector<8x64xf32>, vector<8x64xf32>, vector<8x8xf32> -> vector<8x8xf32>
    %cst_42 = arith.constant 1.250000e-01 : f32
    %133 = vector.broadcast %cst_42 : f32 to vector<8x8xf32>
    %134 = arith.mulf %132, %133 : vector<8x8xf32>
    %cst_43 = arith.constant dense<0xFF800000> : vector<8xf32>
    %135 = vector.multi_reduction <maximumf>, %134, %cst_43 [1] : vector<8x8xf32> to vector<8xf32>
    %136 = vector.shape_cast %135 : vector<8xf32> to vector<8x1xf32>
    %137 = vector.broadcast %136 : vector<8x1xf32> to vector<8x8xf32>
    %138 = arith.subf %134, %137 : vector<8x8xf32>
    %139 = math.exp %138 : vector<8x8xf32>
    %cst_44 = arith.constant dense<0.000000e+00> : vector<8xf32>
    %140 = vector.multi_reduction <add>, %139, %cst_44 [1] : vector<8x8xf32> to vector<8xf32>
    %141 = vector.shape_cast %140 : vector<8xf32> to vector<8x1xf32>
    %142 = tpu.reciprocal %141 {approx = true} : vector<8x1xf32> -> vector<8x1xf32>
    %143 = vector.broadcast %142 : vector<8x1xf32> to vector<8x8xf32>
    %144 = arith.mulf %139, %143 : vector<8x8xf32>
    %cst_45 = arith.constant dense<0.000000e+00> : vector<8x64xf32>
    %145 = tpu.matmul %144, %131, %cst_45 {dimension_numbers = #tpu.dot_dimension_numbers<[1], [0], [0], [1], [0, 0, 1, 1], [], []>} : vector<8x8xf32>, vector<8x64xf32>, vector<8x64xf32> -> vector<8x64xf32>
    %146 = tpu.concatenate %26, %43, %60, %77, %94, %111, %128, %145 in 1 : vector<8x64xf32>, vector<8x64xf32>, vector<8x64xf32>, vector<8x64xf32>, vector<8x64xf32>, vector<8x64xf32>, vector<8x64xf32>, vector<8x64xf32> -> vector<8x512xf32>
    %c0_46 = arith.constant 0 : index
    %c0_47 = arith.constant 0 : index
    %147 = vector.load %arg4[%c0_46, %c0_47] : memref<512x512xf32, #tpu.memory_space<vmem>>, vector<512x512xf32>
    %cst_48 = arith.constant dense<0.000000e+00> : vector<8x512xf32>
    %148 = tpu.matmul %146, %147, %cst_48 {dimension_numbers = #tpu.dot_dimension_numbers<[1], [0], [0], [1], [0, 0, 1, 1], [], []>} : vector<8x512xf32>, vector<512x512xf32>, vector<8x512xf32> -> vector<8x512xf32>
    %c0_49 = arith.constant 0 : index
    %c0_50 = arith.constant 0 : index
    %149 = vector.load %arg5[%c0_49, %c0_50] : memref<1x512xf32, #tpu.memory_space<vmem>>, vector<1x512xf32>
    %150 = vector.broadcast %149 : vector<1x512xf32> to vector<8x512xf32>
    %151 = arith.addf %148, %150 : vector<8x512xf32>
    %c0_51 = arith.constant 0 : index
    %c0_52 = arith.constant 0 : index
    %c0_53 = arith.constant 0 : index
    %152 = vector.load %arg6[%c0_51, %c0_52, %c0_53] : memref<1x8x512xf32, #tpu.memory_space<vmem>>, vector<1x8x512xf32>
    %153 = vector.shape_cast %152 : vector<1x8x512xf32> to vector<8x512xf32>
    %154 = vector.shape_cast %151 : vector<8x512xf32> to vector<1x8x512xf32>
    tpu.vector_store %arg6[%c0_51, %c0_52, %c0_53], %154 {strides = array<i32>} : memref<1x8x512xf32, #tpu.memory_space<vmem>>, vector<1x8x512xf32>,
    return
  }
  func.func @transform_0(%arg0: i32) -> (i32, i32, i32) {
    %c0_i32 = arith.constant 0 : i32
    %c0_i32_0 = arith.constant 0 : i32
    %c0_i32_1 = arith.constant 0 : i32
    return %arg0, %c0_i32, %c0_i32_0 : i32, i32, i32
  }
  func.func @transform_1(%arg0: i32) -> (i32, i32) {
    %c0_i32 = arith.constant 0 : i32
    %c0_i32_0 = arith.constant 0 : i32
    %c0_i32_1 = arith.constant 0 : i32
    return %c0_i32, %c0_i32_0 : i32, i32
  }
  func.func @transform_2(%arg0: i32) -> (i32, i32) {
    %c0_i32 = arith.constant 0 : i32
    %c0_i32_0 = arith.constant 0 : i32
    %c0_i32_1 = arith.constant 0 : i32
    return %c0_i32, %c0_i32_0 : i32, i32
  }
  func.func @transform_3(%arg0: i32) -> (i32, i32) {
    %c0_i32 = arith.constant 0 : i32
    %c0_i32_0 = arith.constant 0 : i32
    %c0_i32_1 = arith.constant 0 : i32
    return %c0_i32, %c0_i32_0 : i32, i32
  }
  func.func @transform_4(%arg0: i32) -> (i32, i32) {
    %c0_i32 = arith.constant 0 : i32
    %c0_i32_0 = arith.constant 0 : i32
    %c0_i32_1 = arith.constant 0 : i32
    return %c0_i32, %c0_i32_0 : i32, i32
  }
  func.func @transform_5(%arg0: i32) -> (i32, i32, i32) {
    %c0_i32 = arith.constant 0 : i32
    %c0_i32_0 = arith.constant 0 : i32
    %c0_i32_1 = arith.constant 0 : i32
    return %arg0, %c0_i32, %c0_i32_0 : i32, i32, i32
  }
}

</mosaic_0001>

<llo_original>
// kernel: tpu_custom_call.1
$region0: #{tpu_custom_call.1}
  #allocation0 [shape = 'u32[]', space=smem, size = 0x4, offset = 0x4, fixed_abs, tag = 'smem constant byte address 0x4 - core index']
  #allocation1 [shape = 'u32[144,128]{1,0:T(1,128)}', space=vmem, size = 0x12000, scoped, tag = 'internal scratch']
  %s0 = inlined_call_operand.hbm [shape: f32[2,8,512], index: 0, kind: input, shape index: {}]
  %s1 = inlined_call_operand.hbm [shape: f32[512,1536], index: 1, kind: input, shape index: {}]
  %s2 = inlined_call_operand.hbm [shape: f32[1,1536], index: 2, kind: input, shape index: {}]
  %s3 = inlined_call_operand.hbm [shape: f32[512,512], index: 3, kind: input, shape index: {}]
  %s4 = inlined_call_operand.hbm [shape: f32[1,512], index: 4, kind: input, shape index: {}]
  %s5 = inlined_call_operand.hbm [shape: f32[2,8,512], index: 5, kind: output, shape index: {}]
  %s6 = sld [smem:[#allocation0]]
  $region73: #{tpu_custom_call.1} parent=0
    _
  %s8 = ssub.s32 1, %s6
  %s9 = scalar_select 0, %s8, %s6
  $region1: #{tpu_custom_call.1} parent=0
    #allocation2 [shape = 'u8[32768]{0}', space=vmem, size = 0x8000, scoped, tag = 'input window, operand 0']
    #allocation3 [shape = 's32[2]{0}', space=sflag, size = 0x8, scoped, tag = 'scoped memory for tpu_custom_call.1']
    #allocation4 [shape = 's32[2]{0}', space=sflag, size = 0x8, scoped, tag = 'scoped memory for tpu_custom_call.1']
    #allocation5 [shape = 'u8[3145728]{0}', space=vmem, size = 0x300000, scoped, tag = 'input window, operand 1, single buffered']
    #allocation6 [shape = 's32[1]{0}', space=sflag, size = 0x4, scoped, tag = 'scoped memory for tpu_custom_call.1']
    #allocation7 [shape = 'u8[6144]{0}', space=vmem, size = 0x1800, scoped, tag = 'input window, operand 2, single buffered']
    #allocation8 [shape = 'u8[1048576]{0}', space=vmem, size = 0x100000, scoped, tag = 'input window, operand 3, single buffered']
    #allocation9 [shape = 's32[1]{0}', space=sflag, size = 0x4, scoped, tag = 'scoped memory for tpu_custom_call.1']
    #allocation10 [shape = 'u8[2048]{0}', space=vmem, size = 0x800, scoped, tag = 'input window, operand 4, single buffered']
    #allocation11 [shape = 'u8[32768]{0}', space=vmem, size = 0x8000, scoped, tag = 'output window, operand 0']
    %10 = vsyncpa [#allocation3], 0
    %s11 = scalar_lea.sflag [#allocation3], 1
    %12 = vsyncpa %s11, 0
    %13 = vsyncpa [#allocation6], 0
    %14 = vsyncpa [#allocation9], 0
    %15 = vsyncpa [#allocation4], 0
    %s16 = scalar_lea.sflag [#allocation4], 1
    %17 = vsyncpa %s16, 0
    loop: start=0, step=1, limit=4
    $region2: #{tpu_custom_call.1} parent=1 // loop_pre_header
      _
    $region3: #{tpu_custom_call.1} parent=1 // loop_header
      %s19 = sphi 0, %s23
      %p20 = scmp.ge.s32.totalorder %s19, 4
      %s29 = sphi 0, %s31
      %s32 = sphi 0, %s29
      %s33 = sphi 0, %s32
      %s49 = sphi 0, %s33
      %s53 = sphi 0, %s53
      %s55 = sphi 0, %s53
      %s56 = sphi 0, %s55
      %s70 = sphi 0, %s56
      %s74 = sphi 0, %s74
      %s76 = sphi 0, %s74
      %s77 = sphi 0, %s76
      %s91 = sphi 0, %s77
      %s95 = sphi 0, %s95
      %s97 = sphi 0, %s95
      %s98 = sphi 0, %s97
      %s112 = sphi 0, %s98
      %s116 = sphi 0, %s116
      %s118 = sphi 0, %s116
      %s119 = sphi 0, %s118
      %s133 = sphi 0, %s119
      %s139 = sphi 0, %s141
      %s142 = sphi 0, %s139
      %s143 = sphi 0, %s142
      %s159 = sphi 0, %s143
    $region4: #{tpu_custom_call.1} parent=1 // loop_header_branch
      %22 = sbr.rel (%p20) target = $region8
    $region5: #{tpu_custom_call.1} parent=1 // loop_body
      %s24 = ssub.s32 %s19, 1
      %s25 = ssub.s32 %s19, 2
      %s26 = sadd.s32 %s19, 1
      %s27 = ssub.s32 %s19, %s26
      %p28 = scmp.eq.s32.totalorder %s27, 0
      %s30 = sadd.s32 %s29, 1
      %s31 = scalar_select %p28, %s29, %s30
      %p34 = pneg %p28
      %p35 = scmp.eq.s32.totalorder %s19, 1
      %p36 = por %p34, %p35
      %p37 = scmp.ne.s32.totalorder %s29, %s32
      %p38 = scmp.eq.s32.totalorder %s19, 0
      %p39 = por %p37, %p38
      %p40 = scmp.ne.s32.totalorder %s29, %s32
      %p41 = scmp.eq.s32.totalorder %s24, 1
      %p42 = por %p40, %p41
      %p43 = scmp.ne.s32.totalorder %s32, %s33
      %p44 = scmp.eq.s32.totalorder %s24, 0
      %p45 = por %p43, %p44
      %p46 = scmp.ne.s32.totalorder %s32, %s33
      %p47 = scmp.eq.s32.totalorder %s25, 1
      %p48 = por %p46, %p47
      %p50 = scmp.ne.s32.totalorder %s33, %s49
      %p51 = scmp.eq.s32.totalorder %s25, 0
      %p52 = por %p50, %p51
      %s54 = sadd.s32 %s53, 1
      %p57 = scmp.eq.s32.totalorder %s19, 1
      %p58 = scmp.ne.s32.totalorder %s53, %s55
      %p59 = scmp.eq.s32.totalorder %s19, 0
      %p60 = por %p58, %p59
      %p61 = scmp.ne.s32.totalorder %s53, %s55
      %p62 = scmp.eq.s32.totalorder %s24, 1
      %p63 = por %p61, %p62
      %p64 = scmp.ne.s32.totalorder %s55, %s56
      %p65 = scmp.eq.s32.totalorder %s24, 0
      %p66 = por %p64, %p65
      %p67 = scmp.ne.s32.totalorder %s55, %s56
      %p68 = scmp.eq.s32.totalorder %s25, 1
      %p69 = por %p67, %p68
      %p71 = scmp.ne.s32.totalorder %s56, %s70
      %p72 = scmp.eq.s32.totalorder %s25, 0
      %p73 = por %p71, %p72
      %s75 = sadd.s32 %s74, 1
      %p78 = scmp.eq.s32.totalorder %s19, 1
      %p79 = scmp.ne.s32.totalorder %s74, %s76
      %p80 = scmp.eq.s32.totalorder %s19, 0
      %p81 = por %p79, %p80
      %p82 = scmp.ne.s32.totalorder %s74, %s76
      %p83 = scmp.eq.s32.totalorder %s24, 1
      %p84 = por %p82, %p83
      %p85 = scmp.ne.s32.totalorder %s76, %s77
      %p86 = scmp.eq.s32.totalorder %s24, 0
      %p87 = por %p85, %p86
      %p88 = scmp.ne.s32.totalorder %s76, %s77
      %p89 = scmp.eq.s32.totalorder %s25, 1
      %p90 = por %p88, %p89
      %p92 = scmp.ne.s32.totalorder %s77, %s91
      %p93 = scmp.eq.s32.totalorder %s25, 0
      %p94 = por %p92, %p93
      %s96 = sadd.s32 %s95, 1
      %p99 = scmp.eq.s32.totalorder %s19, 1
      %p100 = scmp.ne.s32.totalorder %s95, %s97
      %p101 = scmp.eq.s32.totalorder %s19, 0
      %p102 = por %p100, %p101
      %p103 = scmp.ne.s32.totalorder %s95, %s97
      %p104 = scmp.eq.s32.totalorder %s24, 1
      %p105 = por %p103, %p104
      %p106 = scmp.ne.s32.totalorder %s97, %s98
      %p107 = scmp.eq.s32.totalorder %s24, 0
      %p108 = por %p106, %p107
      %p109 = scmp.ne.s32.totalorder %s97, %s98
      %p110 = scmp.eq.s32.totalorder %s25, 1
      %p111 = por %p109, %p110
      %p113 = scmp.ne.s32.totalorder %s98, %s112
      %p114 = scmp.eq.s32.totalorder %s25, 0
      %p115 = por %p113, %p114
      %s117 = sadd.s32 %s116, 1
      %p120 = scmp.eq.s32.totalorder %s19, 1
      %p121 = scmp.ne.s32.totalorder %s116, %s118
      %p122 = scmp.eq.s32.totalorder %s19, 0
      %p123 = por %p121, %p122
      %p124 = scmp.ne.s32.totalorder %s116, %s118
      %p125 = scmp.eq.s32.totalorder %s24, 1
      %p126 = por %p124, %p125
      %p127 = scmp.ne.s32.totalorder %s118, %s119
      %p128 = scmp.eq.s32.totalorder %s24, 0
      %p129 = por %p127, %p128
      %p130 = scmp.ne.s32.totalorder %s118, %s119
      %p131 = scmp.eq.s32.totalorder %s25, 1
      %p132 = por %p130, %p131
      %p134 = scmp.ne.s32.totalorder %s119, %s133
      %p135 = scmp.eq.s32.totalorder %s25, 0
      %p136 = por %p134, %p135
      %s137 = ssub.s32 %s19, %s26
      %p138 = scmp.eq.s32.totalorder %s137, 0
      %s140 = sadd.s32 %s139, 1
      %s141 = scalar_select %p138, %s139, %s140
      %p144 = pneg %p138
      %p145 = scmp.eq.s32.totalorder %s19, 1
      %p146 = por %p144, %p145
      %p147 = scmp.ne.s32.totalorder %s139, %s142
      %p148 = scmp.eq.s32.totalorder %s19, 0
      %p149 = por %p147, %p148
      %p150 = scmp.ne.s32.totalorder %s139, %s142
      %p151 = scmp.eq.s32.totalorder %s24, 1
      %p152 = por %p150, %p151
      %p153 = scmp.ne.s32.totalorder %s142, %s143
      %p154 = scmp.eq.s32.totalorder %s24, 0
      %p155 = por %p153, %p154
      %p156 = scmp.ne.s32.totalorder %s142, %s143
      %p157 = scmp.eq.s32.totalorder %s25, 1
      %p158 = por %p156, %p157
      %p160 = scmp.ne.s32.totalorder %s143, %s159
      %p161 = scmp.eq.s32.totalorder %s25, 0
      %p162 = por %p160, %p161
      %p163 = scmp.le.s32.totalorder 1, %s19
      %p164 = scmp.lt.s32.totalorder %s19, 3
      %p165 = pnand %p163, %p164
      %p166 = pneg %p165
      // Predicated region
      $region9: #{tpu_custom_call.1} parent=5 // pred_check
        _
      $region10: #{tpu_custom_call.1} parent=5 // pred_check_branch
        %168 = sbr.rel (%p165) target = $region12
      $region11: #{tpu_custom_call.1} parent=5 // pred_region
        %s169 = ssub.s32 %s19, 1
        // Predicated region
        $region13: #{tpu_custom_call.1} parent=11 // pred_check
          %p170 = pneg %p66
        $region14: #{tpu_custom_call.1} parent=11 // pred_check_branch
          %172 = sbr.rel (%p170) target = $region16
        $region15: #{tpu_custom_call.1} parent=11 // pred_region
          %s174 = ssub.s32 98304, 98304
          %175 = vsyncadd [#allocation6], %s174
          %s176 = sshll.u32 [#allocation5], 4
          %s177 = int_to_ptr.vmem [resolvable:$true] %s176
          %182 = dma.hbm_to_vmem [thread:$0]  %s1, 98304, %s177, [#allocation6], 1536, 1536, 96
        $region16: #{tpu_custom_call.1} parent=11 // pred_fallthru
          _
        // Predicated region
        $region17: #{tpu_custom_call.1} parent=11 // pred_check
          %p183 = pneg %p87
        $region18: #{tpu_custom_call.1} parent=11 // pred_check_branch
          %185 = sbr.rel (%p183) target = $region20
        $region19: #{tpu_custom_call.1} parent=11 // pred_region
          %s187 = ssub.s32 192, 192
          %188 = vsyncadd [#allocation6], %s187
          %s190 = sshll.u32 [#allocation7], 4
          %s191 = int_to_ptr.vmem [resolvable:$true] %s190
          %193 = dma.hbm_to_vmem [thread:$0]  %s2, 192, %s191, [#allocation6]
        $region20: #{tpu_custom_call.1} parent=11 // pred_fallthru
          _
        // Predicated region
        $region21: #{tpu_custom_call.1} parent=11 // pred_check
          %p194 = pneg %p108
        $region22: #{tpu_custom_call.1} parent=11 // pred_check_branch
          %196 = sbr.rel (%p194) target = $region24
        $region23: #{tpu_custom_call.1} parent=11 // pred_region
          %s198 = ssub.s32 32768, 32768
          %199 = vsyncadd [#allocation9], %s198
          %s200 = sshll.u32 [#allocation8], 4
          %s201 = int_to_ptr.vmem [resolvable:$true] %s200
          %206 = dma.hbm_to_vmem [thread:$0]  %s3, 32768, %s201, [#allocation9], 512, 512, 32
        $region24: #{tpu_custom_call.1} parent=11 // pred_fallthru
          _
        // Predicated region
        $region25: #{tpu_custom_call.1} parent=11 // pred_check
          %p207 = pneg %p129
        $region26: #{tpu_custom_call.1} parent=11 // pred_check_branch
          %209 = sbr.rel (%p207) target = $region28
        $region27: #{tpu_custom_call.1} parent=11 // pred_region
          %s211 = ssub.s32 64, 64
          %212 = vsyncadd [#allocation9], %s211
          %s214 = sshll.u32 [#allocation10], 4
          %s215 = int_to_ptr.vmem [resolvable:$true] %s214
          %217 = dma.hbm_to_vmem [thread:$0]  %s4, 64, %s215, [#allocation9]
        $region28: #{tpu_custom_call.1} parent=11 // pred_fallthru
          _
      $region12: #{tpu_custom_call.1} parent=5 // pred_fallthru
        _
      %p218 = scmp.lt.s32.totalorder %s19, 2
      // Predicated region
      $region29: #{tpu_custom_call.1} parent=5 // pred_check
        %p219 = pneg %p218
      $region30: #{tpu_custom_call.1} parent=5 // pred_check_branch
        %221 = sbr.rel (%p219) target = $region32
      $region31: #{tpu_custom_call.1} parent=5 // pred_region
        // Predicated region
        $region33: #{tpu_custom_call.1} parent=31 // pred_check
          %p222 = pneg %p39
        $region34: #{tpu_custom_call.1} parent=31 // pred_check_branch
          %224 = sbr.rel (%p222) target = $region36
        $region35: #{tpu_custom_call.1} parent=31 // pred_region
          %s225 = sand.u32 %s29, 1
          %s226 = scalar_lea.sflag [#allocation3], %s225
          %s227 = sand.u32 %s29, 1
          %s228 = smul.addr %s227, 32
          %s229 = scalar_lea.vmem [#allocation2], %s228
          %s231 = ssub.s32 512, 512
          %232 = vsyncadd %s226, %s231
          %s233 = smul.addr %s19, 4
          %s234 = smul.addr %s233, 128
          %s235 = scalar_lea.hbm %s0, %s234
          %s237 = sshll.u32 %s229, 4
          %s238 = int_to_ptr.vmem [resolvable:$true] %s237
          %240 = dma.hbm_to_vmem [thread:$0]  %s235, 512, %s238, %s226
        $region36: #{tpu_custom_call.1} parent=31 // pred_fallthru
          _
      $region32: #{tpu_custom_call.1} parent=5 // pred_fallthru
        _
      %p241 = scmp.le.s32.totalorder 1, %s19
      %p242 = scmp.lt.s32.totalorder %s19, 3
      %p243 = pnand %p241, %p242
      %p244 = pneg %p243
      // Predicated region
      $region37: #{tpu_custom_call.1} parent=5 // pred_check
        _
      $region38: #{tpu_custom_call.1} parent=5 // pred_check_branch
        %246 = sbr.rel (%p243) target = $region40
      $region39: #{tpu_custom_call.1} parent=5 // pred_region
        %s247 = ssub.s32 %s19, 1
        %s248 = sand.u32 %s32, 1
        %s249 = scalar_lea.sflag [#allocation3], %s248
        %s250 = sand.u32 %s32, 1
        %s251 = smul.addr %s250, 32
        %s252 = scalar_lea.vmem [#allocation2], %s251
        // Predicated region
        $region41: #{tpu_custom_call.1} parent=39 // pred_check
          %p253 = pneg %p45
        $region42: #{tpu_custom_call.1} parent=39 // pred_check_branch
          %255 = sbr.rel (%p253) target = $region44
        $region43: #{tpu_custom_call.1} parent=39 // pred_region
          %256 = dma.done %s249, 512
        $region44: #{tpu_custom_call.1} parent=39 // pred_fallthru
          _
        // Predicated region
        $region45: #{tpu_custom_call.1} parent=39 // pred_check
          %p257 = pneg %p66
        $region46: #{tpu_custom_call.1} parent=39 // pred_check_branch
          %259 = sbr.rel (%p257) target = $region48
        $region47: #{tpu_custom_call.1} parent=39 // pred_region
          %260 = dma.done [#allocation6], 98304
        $region48: #{tpu_custom_call.1} parent=39 // pred_fallthru
          _
        // Predicated region
        $region49: #{tpu_custom_call.1} parent=39 // pred_check
          %p261 = pneg %p87
        $region50: #{tpu_custom_call.1} parent=39 // pred_check_branch
          %263 = sbr.rel (%p261) target = $region52
        $region51: #{tpu_custom_call.1} parent=39 // pred_region
          %264 = dma.done [#allocation6], 192
        $region52: #{tpu_custom_call.1} parent=39 // pred_fallthru
          _
        // Predicated region
        $region53: #{tpu_custom_call.1} parent=39 // pred_check
          %p265 = pneg %p108
        $region54: #{tpu_custom_call.1} parent=39 // pred_check_branch
          %267 = sbr.rel (%p265) target = $region56
        $region55: #{tpu_custom_call.1} parent=39 // pred_region
          %268 = dma.done [#allocation9], 32768
        $region56: #{tpu_custom_call.1} parent=39 // pred_fallthru
          _
        // Predicated region
        $region57: #{tpu_custom_call.1} parent=39 // pred_check
          %p269 = pneg %p129
        $region58: #{tpu_custom_call.1} parent=39 // pred_check_branch
          %271 = sbr.rel (%p269) target = $region60
        $region59: #{tpu_custom_call.1} parent=39 // pred_region
          %272 = dma.done [#allocation9], 64
        $region60: #{tpu_custom_call.1} parent=39 // pred_fallthru
          _
        %s273 = sand.u32 %s32, 1
        %s274 = scalar_lea.sflag [#allocation3], %s273
        %s275 = sand.u32 %s32, 1
        %s276 = smul.addr %s275, 32
        %s277 = scalar_lea.vmem [#allocation2], %s276
        %p278 = pneg %p45
        %p279 = pneg %p42
        %p280 = pneg %p66
        %p281 = pneg %p63
        %p282 = pneg %p87
        %p283 = pneg %p84
        %p284 = pneg %p108
        %p285 = pneg %p105
        %p286 = pneg %p129
        %p287 = pneg %p126
        %p288 = pneg %p155
        %p289 = pneg %p152
        %s290 = sand.u32 %s142, 1
        %s291 = scalar_lea.sflag [#allocation4], %s290
        %s292 = sand.u32 %s142, 1
        %s293 = smul.addr %s292, 32
        %s294 = scalar_lea.vmem [#allocation11], %s293
        %v295 = vld [vmem:[%s252] sm:$0xff]
        %v296 = vld [vmem:[%s252 + $0x8] sm:$0xff]
        %v297 = vld [vmem:[%s252 + $0x10] sm:$0xff]
        %v298 = vld [vmem:[%s252 + $0x18] sm:$0xff]
        %v299 = vld [vmem:[#allocation5] sm:$0xff]
        %v300 = vld [vmem:[#allocation5 + $0x8] sm:$0xff]
        %v301 = vld [vmem:[#allocation5 + $0x10] sm:$0xff]
        %v302 = vld [vmem:[#allocation5 + $0x18] sm:$0xff]
        %v303 = vld [vmem:[#allocation5 + $0x20] sm:$0xff]
        %v304 = vld [vmem:[#allocation5 + $0x28] sm:$0xff]
        %v305 = vld [vmem:[#allocation5 + $0x30] sm:$0xff]
        %v306 = vld [vmem:[#allocation5 + $0x38] sm:$0xff]
        %v307 = vld [vmem:[#allocation5 + $0x40] sm:$0xff]
        %v308 = vld [vmem:[#allocation5 + $0x48] sm:$0xff]
        %v309 = vld [vmem:[#allocation5 + $0x50] sm:$0xff]
        %v310 = vld [vmem:[#allocation5 + $0x58] sm:$0xff]
        %v311 = vld [vmem:[#allocation5 + $0x60] sm:$0xff]
        %v312 = vld [vmem:[#allocation5 + $0x68] sm:$0xff]
        %v313 = vld [vmem:[#allocation5 + $0x70] sm:$0xff]
        %v314 = vld [vmem:[#allocation5 + $0x78] sm:$0xff]
        %v315 = vld [vmem:[#allocation5 + $0x80] sm:$0xff]
        %v316 = vld [vmem:[#allocation5 + $0x88] sm:$0xff]
        %v317 = vld [vmem:[#allocation5 + $0x90] sm:$0xff]
        %v318 = vld [vmem:[#allocation5 + $0x98] sm:$0xff]
        %v319 = vld [vmem:[#allocation5 + $0xa0] sm:$0xff]
        %v320 = vld [vmem:[#allocation5 + $0xa8] sm:$0xff]
        %v321 = vld [vmem:[#allocation5 + $0xb0] sm:$0xff]
        %v322 = vld [vmem:[#allocation5 + $0xb8] sm:$0xff]
        %v323 = vld [vmem:[#allocation5 + $0xc0] sm:$0xff]
        %v324 = vld [vmem:[#allocation5 + $0xc8] sm:$0xff]
        %v325 = vld [vmem:[#allocation5 + $0xd0] sm:$0xff]
        %v326 = vld [vmem:[#allocation5 + $0xd8] sm:$0xff]
        %v327 = vld [vmem:[#allocation5 + $0xe0] sm:$0xff]
        %v328 = vld [vmem:[#allocation5 + $0xe8] sm:$0xff]
        %v329 = vld [vmem:[#allocation5 + $0xf0] sm:$0xff]
        %v330 = vld [vmem:[#allocation5 + $0xf8] sm:$0xff]
        %v331 = vld [vmem:[#allocation5 + $0x100] sm:$0xff]
        %v332 = vld [vmem:[#allocation5 + $0x108] sm:$0xff]
        %v333 = vld [vmem:[#allocation5 + $0x110] sm:$0xff]
        %v334 = vld [vmem:[#allocation5 + $0x118] sm:$0xff]
        %v335 = vld [vmem:[#allocation5 + $0x120] sm:$0xff]
        %v336 = vld [vmem:[#allocation5 + $0x128] sm:$0xff]
        %v337 = vld [vmem:[#allocation5 + $0x130] sm:$0xff]
        %v338 = vld [vmem:[#allocation5 + $0x138] sm:$0xff]
        %v339 = vld [vmem:[#allocation5 + $0x140] sm:$0xff]
        %v340 = vld [vmem:[#allocation5 + $0x148] sm:$0xff]
        %v341 = vld [vmem:[#allocation5 + $0x150] sm:$0xff]
        %v342 = vld [vmem:[#allocation5 + $0x158] sm:$0xff]
        %v343 = vld [vmem:[#allocation5 + $0x160] sm:$0xff]
        %v344 = vld [vmem:[#allocation5 + $0x168] sm:$0xff]
        %v345 = vld [vmem:[#allocation5 + $0x170] sm:$0xff]
        %v346 = vld [vmem:[#allocation5 + $0x178] sm:$0xff]
        %v347 = vld [vmem:[#allocation5 + $0x180] sm:$0xff]
        %v348 = vld [vmem:[#allocation5 + $0x188] sm:$0xff]
        %v349 = vld [vmem:[#allocation5 + $0x190] sm:$0xff]
        %v350 = vld [vmem:[#allocation5 + $0x198] sm:$0xff]
        %v351 = vld [vmem:[#allocation5 + $0x1a0] sm:$0xff]
        %v352 = vld [vmem:[#allocation5 + $0x1a8] sm:$0xff]
        %v353 = vld [vmem:[#allocation5 + $0x1b0] sm:$0xff]
        %v354 = vld [vmem:[#allocation5 + $0x1b8] sm:$0xff]
        %v355 = vld [vmem:[#allocation5 + $0x1c0] sm:$0xff]
        %v356 = vld [vmem:[#allocation5 + $0x1c8] sm:$0xff]
        %v357 = vld [vmem:[#allocation5 + $0x1d0] sm:$0xff]
        %v358 = vld [vmem:[#allocation5 + $0x1d8] sm:$0xff]
        %v359 = vld [vmem:[#allocation5 + $0x1e0] sm:$0xff]
        %v360 = vld [vmem:[#allocation5 + $0x1e8] sm:$0xff]
        %v361 = vld [vmem:[#allocation5 + $0x1f0] sm:$0xff]
        %v362 = vld [vmem:[#allocation5 + $0x1f8] sm:$0xff]
        %v363 = vld [vmem:[#allocation5 + $0x200] sm:$0xff]
        %v364 = vld [vmem:[#allocation5 + $0x208] sm:$0xff]
        %v365 = vld [vmem:[#allocation5 + $0x210] sm:$0xff]
        %v366 = vld [vmem:[#allocation5 + $0x218] sm:$0xff]
        %v367 = vld [vmem:[#allocation5 + $0x220] sm:$0xff]
        %v368 = vld [vmem:[#allocation5 + $0x228] sm:$0xff]
        %v369 = vld [vmem:[#allocation5 + $0x230] sm:$0xff]
        %v370 = vld [vmem:[#allocation5 + $0x238] sm:$0xff]
        %v371 = vld [vmem:[#allocation5 + $0x240] sm:$0xff]
        %v372 = vld [vmem:[#allocation5 + $0x248] sm:$0xff]
        %v373 = vld [vmem:[#allocation5 + $0x250] sm:$0xff]
        %v374 = vld [vmem:[#allocation5 + $0x258] sm:$0xff]
        %v375 = vld [vmem:[#allocation5 + $0x260] sm:$0xff]
        %v376 = vld [vmem:[#allocation5 + $0x268] sm:$0xff]
        %v377 = vld [vmem:[#allocation5 + $0x270] sm:$0xff]
        %v378 = vld [vmem:[#allocation5 + $0x278] sm:$0xff]
        %v379 = vld [vmem:[#allocation5 + $0x280] sm:$0xff]
        %v380 = vld [vmem:[#allocation5 + $0x288] sm:$0xff]
        %v381 = vld [vmem:[#allocation5 + $0x290] sm:$0xff]
        %v382 = vld [vmem:[#allocation5 + $0x298] sm:$0xff]
        %v383 = vld [vmem:[#allocation5 + $0x2a0] sm:$0xff]
        %v384 = vld [vmem:[#allocation5 + $0x2a8] sm:$0xff]
        %v385 = vld [vmem:[#allocation5 + $0x2b0] sm:$0xff]
        %v386 = vld [vmem:[#allocation5 + $0x2b8] sm:$0xff]
        %v387 = vld [vmem:[#allocation5 + $0x2c0] sm:$0xff]
        %v388 = vld [vmem:[#allocation5 + $0x2c8] sm:$0xff]
        %v389 = vld [vmem:[#allocation5 + $0x2d0] sm:$0xff]
        %v390 = vld [vmem:[#allocation5 + $0x2d8] sm:$0xff]
        %v391 = vld [vmem:[#allocation5 + $0x2e0] sm:$0xff]
        %v392 = vld [vmem:[#allocation5 + $0x2e8] sm:$0xff]
        %v393 = vld [vmem:[#allocation5 + $0x2f0] sm:$0xff]
        %v394 = vld [vmem:[#allocation5 + $0x2f8] sm:$0xff]
        %v395 = vld [vmem:[#allocation5 + $0x300] sm:$0xff]
        %v396 = vld [vmem:[#allocation5 + $0x308] sm:$0xff]
        %v397 = vld [vmem:[#allocation5 + $0x310] sm:$0xff]
        %v398 = vld [vmem:[#allocation5 + $0x318] sm:$0xff]
        %v399 = vld [vmem:[#allocation5 + $0x320] sm:$0xff]
        %v400 = vld [vmem:[#allocation5 + $0x328] sm:$0xff]
        %v401 = vld [vmem:[#allocation5 + $0x330] sm:$0xff]
        %v402 = vld [vmem:[#allocation5 + $0x338] sm:$0xff]
        %v403 = vld [vmem:[#allocation5 + $0x340] sm:$0xff]
        %v404 = vld [vmem:[#allocation5 + $0x348] sm:$0xff]
        %v405 = vld [vmem:[#allocation5 + $0x350] sm:$0xff]
        %v406 = vld [vmem:[#allocation5 + $0x358] sm:$0xff]
        %v407 = vld [vmem:[#allocation5 + $0x360] sm:$0xff]
        %v408 = vld [vmem:[#allocation5 + $0x368] sm:$0xff]
        %v409 = vld [vmem:[#allocation5 + $0x370] sm:$0xff]
        %v410 = vld [vmem:[#allocation5 + $0x378] sm:$0xff]
        %v411 = vld [vmem:[#allocation5 + $0x380] sm:$0xff]
        %v412 = vld [vmem:[#allocation5 + $0x388] sm:$0xff]
        %v413 = vld [vmem:[#allocation5 + $0x390] sm:$0xff]
        %v414 = vld [vmem:[#allocation5 + $0x398] sm:$0xff]
        %v415 = vld [vmem:[#allocation5 + $0x3a0] sm:$0xff]
        %v416 = vld [vmem:[#allocation5 + $0x3a8] sm:$0xff]
        %v417 = vld [vmem:[#allocation5 + $0x3b0] sm:$0xff]
        %v418 = vld [vmem:[#allocation5 + $0x3b8] sm:$0xff]
        %v419 = vld [vmem:[#allocation5 + $0x3c0] sm:$0xff]
        %v420 = vld [vmem:[#allocation5 + $0x3c8] sm:$0xff]
        %v421 = vld [vmem:[#allocation5 + $0x3d0] sm:$0xff]
        %v422 = vld [vmem:[#allocation5 + $0x3d8] sm:$0xff]
        %v423 = vld [vmem:[#allocation5 + $0x3e0] sm:$0xff]
        %v424 = vld [vmem:[#allocation5 + $0x3e8] sm:$0xff]
        %v425 = vld [vmem:[#allocation5 + $0x3f0] sm:$0xff]
        %v426 = vld [vmem:[#allocation5 + $0x3f8] sm:$0xff]
        %v427 = vld [vmem:[#allocation5 + $0x400] sm:$0xff]
        %v428 = vld [vmem:[#allocation5 + $0x408] sm:$0xff]
        %v429 = vld [vmem:[#allocation5 + $0x410] sm:$0xff]
        %v430 = vld [vmem:[#allocation5 + $0x418] sm:$0xff]
        %v431 = vld [vmem:[#allocation5 + $0x420] sm:$0xff]
        %v432 = vld [vmem:[#allocation5 + $0x428] sm:$0xff]
        %v433 = vld [vmem:[#allocation5 + $0x430] sm:$0xff]
        %v434 = vld [vmem:[#allocation5 + $0x438] sm:$0xff]
        %v435 = vld [vmem:[#allocation5 + $0x440] sm:$0xff]
        %v436 = vld [vmem:[#allocation5 + $0x448] sm:$0xff]
        %v437 = vld [vmem:[#allocation5 + $0x450] sm:$0xff]
        %v438 = vld [vmem:[#allocation5 + $0x458] sm:$0xff]
        %v439 = vld [vmem:[#allocation5 + $0x460] sm:$0xff]
        %v440 = vld [vmem:[#allocation5 + $0x468] sm:$0xff]
        %v441 = vld [vmem:[#allocation5 + $0x470] sm:$0xff]
        %v442 = vld [vmem:[#allocation5 + $0x478] sm:$0xff]
        %v443 = vld [vmem:[#allocation5 + $0x480] sm:$0xff]
        %v444 = vld [vmem:[#allocation5 + $0x488] sm:$0xff]
        %v445 = vld [vmem:[#allocation5 + $0x490] sm:$0xff]
        %v446 = vld [vmem:[#allocation5 + $0x498] sm:$0xff]
        %v447 = vld [vmem:[#allocation5 + $0x4a0] sm:$0xff]
        %v448 = vld [vmem:[#allocation5 + $0x4a8] sm:$0xff]
        %v449 = vld [vmem:[#allocation5 + $0x4b0] sm:$0xff]
        %v450 = vld [vmem:[#allocation5 + $0x4b8] sm:$0xff]
        %v451 = vld [vmem:[#allocation5 + $0x4c0] sm:$0xff]
        %v452 = vld [vmem:[#allocation5 + $0x4c8] sm:$0xff]
        %v453 = vld [vmem:[#allocation5 + $0x4d0] sm:$0xff]
        %v454 = vld [vmem:[#allocation5 + $0x4d8] sm:$0xff]
        %v455 = vld [vmem:[#allocation5 + $0x4e0] sm:$0xff]
        %v456 = vld [vmem:[#allocation5 + $0x4e8] sm:$0xff]
        %v457 = vld [vmem:[#allocation5 + $0x4f0] sm:$0xff]
        %v458 = vld [vmem:[#allocation5 + $0x4f8] sm:$0xff]
        %v459 = vld [vmem:[#allocation5 + $0x500] sm:$0xff]
        %v460 = vld [vmem:[#allocation5 + $0x508] sm:$0xff]
        %v461 = vld [vmem:[#allocation5 + $0x510] sm:$0xff]
        %v462 = vld [vmem:[#allocation5 + $0x518] sm:$0xff]
        %v463 = vld [vmem:[#allocation5 + $0x520] sm:$0xff]
        %v464 = vld [vmem:[#allocation5 + $0x528] sm:$0xff]
        %v465 = vld [vmem:[#allocation5 + $0x530] sm:$0xff]
        %v466 = vld [vmem:[#allocation5 + $0x538] sm:$0xff]
        %v467 = vld [vmem:[#allocation5 + $0x540] sm:$0xff]
        %v468 = vld [vmem:[#allocation5 + $0x548] sm:$0xff]
        %v469 = vld [vmem:[#allocation5 + $0x550] sm:$0xff]
        %v470 = vld [vmem:[#allocation5 + $0x558] sm:$0xff]
        %v471 = vld [vmem:[#allocation5 + $0x560] sm:$0xff]
        %v472 = vld [vmem:[#allocation5 + $0x568] sm:$0xff]
        %v473 = vld [vmem:[#allocation5 + $0x570] sm:$0xff]
        %v474 = vld [vmem:[#allocation5 + $0x578] sm:$0xff]
        %v475 = vld [vmem:[#allocation5 + $0x580] sm:$0xff]
        %v476 = vld [vmem:[#allocation5 + $0x588] sm:$0xff]
        %v477 = vld [vmem:[#allocation5 + $0x590] sm:$0xff]
        %v478 = vld [vmem:[#allocation5 + $0x598] sm:$0xff]
        %v479 = vld [vmem:[#allocation5 + $0x5a0] sm:$0xff]
        %v480 = vld [vmem:[#allocation5 + $0x5a8] sm:$0xff]
        %v481 = vld [vmem:[#allocation5 + $0x5b0] sm:$0xff]
        %v482 = vld [vmem:[#allocation5 + $0x5b8] sm:$0xff]
        %v483 = vld [vmem:[#allocation5 + $0x5c0] sm:$0xff]
        %v484 = vld [vmem:[#allocation5 + $0x5c8] sm:$0xff]
        %v485 = vld [vmem:[#allocation5 + $0x5d0] sm:$0xff]
        %v486 = vld [vmem:[#allocation5 + $0x5d8] sm:$0xff]
        %v487 = vld [vmem:[#allocation5 + $0x5e0] sm:$0xff]
        %v488 = vld [vmem:[#allocation5 + $0x5e8] sm:$0xff]
        %v489 = vld [vmem:[#allocation5 + $0x5f0] sm:$0xff]
        %v490 = vld [vmem:[#allocation5 + $0x5f8] sm:$0xff]
        %v491 = vld [vmem:[#allocation5 + $0x600] sm:$0xff]
        %v492 = vld [vmem:[#allocation5 + $0x608] sm:$0xff]
        %v493 = vld [vmem:[#allocation5 + $0x610] sm:$0xff]
        %v494 = vld [vmem:[#allocation5 + $0x618] sm:$0xff]
        %v495 = vld [vmem:[#allocation5 + $0x620] sm:$0xff]
        %v496 = vld [vmem:[#allocation5 + $0x628] sm:$0xff]
        %v497 = vld [vmem:[#allocation5 + $0x630] sm:$0xff]
        %v498 = vld [vmem:[#allocation5 + $0x638] sm:$0xff]
        %v499 = vld [vmem:[#allocation5 + $0x640] sm:$0xff]
        %v500 = vld [vmem:[#allocation5 + $0x648] sm:$0xff]
        %v501 = vld [vmem:[#allocation5 + $0x650] sm:$0xff]
        %v502 = vld [vmem:[#allocation5 + $0x658] sm:$0xff]
        %v503 = vld [vmem:[#allocation5 + $0x660] sm:$0xff]
        %v504 = vld [vmem:[#allocation5 + $0x668] sm:$0xff]
        %v505 = vld [vmem:[#allocation5 + $0x670] sm:$0xff]
        %v506 = vld [vmem:[#allocation5 + $0x678] sm:$0xff]
        %v507 = vld [vmem:[#allocation5 + $0x680] sm:$0xff]
        %v508 = vld [vmem:[#allocation5 + $0x688] sm:$0xff]
        %v509 = vld [vmem:[#allocation5 + $0x690] sm:$0xff]
        %v510 = vld [vmem:[#allocation5 + $0x698] sm:$0xff]
        %v511 = vld [vmem:[#allocation5 + $0x6a0] sm:$0xff]
        %v512 = vld [vmem:[#allocation5 + $0x6a8] sm:$0xff]
        %v513 = vld [vmem:[#allocation5 + $0x6b0] sm:$0xff]
        %v514 = vld [vmem:[#allocation5 + $0x6b8] sm:$0xff]
        %v515 = vld [vmem:[#allocation5 + $0x6c0] sm:$0xff]
        %v516 = vld [vmem:[#allocation5 + $0x6c8] sm:$0xff]
        %v517 = vld [vmem:[#allocation5 + $0x6d0] sm:$0xff]
        %v518 = vld [vmem:[#allocation5 + $0x6d8] sm:$0xff]
        %v519 = vld [vmem:[#allocation5 + $0x6e0] sm:$0xff]
        %v520 = vld [vmem:[#allocation5 + $0x6e8] sm:$0xff]
        %v521 = vld [vmem:[#allocation5 + $0x6f0] sm:$0xff]
        %v522 = vld [vmem:[#allocation5 + $0x6f8] sm:$0xff]
        %v523 = vld [vmem:[#allocation5 + $0x700] sm:$0xff]
        %v524 = vld [vmem:[#allocation5 + $0x708] sm:$0xff]
        %v525 = vld [vmem:[#allocation5 + $0x710] sm:$0xff]
        %v526 = vld [vmem:[#allocation5 + $0x718] sm:$0xff]
        %v527 = vld [vmem:[#allocation5 + $0x720] sm:$0xff]
        %v528 = vld [vmem:[#allocation5 + $0x728] sm:$0xff]
        %v529 = vld [vmem:[#allocation5 + $0x730] sm:$0xff]
        %v530 = vld [vmem:[#allocation5 + $0x738] sm:$0xff]
        %v531 = vld [vmem:[#allocation5 + $0x740] sm:$0xff]
        %v532 = vld [vmem:[#allocation5 + $0x748] sm:$0xff]
        %v533 = vld [vmem:[#allocation5 + $0x750] sm:$0xff]
        %v534 = vld [vmem:[#allocation5 + $0x758] sm:$0xff]
        %v535 = vld [vmem:[#allocation5 + $0x760] sm:$0xff]
        %v536 = vld [vmem:[#allocation5 + $0x768] sm:$0xff]
        %v537 = vld [vmem:[#allocation5 + $0x770] sm:$0xff]
        %v538 = vld [vmem:[#allocation5 + $0x778] sm:$0xff]
        %v539 = vld [vmem:[#allocation5 + $0x780] sm:$0xff]
        %v540 = vld [vmem:[#allocation5 + $0x788] sm:$0xff]
        %v541 = vld [vmem:[#allocation5 + $0x790] sm:$0xff]
        %v542 = vld [vmem:[#allocation5 + $0x798] sm:$0xff]
        %v543 = vld [vmem:[#allocation5 + $0x7a0] sm:$0xff]
        %v544 = vld [vmem:[#allocation5 + $0x7a8] sm:$0xff]
        %v545 = vld [vmem:[#allocation5 + $0x7b0] sm:$0xff]
        %v546 = vld [vmem:[#allocation5 + $0x7b8] sm:$0xff]
        %v547 = vld [vmem:[#allocation5 + $0x7c0] sm:$0xff]
        %v548 = vld [vmem:[#allocation5 + $0x7c8] sm:$0xff]
        %v549 = vld [vmem:[#allocation5 + $0x7d0] sm:$0xff]
        %v550 = vld [vmem:[#allocation5 + $0x7d8] sm:$0xff]
        %v551 = vld [vmem:[#allocation5 + $0x7e0] sm:$0xff]
        %v552 = vld [vmem:[#allocation5 + $0x7e8] sm:$0xff]
        %v553 = vld [vmem:[#allocation5 + $0x7f0] sm:$0xff]
        %v554 = vld [vmem:[#allocation5 + $0x7f8] sm:$0xff]
        %v555 = vld [vmem:[#allocation5 + $0x800] sm:$0xff]
        %v556 = vld [vmem:[#allocation5 + $0x808] sm:$0xff]
        %v557 = vld [vmem:[#allocation5 + $0x810] sm:$0xff]
        %v558 = vld [vmem:[#allocation5 + $0x818] sm:$0xff]
        %v559 = vld [vmem:[#allocation5 + $0x820] sm:$0xff]
        %v560 = vld [vmem:[#allocation5 + $0x828] sm:$0xff]
        %v561 = vld [vmem:[#allocation5 + $0x830] sm:$0xff]
        %v562 = vld [vmem:[#allocation5 + $0x838] sm:$0xff]
        %v563 = vld [vmem:[#allocation5 + $0x840] sm:$0xff]
        %v564 = vld [vmem:[#allocation5 + $0x848] sm:$0xff]
        %v565 = vld [vmem:[#allocation5 + $0x850] sm:$0xff]
        %v566 = vld [vmem:[#allocation5 + $0x858] sm:$0xff]
        %v567 = vld [vmem:[#allocation5 + $0x860] sm:$0xff]
        %v568 = vld [vmem:[#allocation5 + $0x868] sm:$0xff]
        %v569 = vld [vmem:[#allocation5 + $0x870] sm:$0xff]
        %v570 = vld [vmem:[#allocation5 + $0x878] sm:$0xff]
        %v571 = vld [vmem:[#allocation5 + $0x880] sm:$0xff]
        %v572 = vld [vmem:[#allocation5 + $0x888] sm:$0xff]
        %v573 = vld [vmem:[#allocation5 + $0x890] sm:$0xff]
        %v574 = vld [vmem:[#allocation5 + $0x898] sm:$0xff]
        %v575 = vld [vmem:[#allocation5 + $0x8a0] sm:$0xff]
        %v576 = vld [vmem:[#allocation5 + $0x8a8] sm:$0xff]
        %v577 = vld [vmem:[#allocation5 + $0x8b0] sm:$0xff]
        %v578 = vld [vmem:[#allocation5 + $0x8b8] sm:$0xff]
        %v579 = vld [vmem:[#allocation5 + $0x8c0] sm:$0xff]
        %v580 = vld [vmem:[#allocation5 + $0x8c8] sm:$0xff]
        %v581 = vld [vmem:[#allocation5 + $0x8d0] sm:$0xff]
        %v582 = vld [vmem:[#allocation5 + $0x8d8] sm:$0xff]
        %v583 = vld [vmem:[#allocation5 + $0x8e0] sm:$0xff]
        %v584 = vld [vmem:[#allocation5 + $0x8e8] sm:$0xff]
        %v585 = vld [vmem:[#allocation5 + $0x8f0] sm:$0xff]
        %v586 = vld [vmem:[#allocation5 + $0x8f8] sm:$0xff]
        %v587 = vld [vmem:[#allocation5 + $0x900] sm:$0xff]
        %v588 = vld [vmem:[#allocation5 + $0x908] sm:$0xff]
        %v589 = vld [vmem:[#allocation5 + $0x910] sm:$0xff]
        %v590 = vld [vmem:[#allocation5 + $0x918] sm:$0xff]
        %v591 = vld [vmem:[#allocation5 + $0x920] sm:$0xff]
        %v592 = vld [vmem:[#allocation5 + $0x928] sm:$0xff]
        %v593 = vld [vmem:[#allocation5 + $0x930] sm:$0xff]
        %v594 = vld [vmem:[#allocation5 + $0x938] sm:$0xff]
        %v595 = vld [vmem:[#allocation5 + $0x940] sm:$0xff]
        %v596 = vld [vmem:[#allocation5 + $0x948] sm:$0xff]
        %v597 = vld [vmem:[#allocation5 + $0x950] sm:$0xff]
        %v598 = vld [vmem:[#allocation5 + $0x958] sm:$0xff]
        %v599 = vld [vmem:[#allocation5 + $0x960] sm:$0xff]
        %v600 = vld [vmem:[#allocation5 + $0x968] sm:$0xff]
        %v601 = vld [vmem:[#allocation5 + $0x970] sm:$0xff]
        %v602 = vld [vmem:[#allocation5 + $0x978] sm:$0xff]
        %v603 = vld [vmem:[#allocation5 + $0x980] sm:$0xff]
        %v604 = vld [vmem:[#allocation5 + $0x988] sm:$0xff]
        %v605 = vld [vmem:[#allocation5 + $0x990] sm:$0xff]
        %v606 = vld [vmem:[#allocation5 + $0x998] sm:$0xff]
        %v607 = vld [vmem:[#allocation5 + $0x9a0] sm:$0xff]
        %v608 = vld [vmem:[#allocation5 + $0x9a8] sm:$0xff]
        %v609 = vld [vmem:[#allocation5 + $0x9b0] sm:$0xff]
        %v610 = vld [vmem:[#allocation5 + $0x9b8] sm:$0xff]
        %v611 = vld [vmem:[#allocation5 + $0x9c0] sm:$0xff]
        %v612 = vld [vmem:[#allocation5 + $0x9c8] sm:$0xff]
        %v613 = vld [vmem:[#allocation5 + $0x9d0] sm:$0xff]
        %v614 = vld [vmem:[#allocation5 + $0x9d8] sm:$0xff]
        %v615 = vld [vmem:[#allocation5 + $0x9e0] sm:$0xff]
        %v616 = vld [vmem:[#allocation5 + $0x9e8] sm:$0xff]
        %v617 = vld [vmem:[#allocation5 + $0x9f0] sm:$0xff]
        %v618 = vld [vmem:[#allocation5 + $0x9f8] sm:$0xff]
        %v619 = vld [vmem:[#allocation5 + $0xa00] sm:$0xff]
        %v620 = vld [vmem:[#allocation5 + $0xa08] sm:$0xff]
        %v621 = vld [vmem:[#allocation5 + $0xa10] sm:$0xff]
        %v622 = vld [vmem:[#allocation5 + $0xa18] sm:$0xff]
        %v623 = vld [vmem:[#allocation5 + $0xa20] sm:$0xff]
        %v624 = vld [vmem:[#allocation5 + $0xa28] sm:$0xff]
        %v625 = vld [vmem:[#allocation5 + $0xa30] sm:$0xff]
        %v626 = vld [vmem:[#allocation5 + $0xa38] sm:$0xff]
        %v627 = vld [vmem:[#allocation5 + $0xa40] sm:$0xff]
        %v628 = vld [vmem:[#allocation5 + $0xa48] sm:$0xff]
        %v629 = vld [vmem:[#allocation5 + $0xa50] sm:$0xff]
        %v630 = vld [vmem:[#allocation5 + $0xa58] sm:$0xff]
        %v631 = vld [vmem:[#allocation5 + $0xa60] sm:$0xff]
        %v632 = vld [vmem:[#allocation5 + $0xa68] sm:$0xff]
        %v633 = vld [vmem:[#allocation5 + $0xa70] sm:$0xff]
        %v634 = vld [vmem:[#allocation5 + $0xa78] sm:$0xff]
        %v635 = vld [vmem:[#allocation5 + $0xa80] sm:$0xff]
        %v636 = vld [vmem:[#allocation5 + $0xa88] sm:$0xff]
        %v637 = vld [vmem:[#allocation5 + $0xa90] sm:$0xff]
        %v638 = vld [vmem:[#allocation5 + $0xa98] sm:$0xff]
        %v639 = vld [vmem:[#allocation5 + $0xaa0] sm:$0xff]
        %v640 = vld [vmem:[#allocation5 + $0xaa8] sm:$0xff]
        %v641 = vld [vmem:[#allocation5 + $0xab0] sm:$0xff]
        %v642 = vld [vmem:[#allocation5 + $0xab8] sm:$0xff]
        %v643 = vld [vmem:[#allocation5 + $0xac0] sm:$0xff]
        %v644 = vld [vmem:[#allocation5 + $0xac8] sm:$0xff]
        %v645 = vld [vmem:[#allocation5 + $0xad0] sm:$0xff]
        %v646 = vld [vmem:[#allocation5 + $0xad8] sm:$0xff]
        %v647 = vld [vmem:[#allocation5 + $0xae0] sm:$0xff]
        %v648 = vld [vmem:[#allocation5 + $0xae8] sm:$0xff]
        %v649 = vld [vmem:[#allocation5 + $0xaf0] sm:$0xff]
        %v650 = vld [vmem:[#allocation5 + $0xaf8] sm:$0xff]
        %v651 = vld [vmem:[#allocation5 + $0xb00] sm:$0xff]
        %v652 = vld [vmem:[#allocation5 + $0xb08] sm:$0xff]
        %v653 = vld [vmem:[#allocation5 + $0xb10] sm:$0xff]
        %v654 = vld [vmem:[#allocation5 + $0xb18] sm:$0xff]
        %v655 = vld [vmem:[#allocation5 + $0xb20] sm:$0xff]
        %v656 = vld [vmem:[#allocation5 + $0xb28] sm:$0xff]
        %v657 = vld [vmem:[#allocation5 + $0xb30] sm:$0xff]
        %v658 = vld [vmem:[#allocation5 + $0xb38] sm:$0xff]
        %v659 = vld [vmem:[#allocation5 + $0xb40] sm:$0xff]
        %v660 = vld [vmem:[#allocation5 + $0xb48] sm:$0xff]
        %v661 = vld [vmem:[#allocation5 + $0xb50] sm:$0xff]
        %v662 = vld [vmem:[#allocation5 + $0xb58] sm:$0xff]
        %v663 = vld [vmem:[#allocation5 + $0xb60] sm:$0xff]
        %v664 = vld [vmem:[#allocation5 + $0xb68] sm:$0xff]
        %v665 = vld [vmem:[#allocation5 + $0xb70] sm:$0xff]
        %v666 = vld [vmem:[#allocation5 + $0xb78] sm:$0xff]
        %v667 = vld [vmem:[#allocation5 + $0xb80] sm:$0xff]
        %v668 = vld [vmem:[#allocation5 + $0xb88] sm:$0xff]
        %v669 = vld [vmem:[#allocation5 + $0xb90] sm:$0xff]
        %v670 = vld [vmem:[#allocation5 + $0xb98] sm:$0xff]
        %v671 = vld [vmem:[#allocation5 + $0xba0] sm:$0xff]
        %v672 = vld [vmem:[#allocation5 + $0xba8] sm:$0xff]
        %v673 = vld [vmem:[#allocation5 + $0xbb0] sm:$0xff]
        %v674 = vld [vmem:[#allocation5 + $0xbb8] sm:$0xff]
        %v675 = vld [vmem:[#allocation5 + $0xbc0] sm:$0xff]
        %v676 = vld [vmem:[#allocation5 + $0xbc8] sm:$0xff]
        %v677 = vld [vmem:[#allocation5 + $0xbd0] sm:$0xff]
        %v678 = vld [vmem:[#allocation5 + $0xbd8] sm:$0xff]
        %v679 = vld [vmem:[#allocation5 + $0xbe0] sm:$0xff]
        %v680 = vld [vmem:[#allocation5 + $0xbe8] sm:$0xff]
        %v681 = vld [vmem:[#allocation5 + $0xbf0] sm:$0xff]
        %v682 = vld [vmem:[#allocation5 + $0xbf8] sm:$0xff]
        %v683 = vld [vmem:[#allocation5 + $0xc00] sm:$0xff]
        %v684 = vld [vmem:[#allocation5 + $0xc08] sm:$0xff]
        %v685 = vld [vmem:[#allocation5 + $0xc10] sm:$0xff]
        %v686 = vld [vmem:[#allocation5 + $0xc18] sm:$0xff]
        %v687 = vld [vmem:[#allocation5 + $0xc20] sm:$0xff]
        %v688 = vld [vmem:[#allocation5 + $0xc28] sm:$0xff]
        %v689 = vld [vmem:[#allocation5 + $0xc30] sm:$0xff]
        %v690 = vld [vmem:[#allocation5 + $0xc38] sm:$0xff]
        %v691 = vld [vmem:[#allocation5 + $0xc40] sm:$0xff]
        %v692 = vld [vmem:[#allocation5 + $0xc48] sm:$0xff]
        %v693 = vld [vmem:[#allocation5 + $0xc50] sm:$0xff]
        %v694 = vld [vmem:[#allocation5 + $0xc58] sm:$0xff]
        %v695 = vld [vmem:[#allocation5 + $0xc60] sm:$0xff]
        %v696 = vld [vmem:[#allocation5 + $0xc68] sm:$0xff]
        %v697 = vld [vmem:[#allocation5 + $0xc70] sm:$0xff]
        %v698 = vld [vmem:[#allocation5 + $0xc78] sm:$0xff]
        %v699 = vld [vmem:[#allocation5 + $0xc80] sm:$0xff]
        %v700 = vld [vmem:[#allocation5 + $0xc88] sm:$0xff]
        %v701 = vld [vmem:[#allocation5 + $0xc90] sm:$0xff]
        %v702 = vld [vmem:[#allocation5 + $0xc98] sm:$0xff]
        %v703 = vld [vmem:[#allocation5 + $0xca0] sm:$0xff]
        %v704 = vld [vmem:[#allocation5 + $0xca8] sm:$0xff]
        %v705 = vld [vmem:[#allocation5 + $0xcb0] sm:$0xff]
        %v706 = vld [vmem:[#allocation5 + $0xcb8] sm:$0xff]
        %v707 = vld [vmem:[#allocation5 + $0xcc0] sm:$0xff]
        %v708 = vld [vmem:[#allocation5 + $0xcc8] sm:$0xff]
        %v709 = vld [vmem:[#allocation5 + $0xcd0] sm:$0xff]
        %v710 = vld [vmem:[#allocation5 + $0xcd8] sm:$0xff]
        %v711 = vld [vmem:[#allocation5 + $0xce0] sm:$0xff]
        %v712 = vld [vmem:[#allocation5 + $0xce8] sm:$0xff]
        %v713 = vld [vmem:[#allocation5 + $0xcf0] sm:$0xff]
        %v714 = vld [vmem:[#allocation5 + $0xcf8] sm:$0xff]
        %v715 = vld [vmem:[#allocation5 + $0xd00] sm:$0xff]
        %v716 = vld [vmem:[#allocation5 + $0xd08] sm:$0xff]
        %v717 = vld [vmem:[#allocation5 + $0xd10] sm:$0xff]
        %v718 = vld [vmem:[#allocation5 + $0xd18] sm:$0xff]
        %v719 = vld [vmem:[#allocation5 + $0xd20] sm:$0xff]
        %v720 = vld [vmem:[#allocation5 + $0xd28] sm:$0xff]
        %v721 = vld [vmem:[#allocation5 + $0xd30] sm:$0xff]
        %v722 = vld [vmem:[#allocation5 + $0xd38] sm:$0xff]
        %v723 = vld [vmem:[#allocation5 + $0xd40] sm:$0xff]
        %v724 = vld [vmem:[#allocation5 + $0xd48] sm:$0xff]
        %v725 = vld [vmem:[#allocation5 + $0xd50] sm:$0xff]
        %v726 = vld [vmem:[#allocation5 + $0xd58] sm:$0xff]
        %v727 = vld [vmem:[#allocation5 + $0xd60] sm:$0xff]
        %v728 = vld [vmem:[#allocation5 + $0xd68] sm:$0xff]
        %v729 = vld [vmem:[#allocation5 + $0xd70] sm:$0xff]
        %v730 = vld [vmem:[#allocation5 + $0xd78] sm:$0xff]
        %v731 = vld [vmem:[#allocation5 + $0xd80] sm:$0xff]
        %v732 = vld [vmem:[#allocation5 + $0xd88] sm:$0xff]
        %v733 = vld [vmem:[#allocation5 + $0xd90] sm:$0xff]
        %v734 = vld [vmem:[#allocation5 + $0xd98] sm:$0xff]
        %v735 = vld [vmem:[#allocation5 + $0xda0] sm:$0xff]
        %v736 = vld [vmem:[#allocation5 + $0xda8] sm:$0xff]
        %v737 = vld [vmem:[#allocation5 + $0xdb0] sm:$0xff]
        %v738 = vld [vmem:[#allocation5 + $0xdb8] sm:$0xff]
        %v739 = vld [vmem:[#allocation5 + $0xdc0] sm:$0xff]
        %v740 = vld [vmem:[#allocation5 + $0xdc8] sm:$0xff]
        %v741 = vld [vmem:[#allocation5 + $0xdd0] sm:$0xff]
        %v742 = vld [vmem:[#allocation5 + $0xdd8] sm:$0xff]
        %v743 = vld [vmem:[#allocation5 + $0xde0] sm:$0xff]
        %v744 = vld [vmem:[#allocation5 + $0xde8] sm:$0xff]
        %v745 = vld [vmem:[#allocation5 + $0xdf0] sm:$0xff]
        %v746 = vld [vmem:[#allocation5 + $0xdf8] sm:$0xff]
        %v747 = vld [vmem:[#allocation5 + $0xe00] sm:$0xff]
        %v748 = vld [vmem:[#allocation5 + $0xe08] sm:$0xff]
        %v749 = vld [vmem:[#allocation5 + $0xe10] sm:$0xff]
        %v750 = vld [vmem:[#allocation5 + $0xe18] sm:$0xff]
        %v751 = vld [vmem:[#allocation5 + $0xe20] sm:$0xff]
        %v752 = vld [vmem:[#allocation5 + $0xe28] sm:$0xff]
        %v753 = vld [vmem:[#allocation5 + $0xe30] sm:$0xff]
        %v754 = vld [vmem:[#allocation5 + $0xe38] sm:$0xff]
        %v755 = vld [vmem:[#allocation5 + $0xe40] sm:$0xff]
        %v756 = vld [vmem:[#allocation5 + $0xe48] sm:$0xff]
        %v757 = vld [vmem:[#allocation5 + $0xe50] sm:$0xff]
        %v758 = vld [vmem:[#allocation5 + $0xe58] sm:$0xff]
        %v759 = vld [vmem:[#allocation5 + $0xe60] sm:$0xff]
        %v760 = vld [vmem:[#allocation5 + $0xe68] sm:$0xff]
        %v761 = vld [vmem:[#allocation5 + $0xe70] sm:$0xff]
        %v762 = vld [vmem:[#allocation5 + $0xe78] sm:$0xff]
        %v763 = vld [vmem:[#allocation5 + $0xe80] sm:$0xff]
        %v764 = vld [vmem:[#allocation5 + $0xe88] sm:$0xff]
        %v765 = vld [vmem:[#allocation5 + $0xe90] sm:$0xff]
        %v766 = vld [vmem:[#allocation5 + $0xe98] sm:$0xff]
        %v767 = vld [vmem:[#allocation5 + $0xea0] sm:$0xff]
        %v768 = vld [vmem:[#allocation5 + $0xea8] sm:$0xff]
        %v769 = vld [vmem:[#allocation5 + $0xeb0] sm:$0xff]
        %v770 = vld [vmem:[#allocation5 + $0xeb8] sm:$0xff]
        %v771 = vld [vmem:[#allocation5 + $0xec0] sm:$0xff]
        %v772 = vld [vmem:[#allocation5 + $0xec8] sm:$0xff]
        %v773 = vld [vmem:[#allocation5 + $0xed0] sm:$0xff]
        %v774 = vld [vmem:[#allocation5 + $0xed8] sm:$0xff]
        %v775 = vld [vmem:[#allocation5 + $0xee0] sm:$0xff]
        %v776 = vld [vmem:[#allocation5 + $0xee8] sm:$0xff]
        %v777 = vld [vmem:[#allocation5 + $0xef0] sm:$0xff]
        %v778 = vld [vmem:[#allocation5 + $0xef8] sm:$0xff]
        %v779 = vld [vmem:[#allocation5 + $0xf00] sm:$0xff]
        %v780 = vld [vmem:[#allocation5 + $0xf08] sm:$0xff]
        %v781 = vld [vmem:[#allocation5 + $0xf10] sm:$0xff]
        %v782 = vld [vmem:[#allocation5 + $0xf18] sm:$0xff]
        %v783 = vld [vmem:[#allocation5 + $0xf20] sm:$0xff]
        %v784 = vld [vmem:[#allocation5 + $0xf28] sm:$0xff]
        %v785 = vld [vmem:[#allocation5 + $0xf30] sm:$0xff]
        %v786 = vld [vmem:[#allocation5 + $0xf38] sm:$0xff]
        %v787 = vld [vmem:[#allocation5 + $0xf40] sm:$0xff]
        %v788 = vld [vmem:[#allocation5 + $0xf48] sm:$0xff]
        %v789 = vld [vmem:[#allocation5 + $0xf50] sm:$0xff]
        %v790 = vld [vmem:[#allocation5 + $0xf58] sm:$0xff]
        %v791 = vld [vmem:[#allocation5 + $0xf60] sm:$0xff]
        %v792 = vld [vmem:[#allocation5 + $0xf68] sm:$0xff]
        %v793 = vld [vmem:[#allocation5 + $0xf70] sm:$0xff]
        %v794 = vld [vmem:[#allocation5 + $0xf78] sm:$0xff]
        %v795 = vld [vmem:[#allocation5 + $0xf80] sm:$0xff]
        %v796 = vld [vmem:[#allocation5 + $0xf88] sm:$0xff]
        %v797 = vld [vmem:[#allocation5 + $0xf90] sm:$0xff]
        %v798 = vld [vmem:[#allocation5 + $0xf98] sm:$0xff]
        %v799 = vld [vmem:[#allocation5 + $0xfa0] sm:$0xff]
        %v800 = vld [vmem:[#allocation5 + $0xfa8] sm:$0xff]
        %v801 = vld [vmem:[#allocation5 + $0xfb0] sm:$0xff]
        %v802 = vld [vmem:[#allocation5 + $0xfb8] sm:$0xff]
        %v803 = vld [vmem:[#allocation5 + $0xfc0] sm:$0xff]
        %v804 = vld [vmem:[#allocation5 + $0xfc8] sm:$0xff]
        %v805 = vld [vmem:[#allocation5 + $0xfd0] sm:$0xff]
        %v806 = vld [vmem:[#allocation5 + $0xfd8] sm:$0xff]
        %v807 = vld [vmem:[#allocation5 + $0xfe0] sm:$0xff]
        %v808 = vld [vmem:[#allocation5 + $0xfe8] sm:$0xff]
        %v809 = vld [vmem:[#allocation5 + $0xff0] sm:$0xff]
        %v810 = vld [vmem:[#allocation5 + $0xff8] sm:$0xff]
        %v811 = vld [vmem:[#allocation5 + $0x1000] sm:$0xff]
        %v812 = vld [vmem:[#allocation5 + $0x1008] sm:$0xff]
        %v813 = vld [vmem:[#allocation5 + $0x1010] sm:$0xff]
        %v814 = vld [vmem:[#allocation5 + $0x1018] sm:$0xff]
        %v815 = vld [vmem:[#allocation5 + $0x1020] sm:$0xff]
        %v816 = vld [vmem:[#allocation5 + $0x1028] sm:$0xff]
        %v817 = vld [vmem:[#allocation5 + $0x1030] sm:$0xff]
        %v818 = vld [vmem:[#allocation5 + $0x1038] sm:$0xff]
        %v819 = vld [vmem:[#allocation5 + $0x1040] sm:$0xff]
        %v820 = vld [vmem:[#allocation5 + $0x1048] sm:$0xff]
        %v821 = vld [vmem:[#allocation5 + $0x1050] sm:$0xff]
        %v822 = vld [vmem:[#allocation5 + $0x1058] sm:$0xff]
        %v823 = vld [vmem:[#allocation5 + $0x1060] sm:$0xff]
        %v824 = vld [vmem:[#allocation5 + $0x1068] sm:$0xff]
        %v825 = vld [vmem:[#allocation5 + $0x1070] sm:$0xff]
        %v826 = vld [vmem:[#allocation5 + $0x1078] sm:$0xff]
        %v827 = vld [vmem:[#allocation5 + $0x1080] sm:$0xff]
        %v828 = vld [vmem:[#allocation5 + $0x1088] sm:$0xff]
        %v829 = vld [vmem:[#allocation5 + $0x1090] sm:$0xff]
        %v830 = vld [vmem:[#allocation5 + $0x1098] sm:$0xff]
        %v831 = vld [vmem:[#allocation5 + $0x10a0] sm:$0xff]
        %v832 = vld [vmem:[#allocation5 + $0x10a8] sm:$0xff]
        %v833 = vld [vmem:[#allocation5 + $0x10b0] sm:$0xff]
        %v834 = vld [vmem:[#allocation5 + $0x10b8] sm:$0xff]
        %v835 = vld [vmem:[#allocation5 + $0x10c0] sm:$0xff]
        %v836 = vld [vmem:[#allocation5 + $0x10c8] sm:$0xff]
        %v837 = vld [vmem:[#allocation5 + $0x10d0] sm:$0xff]
        %v838 = vld [vmem:[#allocation5 + $0x10d8] sm:$0xff]
        %v839 = vld [vmem:[#allocation5 + $0x10e0] sm:$0xff]
        %v840 = vld [vmem:[#allocation5 + $0x10e8] sm:$0xff]
        %v841 = vld [vmem:[#allocation5 + $0x10f0] sm:$0xff]
        %v842 = vld [vmem:[#allocation5 + $0x10f8] sm:$0xff]
        %v843 = vld [vmem:[#allocation5 + $0x1100] sm:$0xff]
        %v844 = vld [vmem:[#allocation5 + $0x1108] sm:$0xff]
        %v845 = vld [vmem:[#allocation5 + $0x1110] sm:$0xff]
        %v846 = vld [vmem:[#allocation5 + $0x1118] sm:$0xff]
        %v847 = vld [vmem:[#allocation5 + $0x1120] sm:$0xff]
        %v848 = vld [vmem:[#allocation5 + $0x1128] sm:$0xff]
        %v849 = vld [vmem:[#allocation5 + $0x1130] sm:$0xff]
        %v850 = vld [vmem:[#allocation5 + $0x1138] sm:$0xff]
        %v851 = vld [vmem:[#allocation5 + $0x1140] sm:$0xff]
        %v852 = vld [vmem:[#allocation5 + $0x1148] sm:$0xff]
        %v853 = vld [vmem:[#allocation5 + $0x1150] sm:$0xff]
        %v854 = vld [vmem:[#allocation5 + $0x1158] sm:$0xff]
        %v855 = vld [vmem:[#allocation5 + $0x1160] sm:$0xff]
        %v856 = vld [vmem:[#allocation5 + $0x1168] sm:$0xff]
        %v857 = vld [vmem:[#allocation5 + $0x1170] sm:$0xff]
        %v858 = vld [vmem:[#allocation5 + $0x1178] sm:$0xff]
        %v859 = vld [vmem:[#allocation5 + $0x1180] sm:$0xff]
        %v860 = vld [vmem:[#allocation5 + $0x1188] sm:$0xff]
        %v861 = vld [vmem:[#allocation5 + $0x1190] sm:$0xff]
        %v862 = vld [vmem:[#allocation5 + $0x1198] sm:$0xff]
        %v863 = vld [vmem:[#allocation5 + $0x11a0] sm:$0xff]
        %v864 = vld [vmem:[#allocation5 + $0x11a8] sm:$0xff]
        %v865 = vld [vmem:[#allocation5 + $0x11b0] sm:$0xff]
        %v866 = vld [vmem:[#allocation5 + $0x11b8] sm:$0xff]
        %v867 = vld [vmem:[#allocation5 + $0x11c0] sm:$0xff]
        %v868 = vld [vmem:[#allocation5 + $0x11c8] sm:$0xff]
        %v869 = vld [vmem:[#allocation5 + $0x11d0] sm:$0xff]
        %v870 = vld [vmem:[#allocation5 + $0x11d8] sm:$0xff]
        %v871 = vld [vmem:[#allocation5 + $0x11e0] sm:$0xff]
        %v872 = vld [vmem:[#allocation5 + $0x11e8] sm:$0xff]
        %v873 = vld [vmem:[#allocation5 + $0x11f0] sm:$0xff]
        %v874 = vld [vmem:[#allocation5 + $0x11f8] sm:$0xff]
        %v875 = vld [vmem:[#allocation5 + $0x1200] sm:$0xff]
        %v876 = vld [vmem:[#allocation5 + $0x1208] sm:$0xff]
        %v877 = vld [vmem:[#allocation5 + $0x1210] sm:$0xff]
        %v878 = vld [vmem:[#allocation5 + $0x1218] sm:$0xff]
        %v879 = vld [vmem:[#allocation5 + $0x1220] sm:$0xff]
        %v880 = vld [vmem:[#allocation5 + $0x1228] sm:$0xff]
        %v881 = vld [vmem:[#allocation5 + $0x1230] sm:$0xff]
        %v882 = vld [vmem:[#allocation5 + $0x1238] sm:$0xff]
        %v883 = vld [vmem:[#allocation5 + $0x1240] sm:$0xff]
        %v884 = vld [vmem:[#allocation5 + $0x1248] sm:$0xff]
        %v885 = vld [vmem:[#allocation5 + $0x1250] sm:$0xff]
        %v886 = vld [vmem:[#allocation5 + $0x1258] sm:$0xff]
        %v887 = vld [vmem:[#allocation5 + $0x1260] sm:$0xff]
        %v888 = vld [vmem:[#allocation5 + $0x1268] sm:$0xff]
        %v889 = vld [vmem:[#allocation5 + $0x1270] sm:$0xff]
        %v890 = vld [vmem:[#allocation5 + $0x1278] sm:$0xff]
        %v891 = vld [vmem:[#allocation5 + $0x1280] sm:$0xff]
        %v892 = vld [vmem:[#allocation5 + $0x1288] sm:$0xff]
        %v893 = vld [vmem:[#allocation5 + $0x1290] sm:$0xff]
        %v894 = vld [vmem:[#allocation5 + $0x1298] sm:$0xff]
        %v895 = vld [vmem:[#allocation5 + $0x12a0] sm:$0xff]
        %v896 = vld [vmem:[#allocation5 + $0x12a8] sm:$0xff]
        %v897 = vld [vmem:[#allocation5 + $0x12b0] sm:$0xff]
        %v898 = vld [vmem:[#allocation5 + $0x12b8] sm:$0xff]
        %v899 = vld [vmem:[#allocation5 + $0x12c0] sm:$0xff]
        %v900 = vld [vmem:[#allocation5 + $0x12c8] sm:$0xff]
        %v901 = vld [vmem:[#allocation5 + $0x12d0] sm:$0xff]
        %v902 = vld [vmem:[#allocation5 + $0x12d8] sm:$0xff]
        %v903 = vld [vmem:[#allocation5 + $0x12e0] sm:$0xff]
        %v904 = vld [vmem:[#allocation5 + $0x12e8] sm:$0xff]
        %v905 = vld [vmem:[#allocation5 + $0x12f0] sm:$0xff]
        %v906 = vld [vmem:[#allocation5 + $0x12f8] sm:$0xff]
        %v907 = vld [vmem:[#allocation5 + $0x1300] sm:$0xff]
        %v908 = vld [vmem:[#allocation5 + $0x1308] sm:$0xff]
        %v909 = vld [vmem:[#allocation5 + $0x1310] sm:$0xff]
        %v910 = vld [vmem:[#allocation5 + $0x1318] sm:$0xff]
        %v911 = vld [vmem:[#allocation5 + $0x1320] sm:$0xff]
        %v912 = vld [vmem:[#allocation5 + $0x1328] sm:$0xff]
        %v913 = vld [vmem:[#allocation5 + $0x1330] sm:$0xff]
        %v914 = vld [vmem:[#allocation5 + $0x1338] sm:$0xff]
        %v915 = vld [vmem:[#allocation5 + $0x1340] sm:$0xff]
        %v916 = vld [vmem:[#allocation5 + $0x1348] sm:$0xff]
        %v917 = vld [vmem:[#allocation5 + $0x1350] sm:$0xff]
        %v918 = vld [vmem:[#allocation5 + $0x1358] sm:$0xff]
        %v919 = vld [vmem:[#allocation5 + $0x1360] sm:$0xff]
        %v920 = vld [vmem:[#allocation5 + $0x1368] sm:$0xff]
        %v921 = vld [vmem:[#allocation5 + $0x1370] sm:$0xff]
        %v922 = vld [vmem:[#allocation5 + $0x1378] sm:$0xff]
        %v923 = vld [vmem:[#allocation5 + $0x1380] sm:$0xff]
        %v924 = vld [vmem:[#allocation5 + $0x1388] sm:$0xff]
        %v925 = vld [vmem:[#allocation5 + $0x1390] sm:$0xff]
        %v926 = vld [vmem:[#allocation5 + $0x1398] sm:$0xff]
        %v927 = vld [vmem:[#allocation5 + $0x13a0] sm:$0xff]
        %v928 = vld [vmem:[#allocation5 + $0x13a8] sm:$0xff]
        %v929 = vld [vmem:[#allocation5 + $0x13b0] sm:$0xff]
        %v930 = vld [vmem:[#allocation5 + $0x13b8] sm:$0xff]
        %v931 = vld [vmem:[#allocation5 + $0x13c0] sm:$0xff]
        %v932 = vld [vmem:[#allocation5 + $0x13c8] sm:$0xff]
        %v933 = vld [vmem:[#allocation5 + $0x13d0] sm:$0xff]
        %v934 = vld [vmem:[#allocation5 + $0x13d8] sm:$0xff]
        %v935 = vld [vmem:[#allocation5 + $0x13e0] sm:$0xff]
        %v936 = vld [vmem:[#allocation5 + $0x13e8] sm:$0xff]
        %v937 = vld [vmem:[#allocation5 + $0x13f0] sm:$0xff]
        %v938 = vld [vmem:[#allocation5 + $0x13f8] sm:$0xff]
        %v939 = vld [vmem:[#allocation5 + $0x1400] sm:$0xff]
        %v940 = vld [vmem:[#allocation5 + $0x1408] sm:$0xff]
        %v941 = vld [vmem:[#allocation5 + $0x1410] sm:$0xff]
        %v942 = vld [vmem:[#allocation5 + $0x1418] sm:$0xff]
        %v943 = vld [vmem:[#allocation5 + $0x1420] sm:$0xff]
        %v944 = vld [vmem:[#allocation5 + $0x1428] sm:$0xff]
        %v945 = vld [vmem:[#allocation5 + $0x1430] sm:$0xff]
        %v946 = vld [vmem:[#allocation5 + $0x1438] sm:$0xff]
        %v947 = vld [vmem:[#allocation5 + $0x1440] sm:$0xff]
        %v948 = vld [vmem:[#allocation5 + $0x1448] sm:$0xff]
        %v949 = vld [vmem:[#allocation5 + $0x1450] sm:$0xff]
        %v950 = vld [vmem:[#allocation5 + $0x1458] sm:$0xff]
        %v951 = vld [vmem:[#allocation5 + $0x1460] sm:$0xff]
        %v952 = vld [vmem:[#allocation5 + $0x1468] sm:$0xff]
        %v953 = vld [vmem:[#allocation5 + $0x1470] sm:$0xff]
        %v954 = vld [vmem:[#allocation5 + $0x1478] sm:$0xff]
        %v955 = vld [vmem:[#allocation5 + $0x1480] sm:$0xff]
        %v956 = vld [vmem:[#allocation5 + $0x1488] sm:$0xff]
        %v957 = vld [vmem:[#allocation5 + $0x1490] sm:$0xff]
        %v958 = vld [vmem:[#allocation5 + $0x1498] sm:$0xff]
        %v959 = vld [vmem:[#allocation5 + $0x14a0] sm:$0xff]
        %v960 = vld [vmem:[#allocation5 + $0x14a8] sm:$0xff]
        %v961 = vld [vmem:[#allocation5 + $0x14b0] sm:$0xff]
        %v962 = vld [vmem:[#allocation5 + $0x14b8] sm:$0xff]
        %v963 = vld [vmem:[#allocation5 + $0x14c0] sm:$0xff]
        %v964 = vld [vmem:[#allocation5 + $0x14c8] sm:$0xff]
        %v965 = vld [vmem:[#allocation5 + $0x14d0] sm:$0xff]
        %v966 = vld [vmem:[#allocation5 + $0x14d8] sm:$0xff]
        %v967 = vld [vmem:[#allocation5 + $0x14e0] sm:$0xff]
        %v968 = vld [vmem:[#allocation5 + $0x14e8] sm:$0xff]
        %v969 = vld [vmem:[#allocation5 + $0x14f0] sm:$0xff]
        %v970 = vld [vmem:[#allocation5 + $0x14f8] sm:$0xff]
        %v971 = vld [vmem:[#allocation5 + $0x1500] sm:$0xff]
        %v972 = vld [vmem:[#allocation5 + $0x1508] sm:$0xff]
        %v973 = vld [vmem:[#allocation5 + $0x1510] sm:$0xff]
        %v974 = vld [vmem:[#allocation5 + $0x1518] sm:$0xff]
        %v975 = vld [vmem:[#allocation5 + $0x1520] sm:$0xff]
        %v976 = vld [vmem:[#allocation5 + $0x1528] sm:$0xff]
        %v977 = vld [vmem:[#allocation5 + $0x1530] sm:$0xff]
        %v978 = vld [vmem:[#allocation5 + $0x1538] sm:$0xff]
        %v979 = vld [vmem:[#allocation5 + $0x1540] sm:$0xff]
        %v980 = vld [vmem:[#allocation5 + $0x1548] sm:$0xff]
        %v981 = vld [vmem:[#allocation5 + $0x1550] sm:$0xff]
        %v982 = vld [vmem:[#allocation5 + $0x1558] sm:$0xff]
        %v983 = vld [vmem:[#allocation5 + $0x1560] sm:$0xff]
        %v984 = vld [vmem:[#allocation5 + $0x1568] sm:$0xff]
        %v985 = vld [vmem:[#allocation5 + $0x1570] sm:$0xff]
        %v986 = vld [vmem:[#allocation5 + $0x1578] sm:$0xff]
        %v987 = vld [vmem:[#allocation5 + $0x1580] sm:$0xff]
        %v988 = vld [vmem:[#allocation5 + $0x1588] sm:$0xff]
        %v989 = vld [vmem:[#allocation5 + $0x1590] sm:$0xff]
        %v990 = vld [vmem:[#allocation5 + $0x1598] sm:$0xff]
        %v991 = vld [vmem:[#allocation5 + $0x15a0] sm:$0xff]
        %v992 = vld [vmem:[#allocation5 + $0x15a8] sm:$0xff]
        %v993 = vld [vmem:[#allocation5 + $0x15b0] sm:$0xff]
        %v994 = vld [vmem:[#allocation5 + $0x15b8] sm:$0xff]
        %v995 = vld [vmem:[#allocation5 + $0x15c0] sm:$0xff]
        %v996 = vld [vmem:[#allocation5 + $0x15c8] sm:$0xff]
        %v997 = vld [vmem:[#allocation5 + $0x15d0] sm:$0xff]
        %v998 = vld [vmem:[#allocation5 + $0x15d8] sm:$0xff]
        %v999 = vld [vmem:[#allocation5 + $0x15e0] sm:$0xff]
        %v1000 = vld [vmem:[#allocation5 + $0x15e8] sm:$0xff]
        %v1001 = vld [vmem:[#allocation5 + $0x15f0] sm:$0xff]
        %v1002 = vld [vmem:[#allocation5 + $0x15f8] sm:$0xff]
        %v1003 = vld [vmem:[#allocation5 + $0x1600] sm:$0xff]
        %v1004 = vld [vmem:[#allocation5 + $0x1608] sm:$0xff]
        %v1005 = vld [vmem:[#allocation5 + $0x1610] sm:$0xff]
        %v1006 = vld [vmem:[#allocation5 + $0x1618] sm:$0xff]
        %v1007 = vld [vmem:[#allocation5 + $0x1620] sm:$0xff]
        %v1008 = vld [vmem:[#allocation5 + $0x1628] sm:$0xff]
        %v1009 = vld [vmem:[#allocation5 + $0x1630] sm:$0xff]
        %v1010 = vld [vmem:[#allocation5 + $0x1638] sm:$0xff]
        %v1011 = vld [vmem:[#allocation5 + $0x1640] sm:$0xff]
        %v1012 = vld [vmem:[#allocation5 + $0x1648] sm:$0xff]
        %v1013 = vld [vmem:[#allocation5 + $0x1650] sm:$0xff]
        %v1014 = vld [vmem:[#allocation5 + $0x1658] sm:$0xff]
        %v1015 = vld [vmem:[#allocation5 + $0x1660] sm:$0xff]
        %v1016 = vld [vmem:[#allocation5 + $0x1668] sm:$0xff]
        %v1017 = vld [vmem:[#allocation5 + $0x1670] sm:$0xff]
        %v1018 = vld [vmem:[#allocation5 + $0x1678] sm:$0xff]
        %v1019 = vld [vmem:[#allocation5 + $0x1680] sm:$0xff]
        %v1020 = vld [vmem:[#allocation5 + $0x1688] sm:$0xff]
        %v1021 = vld [vmem:[#allocation5 + $0x1690] sm:$0xff]
        %v1022 = vld [vmem:[#allocation5 + $0x1698] sm:$0xff]
        %v1023 = vld [vmem:[#allocation5 + $0x16a0] sm:$0xff]
        %v1024 = vld [vmem:[#allocation5 + $0x16a8] sm:$0xff]
        %v1025 = vld [vmem:[#allocation5 + $0x16b0] sm:$0xff]
        %v1026 = vld [vmem:[#allocation5 + $0x16b8] sm:$0xff]
        %v1027 = vld [vmem:[#allocation5 + $0x16c0] sm:$0xff]
        %v1028 = vld [vmem:[#allocation5 + $0x16c8] sm:$0xff]
        %v1029 = vld [vmem:[#allocation5 + $0x16d0] sm:$0xff]
        %v1030 = vld [vmem:[#allocation5 + $0x16d8] sm:$0xff]
        %v1031 = vld [vmem:[#allocation5 + $0x16e0] sm:$0xff]
        %v1032 = vld [vmem:[#allocation5 + $0x16e8] sm:$0xff]
        %v1033 = vld [vmem:[#allocation5 + $0x16f0] sm:$0xff]
        %v1034 = vld [vmem:[#allocation5 + $0x16f8] sm:$0xff]
        %v1035 = vld [vmem:[#allocation5 + $0x1700] sm:$0xff]
        %v1036 = vld [vmem:[#allocation5 + $0x1708] sm:$0xff]
        %v1037 = vld [vmem:[#allocation5 + $0x1710] sm:$0xff]
        %v1038 = vld [vmem:[#allocation5 + $0x1718] sm:$0xff]
        %v1039 = vld [vmem:[#allocation5 + $0x1720] sm:$0xff]
        %v1040 = vld [vmem:[#allocation5 + $0x1728] sm:$0xff]
        %v1041 = vld [vmem:[#allocation5 + $0x1730] sm:$0xff]
        %v1042 = vld [vmem:[#allocation5 + $0x1738] sm:$0xff]
        %v1043 = vld [vmem:[#allocation5 + $0x1740] sm:$0xff]
        %v1044 = vld [vmem:[#allocation5 + $0x1748] sm:$0xff]
        %v1045 = vld [vmem:[#allocation5 + $0x1750] sm:$0xff]
        %v1046 = vld [vmem:[#allocation5 + $0x1758] sm:$0xff]
        %v1047 = vld [vmem:[#allocation5 + $0x1760] sm:$0xff]
        %v1048 = vld [vmem:[#allocation5 + $0x1768] sm:$0xff]
        %v1049 = vld [vmem:[#allocation5 + $0x1770] sm:$0xff]
        %v1050 = vld [vmem:[#allocation5 + $0x1778] sm:$0xff]
        %v1051 = vld [vmem:[#allocation5 + $0x1780] sm:$0xff]
        %v1052 = vld [vmem:[#allocation5 + $0x1788] sm:$0xff]
        %v1053 = vld [vmem:[#allocation5 + $0x1790] sm:$0xff]
        %v1054 = vld [vmem:[#allocation5 + $0x1798] sm:$0xff]
        %v1055 = vld [vmem:[#allocation5 + $0x17a0] sm:$0xff]
        %v1056 = vld [vmem:[#allocation5 + $0x17a8] sm:$0xff]
        %v1057 = vld [vmem:[#allocation5 + $0x17b0] sm:$0xff]
        %v1058 = vld [vmem:[#allocation5 + $0x17b8] sm:$0xff]
        %v1059 = vld [vmem:[#allocation5 + $0x17c0] sm:$0xff]
        %v1060 = vld [vmem:[#allocation5 + $0x17c8] sm:$0xff]
        %v1061 = vld [vmem:[#allocation5 + $0x17d0] sm:$0xff]
        %v1062 = vld [vmem:[#allocation5 + $0x17d8] sm:$0xff]
        %v1063 = vld [vmem:[#allocation5 + $0x17e0] sm:$0xff]
        %v1064 = vld [vmem:[#allocation5 + $0x17e8] sm:$0xff]
        %v1065 = vld [vmem:[#allocation5 + $0x17f0] sm:$0xff]
        %v1066 = vld [vmem:[#allocation5 + $0x17f8] sm:$0xff]
        %v1067 = vld [vmem:[#allocation7] sm:$0xff]
        %v1068 = vld [vmem:[#allocation7 + $0x8] sm:$0xf]
        %v1071 = vlaneseq
        %v1072 = vshrl.u32 %v1071, 7
        %v1073 = vsub.s32 0, %v1072
        %v1074 = vrot.slane %v1067, %v1073
        %v1075 = vlaneseq
        %v1076 = vshrl.u32 %v1075, 7
        %v1077 = vsub.s32 1, %v1076
        %v1078 = vrot.slane %v1067, %v1077
        %v1079 = vlaneseq
        %v1080 = vshrl.u32 %v1079, 7
        %v1081 = vsub.s32 2, %v1080
        %v1082 = vrot.slane %v1067, %v1081
        %v1083 = vlaneseq
        %v1084 = vshrl.u32 %v1083, 7
        %v1085 = vsub.s32 3, %v1084
        %v1086 = vrot.slane %v1067, %v1085
        %v1087 = vlaneseq
        %v1088 = vshrl.u32 %v1087, 7
        %v1089 = vsub.s32 4, %v1088
        %v1090 = vrot.slane %v1067, %v1089
        %v1091 = vlaneseq
        %v1092 = vshrl.u32 %v1091, 7
        %v1093 = vsub.s32 5, %v1092
        %v1094 = vrot.slane %v1067, %v1093
        %v1095 = vlaneseq
        %v1096 = vshrl.u32 %v1095, 7
        %v1097 = vsub.s32 6, %v1096
        %v1098 = vrot.slane %v1067, %v1097
        %v1099 = vlaneseq
        %v1100 = vshrl.u32 %v1099, 7
        %v1101 = vsub.s32 7, %v1100
        %v1102 = vrot.slane %v1067, %v1101
        %v1103 = vlaneseq
        %v1104 = vshrl.u32 %v1103, 7
        %v1105 = vsub.s32 0, %v1104
        %v1106 = vrot.slane %v1068, %v1105
        %v1107 = vlaneseq
        %v1108 = vshrl.u32 %v1107, 7
        %v1109 = vsub.s32 1, %v1108
        %v1110 = vrot.slane %v1068, %v1109
        %v1111 = vlaneseq
        %v1112 = vshrl.u32 %v1111, 7
        %v1113 = vsub.s32 2, %v1112
        %v1114 = vrot.slane %v1068, %v1113
        %v1115 = vlaneseq
        %v1116 = vshrl.u32 %v1115, 7
        %v1117 = vsub.s32 3, %v1116
        %v1118 = vrot.slane %v1068, %v1117
        %1131 = vmatprep.subr.mxu0 %v300
        %1132 = vmatpush1.msra.mxu0 %v299
        %1133 = vmatprep.subr.mxu0 %v312
        %1134 = vmatpush1.msra.mxu0 %v311
        %1135 = vmatprep.subr.mxu0 %v324
        %1136 = vmatpush1.msra.mxu0 %v323
        %1137 = vmatprep.subr.mxu0 %v336
        %1138 = vmatpush1.msra.mxu0 %v335
        %1139 = vmatprep.subr.mxu0 %v348
        %1140 = vmatpush1.msra.mxu0 %v347
        %1141 = vmatprep.subr.mxu0 %v360
        %1142 = vmatpush1.msra.mxu0 %v359
        %1143 = vmatprep.subr.mxu0 %v372
        %1144 = vmatpush1.msra.mxu0 %v371
        %1145 = vmatprep.subr.mxu0 %v384
        %1146 = vmatpush1.msra.mxu0 %v383
        %1147 = vmatprep.subr.mxu0 %v396
        %1148 = vmatpush1.msra.mxu0 %v395
        %1149 = vmatprep.subr.mxu0 %v408
        %1150 = vmatpush1.msra.mxu0 %v407
        %1151 = vmatprep.subr.mxu0 %v420
        %1152 = vmatpush1.msra.mxu0 %v419
        %1153 = vmatprep.subr.mxu0 %v432
        %1154 = vmatpush1.msra.mxu0 %v431
        %1155 = vmatprep.subr.mxu0 %v444
        %1156 = vmatpush1.msra.mxu0 %v443
        %1157 = vmatprep.subr.mxu0 %v456
        %1158 = vmatpush1.msra.mxu0 %v455
        %1159 = vmatprep.subr.mxu0 %v468
        %1160 = vmatpush1.msra.mxu0 %v467
        %1161 = vmatprep.subr.mxu0 %v480
        %1162 = vmatpush1.msra.mxu0 %v479
        %1163 = vmatprep.subr.mxu0 %v492
        %1164 = vmatpush1.msra.mxu0 %v491
        %1165 = vmatprep.subr.mxu0 %v504
        %1166 = vmatpush1.msra.mxu0 %v503
        %1167 = vmatprep.subr.mxu0 %v516
        %1168 = vmatpush1.msra.mxu0 %v515
        %1169 = vmatprep.subr.mxu0 %v528
        %1170 = vmatpush1.msra.mxu0 %v527
        %1171 = vmatprep.subr.mxu0 %v540
        %1172 = vmatpush1.msra.mxu0 %v539
        %1173 = vmatprep.subr.mxu0 %v552
        %1174 = vmatpush1.msra.mxu0 %v551
        %1175 = vmatprep.subr.mxu0 %v564
        %1176 = vmatpush1.msra.mxu0 %v563
        %1177 = vmatprep.subr.mxu0 %v576
        %1178 = vmatpush1.msra.mxu0 %v575
        %1179 = vmatprep.subr.mxu0 %v588
        %1180 = vmatpush1.msra.mxu0 %v587
        %1181 = vmatprep.subr.mxu0 %v600
        %1182 = vmatpush1.msra.mxu0 %v599
        %1183 = vmatprep.subr.mxu0 %v612
        %1184 = vmatpush1.msra.mxu0 %v611
        %1185 = vmatprep.subr.mxu0 %v624
        %1186 = vmatpush1.msra.mxu0 %v623
        %1187 = vmatprep.subr.mxu0 %v636
        %1188 = vmatpush1.msra.mxu0 %v635
        %1189 = vmatprep.subr.mxu0 %v648
        %1190 = vmatpush1.msra.mxu0 %v647
        %1191 = vmatprep.subr.mxu0 %v660
        %1192 = vmatpush1.msra.mxu0 %v659
        %1193 = vmatprep.subr.mxu0 %v672
        %1194 = vmatpush1.msra.mxu0 %v671
        %1195 = vmatprep.mubr.f32.mxu0 %v296
        %1196 = vmatmul.mubr.f32.gmra.mrb[0].mxu0 %v295
        %v1197 = vpop.f32.mrb[0].mxu0
        %v1198 = vadd.f32 %v1074, %v1197
        %v1199 = vpop.f32.mrb[0].mxu0
        %v1200 = vadd.f32 %v1078, %v1199
        %1201 = vdwg.mxu0
        %1202 = vmatprep.subr.mxu0 %v684
        %1203 = vmatpush1.msra.mxu0 %v683
        %1204 = vmatprep.subr.mxu0 %v696
        %1205 = vmatpush1.msra.mxu0 %v695
        %1206 = vmatprep.subr.mxu0 %v708
        %1207 = vmatpush1.msra.mxu0 %v707
        %1208 = vmatprep.subr.mxu0 %v720
        %1209 = vmatpush1.msra.mxu0 %v719
        %1210 = vmatprep.subr.mxu0 %v732
        %1211 = vmatpush1.msra.mxu0 %v731
        %1212 = vmatprep.subr.mxu0 %v744
        %1213 = vmatpush1.msra.mxu0 %v743
        %1214 = vmatprep.subr.mxu0 %v756
        %1215 = vmatpush1.msra.mxu0 %v755
        %1216 = vmatprep.subr.mxu0 %v768
        %1217 = vmatpush1.msra.mxu0 %v767
        %1218 = vmatprep.subr.mxu0 %v780
        %1219 = vmatpush1.msra.mxu0 %v779
        %1220 = vmatprep.subr.mxu0 %v792
        %1221 = vmatpush1.msra.mxu0 %v791
        %1222 = vmatprep.subr.mxu0 %v804
        %1223 = vmatpush1.msra.mxu0 %v803
        %1224 = vmatprep.subr.mxu0 %v816
        %1225 = vmatpush1.msra.mxu0 %v815
        %1226 = vmatprep.subr.mxu0 %v828
        %1227 = vmatpush1.msra.mxu0 %v827
        %1228 = vmatprep.subr.mxu0 %v840
        %1229 = vmatpush1.msra.mxu0 %v839
        %1230 = vmatprep.subr.mxu0 %v852
        %1231 = vmatpush1.msra.mxu0 %v851
        %1232 = vmatprep.subr.mxu0 %v864
        %1233 = vmatpush1.msra.mxu0 %v863
        %1234 = vmatprep.subr.mxu0 %v876
        %1235 = vmatpush1.msra.mxu0 %v875
        %1236 = vmatprep.subr.mxu0 %v888
        %1237 = vmatpush1.msra.mxu0 %v887
        %1238 = vmatprep.subr.mxu0 %v900
        %1239 = vmatpush1.msra.mxu0 %v899
        %1240 = vmatprep.subr.mxu0 %v912
        %1241 = vmatpush1.msra.mxu0 %v911
        %1242 = vmatprep.subr.mxu0 %v924
        %1243 = vmatpush1.msra.mxu0 %v923
        %1244 = vmatprep.subr.mxu0 %v936
        %1245 = vmatpush1.msra.mxu0 %v935
        %1246 = vmatprep.subr.mxu0 %v948
        %1247 = vmatpush1.msra.mxu0 %v947
        %1248 = vmatprep.subr.mxu0 %v960
        %1249 = vmatpush1.msra.mxu0 %v959
        %1250 = vmatprep.subr.mxu0 %v972
        %1251 = vmatpush1.msra.mxu0 %v971
        %1252 = vmatprep.subr.mxu0 %v984
        %1253 = vmatpush1.msra.mxu0 %v983
        %1254 = vmatprep.subr.mxu0 %v996
        %1255 = vmatpush1.msra.mxu0 %v995
        %1256 = vmatprep.subr.mxu0 %v1008
        %1257 = vmatpush1.msra.mxu0 %v1007
        %1258 = vmatprep.subr.mxu0 %v1020
        %1259 = vmatpush1.msra.mxu0 %v1019
        %1260 = vmatprep.subr.mxu0 %v1032
        %1261 = vmatpush1.msra.mxu0 %v1031
        %1262 = vmatprep.subr.mxu0 %v1044
        %1263 = vmatpush1.msra.mxu0 %v1043
        %1264 = vmatprep.subr.mxu0 %v1056
        %1265 = vmatpush1.msra.mxu0 %v1055
        %1266 = vmatprep.mubr.f32.mxu0 %v298
        %1267 = vmatmul.mubr.f32.gmra.mrb[0].mxu0 %v297
        %v1268 = vpop.f32.mrb[0].mxu0
        %v1269 = vadd.f32 %v1198, %v1268
        %v1270 = vpop.f32.mrb[0].mxu0
        %v1271 = vadd.f32 %v1200, %v1270
        %1272 = vdwg.mxu0
        %1273 = vmatprep.subr.mxu0 %v302
        %1274 = vmatpush1.msra.mxu0 %v301
        %1275 = vmatprep.subr.mxu0 %v314
        %1276 = vmatpush1.msra.mxu0 %v313
        %1277 = vmatprep.subr.mxu0 %v326
        %1278 = vmatpush1.msra.mxu0 %v325
        %1279 = vmatprep.subr.mxu0 %v338
        %1280 = vmatpush1.msra.mxu0 %v337
        %1281 = vmatprep.subr.mxu0 %v350
        %1282 = vmatpush1.msra.mxu0 %v349
        %1283 = vmatprep.subr.mxu0 %v362
        %1284 = vmatpush1.msra.mxu0 %v361
        %1285 = vmatprep.subr.mxu0 %v374
        %1286 = vmatpush1.msra.mxu0 %v373
        %1287 = vmatprep.subr.mxu0 %v386
        %1288 = vmatpush1.msra.mxu0 %v385
        %1289 = vmatprep.subr.mxu0 %v398
        %1290 = vmatpush1.msra.mxu0 %v397
        %1291 = vmatprep.subr.mxu0 %v410
        %1292 = vmatpush1.msra.mxu0 %v409
        %1293 = vmatprep.subr.mxu0 %v422
        %1294 = vmatpush1.msra.mxu0 %v421
        %1295 = vmatprep.subr.mxu0 %v434
        %1296 = vmatpush1.msra.mxu0 %v433
        %1297 = vmatprep.subr.mxu0 %v446
        %1298 = vmatpush1.msra.mxu0 %v445
        %1299 = vmatprep.subr.mxu0 %v458
        %1300 = vmatpush1.msra.mxu0 %v457
        %1301 = vmatprep.subr.mxu0 %v470
        %1302 = vmatpush1.msra.mxu0 %v469
        %1303 = vmatprep.subr.mxu0 %v482
        %1304 = vmatpush1.msra.mxu0 %v481
        %1305 = vmatprep.subr.mxu0 %v494
        %1306 = vmatpush1.msra.mxu0 %v493
        %1307 = vmatprep.subr.mxu0 %v506
        %1308 = vmatpush1.msra.mxu0 %v505
        %1309 = vmatprep.subr.mxu0 %v518
        %1310 = vmatpush1.msra.mxu0 %v517
        %1311 = vmatprep.subr.mxu0 %v530
        %1312 = vmatpush1.msra.mxu0 %v529
        %1313 = vmatprep.subr.mxu0 %v542
        %1314 = vmatpush1.msra.mxu0 %v541
        %1315 = vmatprep.subr.mxu0 %v554
        %1316 = vmatpush1.msra.mxu0 %v553
        %1317 = vmatprep.subr.mxu0 %v566
        %1318 = vmatpush1.msra.mxu0 %v565
        %1319 = vmatprep.subr.mxu0 %v578
        %1320 = vmatpush1.msra.mxu0 %v577
        %1321 = vmatprep.subr.mxu0 %v590
        %1322 = vmatpush1.msra.mxu0 %v589
        %1323 = vmatprep.subr.mxu0 %v602
        %1324 = vmatpush1.msra.mxu0 %v601
        %1325 = vmatprep.subr.mxu0 %v614
        %1326 = vmatpush1.msra.mxu0 %v613
        %1327 = vmatprep.subr.mxu0 %v626
        %1328 = vmatpush1.msra.mxu0 %v625
        %1329 = vmatprep.subr.mxu0 %v638
        %1330 = vmatpush1.msra.mxu0 %v637
        %1331 = vmatprep.subr.mxu0 %v650
        %1332 = vmatpush1.msra.mxu0 %v649
        %1333 = vmatprep.subr.mxu0 %v662
        %1334 = vmatpush1.msra.mxu0 %v661
        %1335 = vmatprep.subr.mxu0 %v674
        %1336 = vmatpush1.msra.mxu0 %v673
        %1337 = vmatprep.mubr.f32.mxu0 %v296
        %1338 = vmatmul.mubr.f32.gmra.mrb[0].mxu0 %v295
        %v1339 = vpop.f32.mrb[0].mxu0
        %v1340 = vadd.f32 %v1082, %v1339
        %v1341 = vpop.f32.mrb[0].mxu0
        %v1342 = vadd.f32 %v1086, %v1341
        %1343 = vdwg.mxu0
        %1344 = vmatprep.subr.mxu0 %v686
        %1345 = vmatpush1.msra.mxu0 %v685
        %1346 = vmatprep.subr.mxu0 %v698
        %1347 = vmatpush1.msra.mxu0 %v697
        %1348 = vmatprep.subr.mxu0 %v710
        %1349 = vmatpush1.msra.mxu0 %v709
        %1350 = vmatprep.subr.mxu0 %v722
        %1351 = vmatpush1.msra.mxu0 %v721
        %1352 = vmatprep.subr.mxu0 %v734
        %1353 = vmatpush1.msra.mxu0 %v733
        %1354 = vmatprep.subr.mxu0 %v746
        %1355 = vmatpush1.msra.mxu0 %v745
        %1356 = vmatprep.subr.mxu0 %v758
        %1357 = vmatpush1.msra.mxu0 %v757
        %1358 = vmatprep.subr.mxu0 %v770
        %1359 = vmatpush1.msra.mxu0 %v769
        %1360 = vmatprep.subr.mxu0 %v782
        %1361 = vmatpush1.msra.mxu0 %v781
        %1362 = vmatprep.subr.mxu0 %v794
        %1363 = vmatpush1.msra.mxu0 %v793
        %1364 = vmatprep.subr.mxu0 %v806
        %1365 = vmatpush1.msra.mxu0 %v805
        %1366 = vmatprep.subr.mxu0 %v818
        %1367 = vmatpush1.msra.mxu0 %v817
        %1368 = vmatprep.subr.mxu0 %v830
        %1369 = vmatpush1.msra.mxu0 %v829
        %1370 = vmatprep.subr.mxu0 %v842
        %1371 = vmatpush1.msra.mxu0 %v841
        %1372 = vmatprep.subr.mxu0 %v854
        %1373 = vmatpush1.msra.mxu0 %v853
        %1374 = vmatprep.subr.mxu0 %v866
        %1375 = vmatpush1.msra.mxu0 %v865
        %1376 = vmatprep.subr.mxu0 %v878
        %1377 = vmatpush1.msra.mxu0 %v877
        %1378 = vmatprep.subr.mxu0 %v890
        %1379 = vmatpush1.msra.mxu0 %v889
        %1380 = vmatprep.subr.mxu0 %v902
        %1381 = vmatpush1.msra.mxu0 %v901
        %1382 = vmatprep.subr.mxu0 %v914
        %1383 = vmatpush1.msra.mxu0 %v913
        %1384 = vmatprep.subr.mxu0 %v926
        %1385 = vmatpush1.msra.mxu0 %v925
        %1386 = vmatprep.subr.mxu0 %v938
        %1387 = vmatpush1.msra.mxu0 %v937
        %1388 = vmatprep.subr.mxu0 %v950
        %1389 = vmatpush1.msra.mxu0 %v949
        %1390 = vmatprep.subr.mxu0 %v962
        %1391 = vmatpush1.msra.mxu0 %v961
        %1392 = vmatprep.subr.mxu0 %v974
        %1393 = vmatpush1.msra.mxu0 %v973
        %1394 = vmatprep.subr.mxu0 %v986
        %1395 = vmatpush1.msra.mxu0 %v985
        %1396 = vmatprep.subr.mxu0 %v998
        %1397 = vmatpush1.msra.mxu0 %v997
        %1398 = vmatprep.subr.mxu0 %v1010
        %1399 = vmatpush1.msra.mxu0 %v1009
        %1400 = vmatprep.subr.mxu0 %v1022
        %1401 = vmatpush1.msra.mxu0 %v1021
        %1402 = vmatprep.subr.mxu0 %v1034
        %1403 = vmatpush1.msra.mxu0 %v1033
        %1404 = vmatprep.subr.mxu0 %v1046
        %1405 = vmatpush1.msra.mxu0 %v1045
        %1406 = vmatprep.subr.mxu0 %v1058
        %1407 = vmatpush1.msra.mxu0 %v1057
        %1408 = vmatprep.mubr.f32.mxu0 %v298
        %1409 = vmatmul.mubr.f32.gmra.mrb[0].mxu0 %v297
        %v1410 = vpop.f32.mrb[0].mxu0
        %v1411 = vadd.f32 %v1340, %v1410
        %v1412 = vpop.f32.mrb[0].mxu0
        %v1413 = vadd.f32 %v1342, %v1412
        %1414 = vdwg.mxu0
        %1415 = vmatprep.subr.mxu0 %v304
        %1416 = vmatpush1.msra.mxu0 %v303
        %1417 = vmatprep.subr.mxu0 %v316
        %1418 = vmatpush1.msra.mxu0 %v315
        %1419 = vmatprep.subr.mxu0 %v328
        %1420 = vmatpush1.msra.mxu0 %v327
        %1421 = vmatprep.subr.mxu0 %v340
        %1422 = vmatpush1.msra.mxu0 %v339
        %1423 = vmatprep.subr.mxu0 %v352
        %1424 = vmatpush1.msra.mxu0 %v351
        %1425 = vmatprep.subr.mxu0 %v364
        %1426 = vmatpush1.msra.mxu0 %v363
        %1427 = vmatprep.subr.mxu0 %v376
        %1428 = vmatpush1.msra.mxu0 %v375
        %1429 = vmatprep.subr.mxu0 %v388
        %1430 = vmatpush1.msra.mxu0 %v387
        %1431 = vmatprep.subr.mxu0 %v400
        %1432 = vmatpush1.msra.mxu0 %v399
        %1433 = vmatprep.subr.mxu0 %v412
        %1434 = vmatpush1.msra.mxu0 %v411
        %1435 = vmatprep.subr.mxu0 %v424
        %1436 = vmatpush1.msra.mxu0 %v423
        %1437 = vmatprep.subr.mxu0 %v436
        %1438 = vmatpush1.msra.mxu0 %v435
        %1439 = vmatprep.subr.mxu0 %v448
        %1440 = vmatpush1.msra.mxu0 %v447
        %1441 = vmatprep.subr.mxu0 %v460
        %1442 = vmatpush1.msra.mxu0 %v459
        %1443 = vmatprep.subr.mxu0 %v472
        %1444 = vmatpush1.msra.mxu0 %v471
        %1445 = vmatprep.subr.mxu0 %v484
        %1446 = vmatpush1.msra.mxu0 %v483
        %1447 = vmatprep.subr.mxu0 %v496
        %1448 = vmatpush1.msra.mxu0 %v495
        %1449 = vmatprep.subr.mxu0 %v508
        %1450 = vmatpush1.msra.mxu0 %v507
        %1451 = vmatprep.subr.mxu0 %v520
        %1452 = vmatpush1.msra.mxu0 %v519
        %1453 = vmatprep.subr.mxu0 %v532
        %1454 = vmatpush1.msra.mxu0 %v531
        %1455 = vmatprep.subr.mxu0 %v544
        %1456 = vmatpush1.msra.mxu0 %v543
        %1457 = vmatprep.subr.mxu0 %v556
        %1458 = vmatpush1.msra.mxu0 %v555
        %1459 = vmatprep.subr.mxu0 %v568
        %1460 = vmatpush1.msra.mxu0 %v567
        %1461 = vmatprep.subr.mxu0 %v580
        %1462 = vmatpush1.msra.mxu0 %v579
        %1463 = vmatprep.subr.mxu0 %v592
        %1464 = vmatpush1.msra.mxu0 %v591
        %1465 = vmatprep.subr.mxu0 %v604
        %1466 = vmatpush1.msra.mxu0 %v603
        %1467 = vmatprep.subr.mxu0 %v616
        %1468 = vmatpush1.msra.mxu0 %v615
        %1469 = vmatprep.subr.mxu0 %v628
        %1470 = vmatpush1.msra.mxu0 %v627
        %1471 = vmatprep.subr.mxu0 %v640
        %1472 = vmatpush1.msra.mxu0 %v639
        %1473 = vmatprep.subr.mxu0 %v652
        %1474 = vmatpush1.msra.mxu0 %v651
        %1475 = vmatprep.subr.mxu0 %v664
        %1476 = vmatpush1.msra.mxu0 %v663
        %1477 = vmatprep.subr.mxu0 %v676
        %1478 = vmatpush1.msra.mxu0 %v675
        %1479 = vmatprep.mubr.f32.mxu0 %v296
        %1480 = vmatmul.mubr.f32.gmra.mrb[0].mxu0 %v295
        %v1481 = vpop.f32.mrb[0].mxu0
        %v1482 = vadd.f32 %v1090, %v1481
        %v1483 = vpop.f32.mrb[0].mxu0
        %v1484 = vadd.f32 %v1094, %v1483
        %1485 = vdwg.mxu0
        %1486 = vmatprep.subr.mxu0 %v688
        %1487 = vmatpush1.msra.mxu0 %v687
        %1488 = vmatprep.subr.mxu0 %v700
        %1489 = vmatpush1.msra.mxu0 %v699
        %1490 = vmatprep.subr.mxu0 %v712
        %1491 = vmatpush1.msra.mxu0 %v711
        %1492 = vmatprep.subr.mxu0 %v724
        %1493 = vmatpush1.msra.mxu0 %v723
        %1494 = vmatprep.subr.mxu0 %v736
        %1495 = vmatpush1.msra.mxu0 %v735
        %1496 = vmatprep.subr.mxu0 %v748
        %1497 = vmatpush1.msra.mxu0 %v747
        %1498 = vmatprep.subr.mxu0 %v760
        %1499 = vmatpush1.msra.mxu0 %v759
        %1500 = vmatprep.subr.mxu0 %v772
        %1501 = vmatpush1.msra.mxu0 %v771
        %1502 = vmatprep.subr.mxu0 %v784
        %1503 = vmatpush1.msra.mxu0 %v783
        %1504 = vmatprep.subr.mxu0 %v796
        %1505 = vmatpush1.msra.mxu0 %v795
        %1506 = vmatprep.subr.mxu0 %v808
        %1507 = vmatpush1.msra.mxu0 %v807
        %1508 = vmatprep.subr.mxu0 %v820
        %1509 = vmatpush1.msra.mxu0 %v819
        %1510 = vmatprep.subr.mxu0 %v832
        %1511 = vmatpush1.msra.mxu0 %v831
        %1512 = vmatprep.subr.mxu0 %v844
        %1513 = vmatpush1.msra.mxu0 %v843
        %1514 = vmatprep.subr.mxu0 %v856
        %1515 = vmatpush1.msra.mxu0 %v855
        %1516 = vmatprep.subr.mxu0 %v868
        %1517 = vmatpush1.msra.mxu0 %v867
        %1518 = vmatprep.subr.mxu0 %v880
        %1519 = vmatpush1.msra.mxu0 %v879
        %1520 = vmatprep.subr.mxu0 %v892
        %1521 = vmatpush1.msra.mxu0 %v891
        %1522 = vmatprep.subr.mxu0 %v904
        %1523 = vmatpush1.msra.mxu0 %v903
        %1524 = vmatprep.subr.mxu0 %v916
        %1525 = vmatpush1.msra.mxu0 %v915
        %1526 = vmatprep.subr.mxu0 %v928
        %1527 = vmatpush1.msra.mxu0 %v927
        %1528 = vmatprep.subr.mxu0 %v940
        %1529 = vmatpush1.msra.mxu0 %v939
        %1530 = vmatprep.subr.mxu0 %v952
        %1531 = vmatpush1.msra.mxu0 %v951
        %1532 = vmatprep.subr.mxu0 %v964
        %1533 = vmatpush1.msra.mxu0 %v963
        %1534 = vmatprep.subr.mxu0 %v976
        %1535 = vmatpush1.msra.mxu0 %v975
        %1536 = vmatprep.subr.mxu0 %v988
        %1537 = vmatpush1.msra.mxu0 %v987
        %1538 = vmatprep.subr.mxu0 %v1000
        %1539 = vmatpush1.msra.mxu0 %v999
        %1540 = vmatprep.subr.mxu0 %v1012
        %1541 = vmatpush1.msra.mxu0 %v1011
        %1542 = vmatprep.subr.mxu0 %v1024
        %1543 = vmatpush1.msra.mxu0 %v1023
        %1544 = vmatprep.subr.mxu0 %v1036
        %1545 = vmatpush1.msra.mxu0 %v1035
        %1546 = vmatprep.subr.mxu0 %v1048
        %1547 = vmatpush1.msra.mxu0 %v1047
        %1548 = vmatprep.subr.mxu0 %v1060
        %1549 = vmatpush1.msra.mxu0 %v1059
        %1550 = vmatprep.mubr.f32.mxu0 %v298
        %1551 = vmatmul.mubr.f32.gmra.mrb[0].mxu0 %v297
        %v1552 = vpop.f32.mrb[0].mxu0
        %v1553 = vadd.f32 %v1482, %v1552
        %v1554 = vpop.f32.mrb[0].mxu0
        %v1555 = vadd.f32 %v1484, %v1554
        %1556 = vdwg.mxu0
        %1557 = vmatprep.subr.mxu0 %v306
        %1558 = vmatpush1.msra.mxu0 %v305
        %1559 = vmatprep.subr.mxu0 %v318
        %1560 = vmatpush1.msra.mxu0 %v317
        %1561 = vmatprep.subr.mxu0 %v330
        %1562 = vmatpush1.msra.mxu0 %v329
        %1563 = vmatprep.subr.mxu0 %v342
        %1564 = vmatpush1.msra.mxu0 %v341
        %1565 = vmatprep.subr.mxu0 %v354
        %1566 = vmatpush1.msra.mxu0 %v353
        %1567 = vmatprep.subr.mxu0 %v366
        %1568 = vmatpush1.msra.mxu0 %v365
        %1569 = vmatprep.subr.mxu0 %v378
        %1570 = vmatpush1.msra.mxu0 %v377
        %1571 = vmatprep.subr.mxu0 %v390
        %1572 = vmatpush1.msra.mxu0 %v389
        %1573 = vmatprep.subr.mxu0 %v402
        %1574 = vmatpush1.msra.mxu0 %v401
        %1575 = vmatprep.subr.mxu0 %v414
        %1576 = vmatpush1.msra.mxu0 %v413
        %1577 = vmatprep.subr.mxu0 %v426
        %1578 = vmatpush1.msra.mxu0 %v425
        %1579 = vmatprep.subr.mxu0 %v438
        %1580 = vmatpush1.msra.mxu0 %v437
        %1581 = vmatprep.subr.mxu0 %v450
        %1582 = vmatpush1.msra.mxu0 %v449
        %1583 = vmatprep.subr.mxu0 %v462
        %1584 = vmatpush1.msra.mxu0 %v461
        %1585 = vmatprep.subr.mxu0 %v474
        %1586 = vmatpush1.msra.mxu0 %v473
        %1587 = vmatprep.subr.mxu0 %v486
        %1588 = vmatpush1.msra.mxu0 %v485
        %1589 = vmatprep.subr.mxu0 %v498
        %1590 = vmatpush1.msra.mxu0 %v497
        %1591 = vmatprep.subr.mxu0 %v510
        %1592 = vmatpush1.msra.mxu0 %v509
        %1593 = vmatprep.subr.mxu0 %v522
        %1594 = vmatpush1.msra.mxu0 %v521
        %1595 = vmatprep.subr.mxu0 %v534
        %1596 = vmatpush1.msra.mxu0 %v533
        %1597 = vmatprep.subr.mxu0 %v546
        %1598 = vmatpush1.msra.mxu0 %v545
        %1599 = vmatprep.subr.mxu0 %v558
        %1600 = vmatpush1.msra.mxu0 %v557
        %1601 = vmatprep.subr.mxu0 %v570
        %1602 = vmatpush1.msra.mxu0 %v569
        %1603 = vmatprep.subr.mxu0 %v582
        %1604 = vmatpush1.msra.mxu0 %v581
        %1605 = vmatprep.subr.mxu0 %v594
        %1606 = vmatpush1.msra.mxu0 %v593
        %1607 = vmatprep.subr.mxu0 %v606
        %1608 = vmatpush1.msra.mxu0 %v605
        %1609 = vmatprep.subr.mxu0 %v618
        %1610 = vmatpush1.msra.mxu0 %v617
        %1611 = vmatprep.subr.mxu0 %v630
        %1612 = vmatpush1.msra.mxu0 %v629
        %1613 = vmatprep.subr.mxu0 %v642
        %1614 = vmatpush1.msra.mxu0 %v641
        %1615 = vmatprep.subr.mxu0 %v654
        %1616 = vmatpush1.msra.mxu0 %v653
        %1617 = vmatprep.subr.mxu0 %v666
        %1618 = vmatpush1.msra.mxu0 %v665
        %1619 = vmatprep.subr.mxu0 %v678
        %1620 = vmatpush1.msra.mxu0 %v677
        %1621 = vmatprep.mubr.f32.mxu0 %v296
        %1622 = vmatmul.mubr.f32.gmra.mrb[0].mxu0 %v295
        %v1623 = vpop.f32.mrb[0].mxu0
        %v1624 = vadd.f32 %v1098, %v1623
        %v1625 = vpop.f32.mrb[0].mxu0
        %v1626 = vadd.f32 %v1102, %v1625
        %1627 = vdwg.mxu0
        %1628 = vmatprep.subr.mxu0 %v690
        %1629 = vmatpush1.msra.mxu0 %v689
        %1630 = vmatprep.subr.mxu0 %v702
        %1631 = vmatpush1.msra.mxu0 %v701
        %1632 = vmatprep.subr.mxu0 %v714
        %1633 = vmatpush1.msra.mxu0 %v713
        %1634 = vmatprep.subr.mxu0 %v726
        %1635 = vmatpush1.msra.mxu0 %v725
        %1636 = vmatprep.subr.mxu0 %v738
        %1637 = vmatpush1.msra.mxu0 %v737
        %1638 = vmatprep.subr.mxu0 %v750
        %1639 = vmatpush1.msra.mxu0 %v749
        %1640 = vmatprep.subr.mxu0 %v762
        %1641 = vmatpush1.msra.mxu0 %v761
        %1642 = vmatprep.subr.mxu0 %v774
        %1643 = vmatpush1.msra.mxu0 %v773
        %1644 = vmatprep.subr.mxu0 %v786
        %1645 = vmatpush1.msra.mxu0 %v785
        %1646 = vmatprep.subr.mxu0 %v798
        %1647 = vmatpush1.msra.mxu0 %v797
        %1648 = vmatprep.subr.mxu0 %v810
        %1649 = vmatpush1.msra.mxu0 %v809
        %1650 = vmatprep.subr.mxu0 %v822
        %1651 = vmatpush1.msra.mxu0 %v821
        %1652 = vmatprep.subr.mxu0 %v834
        %1653 = vmatpush1.msra.mxu0 %v833
        %1654 = vmatprep.subr.mxu0 %v846
        %1655 = vmatpush1.msra.mxu0 %v845
        %1656 = vmatprep.subr.mxu0 %v858
        %1657 = vmatpush1.msra.mxu0 %v857
        %1658 = vmatprep.subr.mxu0 %v870
        %1659 = vmatpush1.msra.mxu0 %v869
        %1660 = vmatprep.subr.mxu0 %v882
        %1661 = vmatpush1.msra.mxu0 %v881
        %1662 = vmatprep.subr.mxu0 %v894
        %1663 = vmatpush1.msra.mxu0 %v893
        %1664 = vmatprep.subr.mxu0 %v906
        %1665 = vmatpush1.msra.mxu0 %v905
        %1666 = vmatprep.subr.mxu0 %v918
        %1667 = vmatpush1.msra.mxu0 %v917
        %1668 = vmatprep.subr.mxu0 %v930
        %1669 = vmatpush1.msra.mxu0 %v929
        %1670 = vmatprep.subr.mxu0 %v942
        %1671 = vmatpush1.msra.mxu0 %v941
        %1672 = vmatprep.subr.mxu0 %v954
        %1673 = vmatpush1.msra.mxu0 %v953
        %1674 = vmatprep.subr.mxu0 %v966
        %1675 = vmatpush1.msra.mxu0 %v965
        %1676 = vmatprep.subr.mxu0 %v978
        %1677 = vmatpush1.msra.mxu0 %v977
        %1678 = vmatprep.subr.mxu0 %v990
        %1679 = vmatpush1.msra.mxu0 %v989
        %1680 = vmatprep.subr.mxu0 %v1002
        %1681 = vmatpush1.msra.mxu0 %v1001
        %1682 = vmatprep.subr.mxu0 %v1014
        %1683 = vmatpush1.msra.mxu0 %v1013
        %1684 = vmatprep.subr.mxu0 %v1026
        %1685 = vmatpush1.msra.mxu0 %v1025
        %1686 = vmatprep.subr.mxu0 %v1038
        %1687 = vmatpush1.msra.mxu0 %v1037
        %1688 = vmatprep.subr.mxu0 %v1050
        %1689 = vmatpush1.msra.mxu0 %v1049
        %1690 = vmatprep.subr.mxu0 %v1062
        %1691 = vmatpush1.msra.mxu0 %v1061
        %1692 = vmatprep.mubr.f32.mxu0 %v298
        %1693 = vmatmul.mubr.f32.gmra.mrb[0].mxu0 %v297
        %v1694 = vpop.f32.mrb[0].mxu0
        %v1695 = vadd.f32 %v1624, %v1694
        %v1696 = vpop.f32.mrb[0].mxu0
        %v1697 = vadd.f32 %v1626, %v1696
        %1698 = vdwg.mxu0
        %1699 = vmatprep.subr.mxu0 %v308
        %1700 = vmatpush1.msra.mxu0 %v307
        %1701 = vmatprep.subr.mxu0 %v320
        %1702 = vmatpush1.msra.mxu0 %v319
        %1703 = vmatprep.subr.mxu0 %v332
        %1704 = vmatpush1.msra.mxu0 %v331
        %1705 = vmatprep.subr.mxu0 %v344
        %1706 = vmatpush1.msra.mxu0 %v343
        %1707 = vmatprep.subr.mxu0 %v356
        %1708 = vmatpush1.msra.mxu0 %v355
        %1709 = vmatprep.subr.mxu0 %v368
        %1710 = vmatpush1.msra.mxu0 %v367
        %1711 = vmatprep.subr.mxu0 %v380
        %1712 = vmatpush1.msra.mxu0 %v379
        %1713 = vmatprep.subr.mxu0 %v392
        %1714 = vmatpush1.msra.mxu0 %v391
        %1715 = vmatprep.subr.mxu0 %v404
        %1716 = vmatpush1.msra.mxu0 %v403
        %1717 = vmatprep.subr.mxu0 %v416
        %1718 = vmatpush1.msra.mxu0 %v415
        %1719 = vmatprep.subr.mxu0 %v428
        %1720 = vmatpush1.msra.mxu0 %v427
        %1721 = vmatprep.subr.mxu0 %v440
        %1722 = vmatpush1.msra.mxu0 %v439
        %1723 = vmatprep.subr.mxu0 %v452
        %1724 = vmatpush1.msra.mxu0 %v451
        %1725 = vmatprep.subr.mxu0 %v464
        %1726 = vmatpush1.msra.mxu0 %v463
        %1727 = vmatprep.subr.mxu0 %v476
        %1728 = vmatpush1.msra.mxu0 %v475
        %1729 = vmatprep.subr.mxu0 %v488
        %1730 = vmatpush1.msra.mxu0 %v487
        %1731 = vmatprep.subr.mxu0 %v500
        %1732 = vmatpush1.msra.mxu0 %v499
        %1733 = vmatprep.subr.mxu0 %v512
        %1734 = vmatpush1.msra.mxu0 %v511
        %1735 = vmatprep.subr.mxu0 %v524
        %1736 = vmatpush1.msra.mxu0 %v523
        %1737 = vmatprep.subr.mxu0 %v536
        %1738 = vmatpush1.msra.mxu0 %v535
        %1739 = vmatprep.subr.mxu0 %v548
        %1740 = vmatpush1.msra.mxu0 %v547
        %1741 = vmatprep.subr.mxu0 %v560
        %1742 = vmatpush1.msra.mxu0 %v559
        %1743 = vmatprep.subr.mxu0 %v572
        %1744 = vmatpush1.msra.mxu0 %v571
        %1745 = vmatprep.subr.mxu0 %v584
        %1746 = vmatpush1.msra.mxu0 %v583
        %1747 = vmatprep.subr.mxu0 %v596
        %1748 = vmatpush1.msra.mxu0 %v595
        %1749 = vmatprep.subr.mxu0 %v608
        %1750 = vmatpush1.msra.mxu0 %v607
        %1751 = vmatprep.subr.mxu0 %v620
        %1752 = vmatpush1.msra.mxu0 %v619
        %1753 = vmatprep.subr.mxu0 %v632
        %1754 = vmatpush1.msra.mxu0 %v631
        %1755 = vmatprep.subr.mxu0 %v644
        %1756 = vmatpush1.msra.mxu0 %v643
        %1757 = vmatprep.subr.mxu0 %v656
        %1758 = vmatpush1.msra.mxu0 %v655
        %1759 = vmatprep.subr.mxu0 %v668
        %1760 = vmatpush1.msra.mxu0 %v667
        %1761 = vmatprep.subr.mxu0 %v680
        %1762 = vmatpush1.msra.mxu0 %v679
        %1763 = vmatprep.mubr.f32.mxu0 %v296
        %1764 = vmatmul.mubr.f32.gmra.mrb[0].mxu0 %v295
        %v1765 = vpop.f32.mrb[0].mxu0
        %v1766 = vadd.f32 %v1106, %v1765
        %v1767 = vpop.f32.mrb[0].mxu0
        %v1768 = vadd.f32 %v1110, %v1767
        %1769 = vdwg.mxu0
        %1770 = vmatprep.subr.mxu0 %v692
        %1771 = vmatpush1.msra.mxu0 %v691
        %1772 = vmatprep.subr.mxu0 %v704
        %1773 = vmatpush1.msra.mxu0 %v703
        %1774 = vmatprep.subr.mxu0 %v716
        %1775 = vmatpush1.msra.mxu0 %v715
        %1776 = vmatprep.subr.mxu0 %v728
        %1777 = vmatpush1.msra.mxu0 %v727
        %1778 = vmatprep.subr.mxu0 %v740
        %1779 = vmatpush1.msra.mxu0 %v739
        %1780 = vmatprep.subr.mxu0 %v752
        %1781 = vmatpush1.msra.mxu0 %v751
        %1782 = vmatprep.subr.mxu0 %v764
        %1783 = vmatpush1.msra.mxu0 %v763
        %1784 = vmatprep.subr.mxu0 %v776
        %1785 = vmatpush1.msra.mxu0 %v775
        %1786 = vmatprep.subr.mxu0 %v788
        %1787 = vmatpush1.msra.mxu0 %v787
        %1788 = vmatprep.subr.mxu0 %v800
        %1789 = vmatpush1.msra.mxu0 %v799
        %1790 = vmatprep.subr.mxu0 %v812
        %1791 = vmatpush1.msra.mxu0 %v811
        %1792 = vmatprep.subr.mxu0 %v824
        %1793 = vmatpush1.msra.mxu0 %v823
        %1794 = vmatprep.subr.mxu0 %v836
        %1795 = vmatpush1.msra.mxu0 %v835
        %1796 = vmatprep.subr.mxu0 %v848
        %1797 = vmatpush1.msra.mxu0 %v847
        %1798 = vmatprep.subr.mxu0 %v860
        %1799 = vmatpush1.msra.mxu0 %v859
        %1800 = vmatprep.subr.mxu0 %v872
        %1801 = vmatpush1.msra.mxu0 %v871
        %1802 = vmatprep.subr.mxu0 %v884
        %1803 = vmatpush1.msra.mxu0 %v883
        %1804 = vmatprep.subr.mxu0 %v896
        %1805 = vmatpush1.msra.mxu0 %v895
        %1806 = vmatprep.subr.mxu0 %v908
        %1807 = vmatpush1.msra.mxu0 %v907
        %1808 = vmatprep.subr.mxu0 %v920
        %1809 = vmatpush1.msra.mxu0 %v919
        %1810 = vmatprep.subr.mxu0 %v932
        %1811 = vmatpush1.msra.mxu0 %v931
        %1812 = vmatprep.subr.mxu0 %v944
        %1813 = vmatpush1.msra.mxu0 %v943
        %1814 = vmatprep.subr.mxu0 %v956
        %1815 = vmatpush1.msra.mxu0 %v955
        %1816 = vmatprep.subr.mxu0 %v968
        %1817 = vmatpush1.msra.mxu0 %v967
        %1818 = vmatprep.subr.mxu0 %v980
        %1819 = vmatpush1.msra.mxu0 %v979
        %1820 = vmatprep.subr.mxu0 %v992
        %1821 = vmatpush1.msra.mxu0 %v991
        %1822 = vmatprep.subr.mxu0 %v1004
        %1823 = vmatpush1.msra.mxu0 %v1003
        %1824 = vmatprep.subr.mxu0 %v1016
        %1825 = vmatpush1.msra.mxu0 %v1015
        %1826 = vmatprep.subr.mxu0 %v1028
        %1827 = vmatpush1.msra.mxu0 %v1027
        %1828 = vmatprep.subr.mxu0 %v1040
        %1829 = vmatpush1.msra.mxu0 %v1039
        %1830 = vmatprep.subr.mxu0 %v1052
        %1831 = vmatpush1.msra.mxu0 %v1051
        %1832 = vmatprep.subr.mxu0 %v1064
        %1833 = vmatpush1.msra.mxu0 %v1063
        %1834 = vmatprep.mubr.f32.mxu0 %v298
        %1835 = vmatmul.mubr.f32.gmra.mrb[0].mxu0 %v297
        %v1836 = vpop.f32.mrb[0].mxu0
        %v1837 = vadd.f32 %v1766, %v1836
        %v1838 = vpop.f32.mrb[0].mxu0
        %v1839 = vadd.f32 %v1768, %v1838
        %1840 = vdwg.mxu0
        %1841 = vmatprep.subr.mxu0 %v310
        %1842 = vmatpush1.msra.mxu0 %v309
        %1843 = vmatprep.subr.mxu0 %v322
        %1844 = vmatpush1.msra.mxu0 %v321
        %1845 = vmatprep.subr.mxu0 %v334
        %1846 = vmatpush1.msra.mxu0 %v333
        %1847 = vmatprep.subr.mxu0 %v346
        %1848 = vmatpush1.msra.mxu0 %v345
        %1849 = vmatprep.subr.mxu0 %v358
        %1850 = vmatpush1.msra.mxu0 %v357
        %1851 = vmatprep.subr.mxu0 %v370
        %1852 = vmatpush1.msra.mxu0 %v369
        %1853 = vmatprep.subr.mxu0 %v382
        %1854 = vmatpush1.msra.mxu0 %v381
        %1855 = vmatprep.subr.mxu0 %v394
        %1856 = vmatpush1.msra.mxu0 %v393
        %1857 = vmatprep.subr.mxu0 %v406
        %1858 = vmatpush1.msra.mxu0 %v405
        %1859 = vmatprep.subr.mxu0 %v418
        %1860 = vmatpush1.msra.mxu0 %v417
        %1861 = vmatprep.subr.mxu0 %v430
        %1862 = vmatpush1.msra.mxu0 %v429
        %1863 = vmatprep.subr.mxu0 %v442
        %1864 = vmatpush1.msra.mxu0 %v441
        %1865 = vmatprep.subr.mxu0 %v454
        %1866 = vmatpush1.msra.mxu0 %v453
        %1867 = vmatprep.subr.mxu0 %v466
        %1868 = vmatpush1.msra.mxu0 %v465
        %1869 = vmatprep.subr.mxu0 %v478
        %1870 = vmatpush1.msra.mxu0 %v477
        %1871 = vmatprep.subr.mxu0 %v490
        %1872 = vmatpush1.msra.mxu0 %v489
        %1873 = vmatprep.subr.mxu0 %v502
        %1874 = vmatpush1.msra.mxu0 %v501
        %1875 = vmatprep.subr.mxu0 %v514
        %1876 = vmatpush1.msra.mxu0 %v513
        %1877 = vmatprep.subr.mxu0 %v526
        %1878 = vmatpush1.msra.mxu0 %v525
        %1879 = vmatprep.subr.mxu0 %v538
        %1880 = vmatpush1.msra.mxu0 %v537
        %1881 = vmatprep.subr.mxu0 %v550
        %1882 = vmatpush1.msra.mxu0 %v549
        %1883 = vmatprep.subr.mxu0 %v562
        %1884 = vmatpush1.msra.mxu0 %v561
        %1885 = vmatprep.subr.mxu0 %v574
        %1886 = vmatpush1.msra.mxu0 %v573
        %1887 = vmatprep.subr.mxu0 %v586
        %1888 = vmatpush1.msra.mxu0 %v585
        %1889 = vmatprep.subr.mxu0 %v598
        %1890 = vmatpush1.msra.mxu0 %v597
        %1891 = vmatprep.subr.mxu0 %v610
        %1892 = vmatpush1.msra.mxu0 %v609
        %1893 = vmatprep.subr.mxu0 %v622
        %1894 = vmatpush1.msra.mxu0 %v621
        %1895 = vmatprep.subr.mxu0 %v634
        %1896 = vmatpush1.msra.mxu0 %v633
        %1897 = vmatprep.subr.mxu0 %v646
        %1898 = vmatpush1.msra.mxu0 %v645
        %1899 = vmatprep.subr.mxu0 %v658
        %1900 = vmatpush1.msra.mxu0 %v657
        %1901 = vmatprep.subr.mxu0 %v670
        %1902 = vmatpush1.msra.mxu0 %v669
        %1903 = vmatprep.subr.mxu0 %v682
        %1904 = vmatpush1.msra.mxu0 %v681
        %1905 = vmatprep.mubr.f32.mxu0 %v296
        %1906 = vmatmul.mubr.f32.gmra.mrb[0].mxu0 %v295
        %v1907 = vpop.f32.mrb[0].mxu0
        %v1908 = vadd.f32 %v1114, %v1907
        %v1909 = vpop.f32.mrb[0].mxu0
        %v1910 = vadd.f32 %v1118, %v1909
        %1911 = vdwg.mxu0
        %1912 = vmatprep.subr.mxu0 %v694
        %1913 = vmatpush1.msra.mxu0 %v693
        %1914 = vmatprep.subr.mxu0 %v706
        %1915 = vmatpush1.msra.mxu0 %v705
        %1916 = vmatprep.subr.mxu0 %v718
        %1917 = vmatpush1.msra.mxu0 %v717
        %1918 = vmatprep.subr.mxu0 %v730
        %1919 = vmatpush1.msra.mxu0 %v729
        %1920 = vmatprep.subr.mxu0 %v742
        %1921 = vmatpush1.msra.mxu0 %v741
        %1922 = vmatprep.subr.mxu0 %v754
        %1923 = vmatpush1.msra.mxu0 %v753
        %1924 = vmatprep.subr.mxu0 %v766
        %1925 = vmatpush1.msra.mxu0 %v765
        %1926 = vmatprep.subr.mxu0 %v778
        %1927 = vmatpush1.msra.mxu0 %v777
        %1928 = vmatprep.subr.mxu0 %v790
        %1929 = vmatpush1.msra.mxu0 %v789
        %1930 = vmatprep.subr.mxu0 %v802
        %1931 = vmatpush1.msra.mxu0 %v801
        %1932 = vmatprep.subr.mxu0 %v814
        %1933 = vmatpush1.msra.mxu0 %v813
        %1934 = vmatprep.subr.mxu0 %v826
        %1935 = vmatpush1.msra.mxu0 %v825
        %1936 = vmatprep.subr.mxu0 %v838
        %1937 = vmatpush1.msra.mxu0 %v837
        %1938 = vmatprep.subr.mxu0 %v850
        %1939 = vmatpush1.msra.mxu0 %v849
        %1940 = vmatprep.subr.mxu0 %v862
        %1941 = vmatpush1.msra.mxu0 %v861
        %1942 = vmatprep.subr.mxu0 %v874
        %1943 = vmatpush1.msra.mxu0 %v873
        %1944 = vmatprep.subr.mxu0 %v886
        %1945 = vmatpush1.msra.mxu0 %v885
        %1946 = vmatprep.subr.mxu0 %v898
        %1947 = vmatpush1.msra.mxu0 %v897
        %1948 = vmatprep.subr.mxu0 %v910
        %1949 = vmatpush1.msra.mxu0 %v909
        %1950 = vmatprep.subr.mxu0 %v922
        %1951 = vmatpush1.msra.mxu0 %v921
        %1952 = vmatprep.subr.mxu0 %v934
        %1953 = vmatpush1.msra.mxu0 %v933
        %1954 = vmatprep.subr.mxu0 %v946
        %1955 = vmatpush1.msra.mxu0 %v945
        %1956 = vmatprep.subr.mxu0 %v958
        %1957 = vmatpush1.msra.mxu0 %v957
        %1958 = vmatprep.subr.mxu0 %v970
        %1959 = vmatpush1.msra.mxu0 %v969
        %1960 = vmatprep.subr.mxu0 %v982
        %1961 = vmatpush1.msra.mxu0 %v981
        %1962 = vmatprep.subr.mxu0 %v994
        %1963 = vmatpush1.msra.mxu0 %v993
        %1964 = vmatprep.subr.mxu0 %v1006
        %1965 = vmatpush1.msra.mxu0 %v1005
        %1966 = vmatprep.subr.mxu0 %v1018
        %1967 = vmatpush1.msra.mxu0 %v1017
        %1968 = vmatprep.subr.mxu0 %v1030
        %1969 = vmatpush1.msra.mxu0 %v1029
        %1970 = vmatprep.subr.mxu0 %v1042
        %1971 = vmatpush1.msra.mxu0 %v1041
        %1972 = vmatprep.subr.mxu0 %v1054
        %1973 = vmatpush1.msra.mxu0 %v1053
        %1974 = vmatprep.subr.mxu0 %v1066
        %1975 = vmatpush1.msra.mxu0 %v1065
        %1976 = vmatprep.mubr.f32.mxu0 %v298
        %1977 = vmatmul.mubr.f32.gmra.mrb[0].mxu0 %v297
        %v1978 = vpop.f32.mrb[0].mxu0
        %v1979 = vadd.f32 %v1908, %v1978
        %v1980 = vpop.f32.mrb[0].mxu0
        %v1981 = vadd.f32 %v1910, %v1980
        %1982 = vdwg.mxu0
        %vm1983 = vcmask 523264
        %v1985 = vsel %vm1983, %v1269, 0
        %v1988 = vsel %vm1983, %v1553, 0
        %1990 = vmatprep.subr.mxu0 0.0
        %1991 = vmatpush1.xpose.msra.mxu0 %v1988
        %1992 = vmatprep.subr.mxu0 0.0
        %1993 = vmatpush1.xpose.msra.mxu0 0.0
        %1994 = vmatprep.subr.mxu0 0.0
        %1995 = vmatpush1.xpose.msra.mxu0 0.0
        %1996 = vmatprep.subr.mxu0 0.0
        %1997 = vmatpush1.xpose.msra.mxu0 0.0
        %1998 = vmatprep.subr.mxu0 0.0
        %1999 = vmatpush1.xpose.msra.mxu0 0.0
        %2000 = vmatprep.subr.mxu0 0.0
        %2001 = vmatpush1.xpose.msra.mxu0 0.0
        %2002 = vmatprep.subr.mxu0 0.0
        %2003 = vmatpush1.xpose.msra.mxu0 0.0
        %2004 = vmatprep.subr.mxu0 0.0
        %2005 = vmatpush1.xpose.msra.mxu0 0.0
        %2006 = vmatprep.subr.mxu0 0.0
        %2007 = vmatpush1.xpose.msra.mxu0 0.0
        %2008 = vmatprep.subr.mxu0 0.0
        %2009 = vmatpush1.xpose.msra.mxu0 0.0
        %2010 = vmatprep.subr.mxu0 0.0
        %2011 = vmatpush1.xpose.msra.mxu0 0.0
        %2012 = vmatprep.subr.mxu0 0.0
        %2013 = vmatpush1.xpose.msra.mxu0 0.0
        %2014 = vmatprep.subr.mxu0 0.0
        %2015 = vmatpush1.xpose.msra.mxu0 0.0
        %2016 = vmatprep.subr.mxu0 0.0
        %2017 = vmatpush1.xpose.msra.mxu0 0.0
        %2018 = vmatprep.subr.mxu0 0.0
        %2019 = vmatpush1.xpose.msra.mxu0 0.0
        %2020 = vmatprep.subr.mxu0 0.0
        %2021 = vmatpush1.xpose.msra.mxu0 0.0
        %2022 = vmatprep.subr.mxu0 0.0
        %2023 = vmatpush1.xpose.msra.mxu0 0.0
        %2024 = vmatprep.subr.mxu0 0.0
        %2025 = vmatpush1.xpose.msra.mxu0 0.0
        %2026 = vmatprep.subr.mxu0 0.0
        %2027 = vmatpush1.xpose.msra.mxu0 0.0
        %2028 = vmatprep.subr.mxu0 0.0
        %2029 = vmatpush1.xpose.msra.mxu0 0.0
        %2030 = vmatprep.subr.mxu0 0.0
        %2031 = vmatpush1.xpose.msra.mxu0 0.0
        %2032 = vmatprep.subr.mxu0 0.0
        %2033 = vmatpush1.xpose.msra.mxu0 0.0
        %2034 = vmatprep.subr.mxu0 0.0
        %2035 = vmatpush1.xpose.msra.mxu0 0.0
        %2036 = vmatprep.subr.mxu0 0.0
        %2037 = vmatpush1.xpose.msra.mxu0 0.0
        %2038 = vmatprep.subr.mxu0 0.0
        %2039 = vmatpush1.xpose.msra.mxu0 0.0
        %2040 = vmatprep.subr.mxu0 0.0
        %2041 = vmatpush1.xpose.msra.mxu0 0.0
        %2042 = vmatprep.subr.mxu0 0.0
        %2043 = vmatpush1.xpose.msra.mxu0 0.0
        %2044 = vmatprep.subr.mxu0 0.0
        %2045 = vmatpush1.xpose.msra.mxu0 0.0
        %2046 = vmatprep.subr.mxu0 0.0
        %2047 = vmatpush1.xpose.msra.mxu0 0.0
        %2048 = vmatprep.subr.mxu0 0.0
        %2049 = vmatpush1.xpose.msra.mxu0 0.0
        %2050 = vmatprep.subr.mxu0 0.0
        %2051 = vmatpush1.xpose.msra.mxu0 0.0
        %2052 = vmatprep.subr.mxu0 0.0
        %2053 = vmatpush1.xpose.msra.mxu0 0.0
        %2054 = vmatprep.mubr.f32.mxu0 0.0
        %2055 = vmatmul.mubr.f32.gmra.mrb[0].mxu0 %v1985
        %v2056 = vpop.f32.mrb[0].mxu0
        %v2057 = vadd.f32 0.0, %v2056
        %v2058 = vpop.f32.mrb[0].mxu0
        %2059 = vdwg.mxu0
        %v2060 = vmul.f32 %v2057, 0.125
        %vm2061 = vcmask 64512
        %v2062 = vsel %vm2061, %v2060, -inf
        %2063 = vmax.xlane.f32.xlu0 %v2062
        %v2064 = vpop.xlane.xlu0 %2063
        %v2065 = vsub.f32 %v2060, %v2064
        %v2066 = vmul.f32 %v2065, 1.442695
        %v2067 = vpow.pop %v2066
        %v2068 = vsel %vm2061, %v2067, 0.0
        %2069 = vadd.xlane.f32.xlu0 %v2068
        %v2070 = vpop.xlane.xlu0 %2069
        %v2071 = vrcp.pop %v2070
        %v2072 = vmul.f32 %v2067, %v2071
        %v2074 = vsel %vm2061, %v2072, 0
        %2076 = vmatprep.subr.mxu0 0.0
        %2077 = vmatpush1.msra.mxu0 %v1837
        %2078 = vmatprep.subr.mxu0 0.0
        %2079 = vmatpush1.msra.mxu0 0.0
        %2080 = vmatprep.subr.mxu0 0.0
        %2081 = vmatpush1.msra.mxu0 0.0
        %2082 = vmatprep.subr.mxu0 0.0
        %2083 = vmatpush1.msra.mxu0 0.0
        %2084 = vmatprep.subr.mxu0 0.0
        %2085 = vmatpush1.msra.mxu0 0.0
        %2086 = vmatprep.subr.mxu0 0.0
        %2087 = vmatpush1.msra.mxu0 0.0
        %2088 = vmatprep.subr.mxu0 0.0
        %2089 = vmatpush1.msra.mxu0 0.0
        %2090 = vmatprep.subr.mxu0 0.0
        %2091 = vmatpush1.msra.mxu0 0.0
        %2092 = vmatprep.subr.mxu0 0.0
        %2093 = vmatpush1.msra.mxu0 0.0
        %2094 = vmatprep.subr.mxu0 0.0
        %2095 = vmatpush1.msra.mxu0 0.0
        %2096 = vmatprep.subr.mxu0 0.0
        %2097 = vmatpush1.msra.mxu0 0.0
        %2098 = vmatprep.subr.mxu0 0.0
        %2099 = vmatpush1.msra.mxu0 0.0
        %2100 = vmatprep.subr.mxu0 0.0
        %2101 = vmatpush1.msra.mxu0 0.0
        %2102 = vmatprep.subr.mxu0 0.0
        %2103 = vmatpush1.msra.mxu0 0.0
        %2104 = vmatprep.subr.mxu0 0.0
        %2105 = vmatpush1.msra.mxu0 0.0
        %2106 = vmatprep.subr.mxu0 0.0
        %2107 = vmatpush1.msra.mxu0 0.0
        %2108 = vmatprep.subr.mxu0 0.0
        %2109 = vmatpush1.msra.mxu0 0.0
        %2110 = vmatprep.subr.mxu0 0.0
        %2111 = vmatpush1.msra.mxu0 0.0
        %2112 = vmatprep.subr.mxu0 0.0
        %2113 = vmatpush1.msra.mxu0 0.0
        %2114 = vmatprep.subr.mxu0 0.0
        %2115 = vmatpush1.msra.mxu0 0.0
        %2116 = vmatprep.subr.mxu0 0.0
        %2117 = vmatpush1.msra.mxu0 0.0
        %2118 = vmatprep.subr.mxu0 0.0
        %2119 = vmatpush1.msra.mxu0 0.0
        %2120 = vmatprep.subr.mxu0 0.0
        %2121 = vmatpush1.msra.mxu0 0.0
        %2122 = vmatprep.subr.mxu0 0.0
        %2123 = vmatpush1.msra.mxu0 0.0
        %2124 = vmatprep.subr.mxu0 0.0
        %2125 = vmatpush1.msra.mxu0 0.0
        %2126 = vmatprep.subr.mxu0 0.0
        %2127 = vmatpush1.msra.mxu0 0.0
        %2128 = vmatprep.subr.mxu0 0.0
        %2129 = vmatpush1.msra.mxu0 0.0
        %2130 = vmatprep.subr.mxu0 0.0
        %2131 = vmatpush1.msra.mxu0 0.0
        %2132 = vmatprep.subr.mxu0 0.0
        %2133 = vmatpush1.msra.mxu0 0.0
        %2134 = vmatprep.subr.mxu0 0.0
        %2135 = vmatpush1.msra.mxu0 0.0
        %2136 = vmatprep.subr.mxu0 0.0
        %2137 = vmatpush1.msra.mxu0 0.0
        %2138 = vmatprep.subr.mxu0 0.0
        %2139 = vmatpush1.msra.mxu0 0.0
        %2140 = vmatprep.mubr.f32.mxu0 0.0
        %2141 = vmatmul.mubr.f32.gmra.mrb[0].mxu0 %v2074
        %v2142 = vpop.f32.mrb[0].mxu0
        %v2143 = vadd.f32 0.0, %v2142
        %v2144 = vpop.f32.mrb[0].mxu0
        %2145 = vdwg.mxu0
        %2146 = vrot.lane.b32.xlu0 %v1269, 64
        %v2147 = vpop.permute.xlu0 %2146
        %2148 = vrot.lane.b32.xlu0 %v1553, 64
        %v2149 = vpop.permute.xlu0 %2148
        %v2150 = vsel %vm1983, %v2147, 0
        %v2152 = vsel %vm1983, %v2149, 0
        %2154 = vmatprep.subr.mxu0 0.0
        %2155 = vmatpush1.xpose.msra.mxu0 %v2152
        %2156 = vmatprep.subr.mxu0 0.0
        %2157 = vmatpush1.xpose.msra.mxu0 0.0
        %2158 = vmatprep.subr.mxu0 0.0
        %2159 = vmatpush1.xpose.msra.mxu0 0.0
        %2160 = vmatprep.subr.mxu0 0.0
        %2161 = vmatpush1.xpose.msra.mxu0 0.0
        %2162 = vmatprep.subr.mxu0 0.0
        %2163 = vmatpush1.xpose.msra.mxu0 0.0
        %2164 = vmatprep.subr.mxu0 0.0
        %2165 = vmatpush1.xpose.msra.mxu0 0.0
        %2166 = vmatprep.subr.mxu0 0.0
        %2167 = vmatpush1.xpose.msra.mxu0 0.0
        %2168 = vmatprep.subr.mxu0 0.0
        %2169 = vmatpush1.xpose.msra.mxu0 0.0
        %2170 = vmatprep.subr.mxu0 0.0
        %2171 = vmatpush1.xpose.msra.mxu0 0.0
        %2172 = vmatprep.subr.mxu0 0.0
        %2173 = vmatpush1.xpose.msra.mxu0 0.0
        %2174 = vmatprep.subr.mxu0 0.0
        %2175 = vmatpush1.xpose.msra.mxu0 0.0
        %2176 = vmatprep.subr.mxu0 0.0
        %2177 = vmatpush1.xpose.msra.mxu0 0.0
        %2178 = vmatprep.subr.mxu0 0.0
        %2179 = vmatpush1.xpose.msra.mxu0 0.0
        %2180 = vmatprep.subr.mxu0 0.0
        %2181 = vmatpush1.xpose.msra.mxu0 0.0
        %2182 = vmatprep.subr.mxu0 0.0
        %2183 = vmatpush1.xpose.msra.mxu0 0.0
        %2184 = vmatprep.subr.mxu0 0.0
        %2185 = vmatpush1.xpose.msra.mxu0 0.0
        %2186 = vmatprep.subr.mxu0 0.0
        %2187 = vmatpush1.xpose.msra.mxu0 0.0
        %2188 = vmatprep.subr.mxu0 0.0
        %2189 = vmatpush1.xpose.msra.mxu0 0.0
        %2190 = vmatprep.subr.mxu0 0.0
        %2191 = vmatpush1.xpose.msra.mxu0 0.0
        %2192 = vmatprep.subr.mxu0 0.0
        %2193 = vmatpush1.xpose.msra.mxu0 0.0
        %2194 = vmatprep.subr.mxu0 0.0
        %2195 = vmatpush1.xpose.msra.mxu0 0.0
        %2196 = vmatprep.subr.mxu0 0.0
        %2197 = vmatpush1.xpose.msra.mxu0 0.0
        %2198 = vmatprep.subr.mxu0 0.0
        %2199 = vmatpush1.xpose.msra.mxu0 0.0
        %2200 = vmatprep.subr.mxu0 0.0
        %2201 = vmatpush1.xpose.msra.mxu0 0.0
        %2202 = vmatprep.subr.mxu0 0.0
        %2203 = vmatpush1.xpose.msra.mxu0 0.0
        %2204 = vmatprep.subr.mxu0 0.0
        %2205 = vmatpush1.xpose.msra.mxu0 0.0
        %2206 = vmatprep.subr.mxu0 0.0
        %2207 = vmatpush1.xpose.msra.mxu0 0.0
        %2208 = vmatprep.subr.mxu0 0.0
        %2209 = vmatpush1.xpose.msra.mxu0 0.0
        %2210 = vmatprep.subr.mxu0 0.0
        %2211 = vmatpush1.xpose.msra.mxu0 0.0
        %2212 = vmatprep.subr.mxu0 0.0
        %2213 = vmatpush1.xpose.msra.mxu0 0.0
        %2214 = vmatprep.subr.mxu0 0.0
        %2215 = vmatpush1.xpose.msra.mxu0 0.0
        %2216 = vmatprep.subr.mxu0 0.0
        %2217 = vmatpush1.xpose.msra.mxu0 0.0
        %2218 = vmatprep.mubr.f32.mxu0 0.0
        %2219 = vmatmul.mubr.f32.gmra.mrb[0].mxu0 %v2150
        %v2220 = vpop.f32.mrb[0].mxu0
        %v2221 = vadd.f32 0.0, %v2220
        %v2222 = vpop.f32.mrb[0].mxu0
        %2223 = vdwg.mxu0
        %v2224 = vmul.f32 %v2221, 0.125
        %v2225 = vsel %vm2061, %v2224, -inf
        %2226 = vmax.xlane.f32.xlu0 %v2225
        %v2227 = vpop.xlane.xlu0 %2226
        %v2228 = vsub.f32 %v2224, %v2227
        %v2229 = vmul.f32 %v2228, 1.442695
        %v2230 = vpow.pop %v2229
        %v2231 = vsel %vm2061, %v2230, 0.0
        %2232 = vadd.xlane.f32.xlu0 %v2231
        %v2233 = vpop.xlane.xlu0 %2232
        %v2234 = vrcp.pop %v2233
        %v2235 = vmul.f32 %v2230, %v2234
        %2237 = vrot.lane.b32.xlu0 %v1837, 64
        %v2238 = vpop.permute.xlu0 %2237
        %v2241 = vsel %vm2061, %v2235, 0
        %2243 = vmatprep.subr.mxu0 0.0
        %2244 = vmatpush1.msra.mxu0 %v2238
        %2245 = vmatprep.subr.mxu0 0.0
        %2246 = vmatpush1.msra.mxu0 0.0
        %2247 = vmatprep.subr.mxu0 0.0
        %2248 = vmatpush1.msra.mxu0 0.0
        %2249 = vmatprep.subr.mxu0 0.0
        %2250 = vmatpush1.msra.mxu0 0.0
        %2251 = vmatprep.subr.mxu0 0.0
        %2252 = vmatpush1.msra.mxu0 0.0
        %2253 = vmatprep.subr.mxu0 0.0
        %2254 = vmatpush1.msra.mxu0 0.0
        %2255 = vmatprep.subr.mxu0 0.0
        %2256 = vmatpush1.msra.mxu0 0.0
        %2257 = vmatprep.subr.mxu0 0.0
        %2258 = vmatpush1.msra.mxu0 0.0
        %2259 = vmatprep.subr.mxu0 0.0
        %2260 = vmatpush1.msra.mxu0 0.0
        %2261 = vmatprep.subr.mxu0 0.0
        %2262 = vmatpush1.msra.mxu0 0.0
        %2263 = vmatprep.subr.mxu0 0.0
        %2264 = vmatpush1.msra.mxu0 0.0
        %2265 = vmatprep.subr.mxu0 0.0
        %2266 = vmatpush1.msra.mxu0 0.0
        %2267 = vmatprep.subr.mxu0 0.0
        %2268 = vmatpush1.msra.mxu0 0.0
        %2269 = vmatprep.subr.mxu0 0.0
        %2270 = vmatpush1.msra.mxu0 0.0
        %2271 = vmatprep.subr.mxu0 0.0
        %2272 = vmatpush1.msra.mxu0 0.0
        %2273 = vmatprep.subr.mxu0 0.0
        %2274 = vmatpush1.msra.mxu0 0.0
        %2275 = vmatprep.subr.mxu0 0.0
        %2276 = vmatpush1.msra.mxu0 0.0
        %2277 = vmatprep.subr.mxu0 0.0
        %2278 = vmatpush1.msra.mxu0 0.0
        %2279 = vmatprep.subr.mxu0 0.0
        %2280 = vmatpush1.msra.mxu0 0.0
        %2281 = vmatprep.subr.mxu0 0.0
        %2282 = vmatpush1.msra.mxu0 0.0
        %2283 = vmatprep.subr.mxu0 0.0
        %2284 = vmatpush1.msra.mxu0 0.0
        %2285 = vmatprep.subr.mxu0 0.0
        %2286 = vmatpush1.msra.mxu0 0.0
        %2287 = vmatprep.subr.mxu0 0.0
        %2288 = vmatpush1.msra.mxu0 0.0
        %2289 = vmatprep.subr.mxu0 0.0
        %2290 = vmatpush1.msra.mxu0 0.0
        %2291 = vmatprep.subr.mxu0 0.0
        %2292 = vmatpush1.msra.mxu0 0.0
        %2293 = vmatprep.subr.mxu0 0.0
        %2294 = vmatpush1.msra.mxu0 0.0
        %2295 = vmatprep.subr.mxu0 0.0
        %2296 = vmatpush1.msra.mxu0 0.0
        %2297 = vmatprep.subr.mxu0 0.0
        %2298 = vmatpush1.msra.mxu0 0.0
        %2299 = vmatprep.subr.mxu0 0.0
        %2300 = vmatpush1.msra.mxu0 0.0
        %2301 = vmatprep.subr.mxu0 0.0
        %2302 = vmatpush1.msra.mxu0 0.0
        %2303 = vmatprep.subr.mxu0 0.0
        %2304 = vmatpush1.msra.mxu0 0.0
        %2305 = vmatprep.subr.mxu0 0.0
        %2306 = vmatpush1.msra.mxu0 0.0
        %2307 = vmatprep.mubr.f32.mxu0 0.0
        %2308 = vmatmul.mubr.f32.gmra.mrb[0].mxu0 %v2241
        %v2309 = vpop.f32.mrb[0].mxu0
        %v2310 = vadd.f32 0.0, %v2309
        %v2311 = vpop.f32.mrb[0].mxu0
        %2312 = vdwg.mxu0
        %v2314 = vsel %vm1983, %v1271, 0
        %v2317 = vsel %vm1983, %v1555, 0
        %2319 = vmatprep.subr.mxu0 0.0
        %2320 = vmatpush1.xpose.msra.mxu0 %v2317
        %2321 = vmatprep.subr.mxu0 0.0
        %2322 = vmatpush1.xpose.msra.mxu0 0.0
        %2323 = vmatprep.subr.mxu0 0.0
        %2324 = vmatpush1.xpose.msra.mxu0 0.0
        %2325 = vmatprep.subr.mxu0 0.0
        %2326 = vmatpush1.xpose.msra.mxu0 0.0
        %2327 = vmatprep.subr.mxu0 0.0
        %2328 = vmatpush1.xpose.msra.mxu0 0.0
        %2329 = vmatprep.subr.mxu0 0.0
        %2330 = vmatpush1.xpose.msra.mxu0 0.0
        %2331 = vmatprep.subr.mxu0 0.0
        %2332 = vmatpush1.xpose.msra.mxu0 0.0
        %2333 = vmatprep.subr.mxu0 0.0
        %2334 = vmatpush1.xpose.msra.mxu0 0.0
        %2335 = vmatprep.subr.mxu0 0.0
        %2336 = vmatpush1.xpose.msra.mxu0 0.0
        %2337 = vmatprep.subr.mxu0 0.0
        %2338 = vmatpush1.xpose.msra.mxu0 0.0
        %2339 = vmatprep.subr.mxu0 0.0
        %2340 = vmatpush1.xpose.msra.mxu0 0.0
        %2341 = vmatprep.subr.mxu0 0.0
        %2342 = vmatpush1.xpose.msra.mxu0 0.0
        %2343 = vmatprep.subr.mxu0 0.0
        %2344 = vmatpush1.xpose.msra.mxu0 0.0
        %2345 = vmatprep.subr.mxu0 0.0
        %2346 = vmatpush1.xpose.msra.mxu0 0.0
        %2347 = vmatprep.subr.mxu0 0.0
        %2348 = vmatpush1.xpose.msra.mxu0 0.0
        %2349 = vmatprep.subr.mxu0 0.0
        %2350 = vmatpush1.xpose.msra.mxu0 0.0
        %2351 = vmatprep.subr.mxu0 0.0
        %2352 = vmatpush1.xpose.msra.mxu0 0.0
        %2353 = vmatprep.subr.mxu0 0.0
        %2354 = vmatpush1.xpose.msra.mxu0 0.0
        %2355 = vmatprep.subr.mxu0 0.0
        %2356 = vmatpush1.xpose.msra.mxu0 0.0
        %2357 = vmatprep.subr.mxu0 0.0
        %2358 = vmatpush1.xpose.msra.mxu0 0.0
        %2359 = vmatprep.subr.mxu0 0.0
        %2360 = vmatpush1.xpose.msra.mxu0 0.0
        %2361 = vmatprep.subr.mxu0 0.0
        %2362 = vmatpush1.xpose.msra.mxu0 0.0
        %2363 = vmatprep.subr.mxu0 0.0
        %2364 = vmatpush1.xpose.msra.mxu0 0.0
        %2365 = vmatprep.subr.mxu0 0.0
        %2366 = vmatpush1.xpose.msra.mxu0 0.0
        %2367 = vmatprep.subr.mxu0 0.0
        %2368 = vmatpush1.xpose.msra.mxu0 0.0
        %2369 = vmatprep.subr.mxu0 0.0
        %2370 = vmatpush1.xpose.msra.mxu0 0.0
        %2371 = vmatprep.subr.mxu0 0.0
        %2372 = vmatpush1.xpose.msra.mxu0 0.0
        %2373 = vmatprep.subr.mxu0 0.0
        %2374 = vmatpush1.xpose.msra.mxu0 0.0
        %2375 = vmatprep.subr.mxu0 0.0
        %2376 = vmatpush1.xpose.msra.mxu0 0.0
        %2377 = vmatprep.subr.mxu0 0.0
        %2378 = vmatpush1.xpose.msra.mxu0 0.0
        %2379 = vmatprep.subr.mxu0 0.0
        %2380 = vmatpush1.xpose.msra.mxu0 0.0
        %2381 = vmatprep.subr.mxu0 0.0
        %2382 = vmatpush1.xpose.msra.mxu0 0.0
        %2383 = vmatprep.mubr.f32.mxu0 0.0
        %2384 = vmatmul.mubr.f32.gmra.mrb[0].mxu0 %v2314
        %v2385 = vpop.f32.mrb[0].mxu0
        %v2386 = vadd.f32 0.0, %v2385
        %v2387 = vpop.f32.mrb[0].mxu0
        %2388 = vdwg.mxu0
        %v2389 = vmul.f32 %v2386, 0.125
        %v2390 = vsel %vm2061, %v2389, -inf
        %2391 = vmax.xlane.f32.xlu0 %v2390
        %v2392 = vpop.xlane.xlu0 %2391
        %v2393 = vsub.f32 %v2389, %v2392
        %v2394 = vmul.f32 %v2393, 1.442695
        %v2395 = vpow.pop %v2394
        %v2396 = vsel %vm2061, %v2395, 0.0
        %2397 = vadd.xlane.f32.xlu0 %v2396
        %v2398 = vpop.xlane.xlu0 %2397
        %v2399 = vrcp.pop %v2398
        %v2400 = vmul.f32 %v2395, %v2399
        %v2402 = vsel %vm2061, %v2400, 0
        %2404 = vmatprep.subr.mxu0 0.0
        %2405 = vmatpush1.msra.mxu0 %v1839
        %2406 = vmatprep.subr.mxu0 0.0
        %2407 = vmatpush1.msra.mxu0 0.0
        %2408 = vmatprep.subr.mxu0 0.0
        %2409 = vmatpush1.msra.mxu0 0.0
        %2410 = vmatprep.subr.mxu0 0.0
        %2411 = vmatpush1.msra.mxu0 0.0
        %2412 = vmatprep.subr.mxu0 0.0
        %2413 = vmatpush1.msra.mxu0 0.0
        %2414 = vmatprep.subr.mxu0 0.0
        %2415 = vmatpush1.msra.mxu0 0.0
        %2416 = vmatprep.subr.mxu0 0.0
        %2417 = vmatpush1.msra.mxu0 0.0
        %2418 = vmatprep.subr.mxu0 0.0
        %2419 = vmatpush1.msra.mxu0 0.0
        %2420 = vmatprep.subr.mxu0 0.0
        %2421 = vmatpush1.msra.mxu0 0.0
        %2422 = vmatprep.subr.mxu0 0.0
        %2423 = vmatpush1.msra.mxu0 0.0
        %2424 = vmatprep.subr.mxu0 0.0
        %2425 = vmatpush1.msra.mxu0 0.0
        %2426 = vmatprep.subr.mxu0 0.0
        %2427 = vmatpush1.msra.mxu0 0.0
        %2428 = vmatprep.subr.mxu0 0.0
        %2429 = vmatpush1.msra.mxu0 0.0
        %2430 = vmatprep.subr.mxu0 0.0
        %2431 = vmatpush1.msra.mxu0 0.0
        %2432 = vmatprep.subr.mxu0 0.0
        %2433 = vmatpush1.msra.mxu0 0.0
        %2434 = vmatprep.subr.mxu0 0.0
        %2435 = vmatpush1.msra.mxu0 0.0
        %2436 = vmatprep.subr.mxu0 0.0
        %2437 = vmatpush1.msra.mxu0 0.0
        %2438 = vmatprep.subr.mxu0 0.0
        %2439 = vmatpush1.msra.mxu0 0.0
        %2440 = vmatprep.subr.mxu0 0.0
        %2441 = vmatpush1.msra.mxu0 0.0
        %2442 = vmatprep.subr.mxu0 0.0
        %2443 = vmatpush1.msra.mxu0 0.0
        %2444 = vmatprep.subr.mxu0 0.0
        %2445 = vmatpush1.msra.mxu0 0.0
        %2446 = vmatprep.subr.mxu0 0.0
        %2447 = vmatpush1.msra.mxu0 0.0
        %2448 = vmatprep.subr.mxu0 0.0
        %2449 = vmatpush1.msra.mxu0 0.0
        %2450 = vmatprep.subr.mxu0 0.0
        %2451 = vmatpush1.msra.mxu0 0.0
        %2452 = vmatprep.subr.mxu0 0.0
        %2453 = vmatpush1.msra.mxu0 0.0
        %2454 = vmatprep.subr.mxu0 0.0
        %2455 = vmatpush1.msra.mxu0 0.0
        %2456 = vmatprep.subr.mxu0 0.0
        %2457 = vmatpush1.msra.mxu0 0.0
        %2458 = vmatprep.subr.mxu0 0.0
        %2459 = vmatpush1.msra.mxu0 0.0
        %2460 = vmatprep.subr.mxu0 0.0
        %2461 = vmatpush1.msra.mxu0 0.0
        %2462 = vmatprep.subr.mxu0 0.0
        %2463 = vmatpush1.msra.mxu0 0.0
        %2464 = vmatprep.subr.mxu0 0.0
        %2465 = vmatpush1.msra.mxu0 0.0
        %2466 = vmatprep.subr.mxu0 0.0
        %2467 = vmatpush1.msra.mxu0 0.0
        %2468 = vmatprep.mubr.f32.mxu0 0.0
        %2469 = vmatmul.mubr.f32.gmra.mrb[0].mxu0 %v2402
        %v2470 = vpop.f32.mrb[0].mxu0
        %v2471 = vadd.f32 0.0, %v2470
        %v2472 = vpop.f32.mrb[0].mxu0
        %2473 = vdwg.mxu0
        %2474 = vrot.lane.b32.xlu0 %v1271, 64
        %v2475 = vpop.permute.xlu0 %2474
        %2476 = vrot.lane.b32.xlu0 %v1555, 64
        %v2477 = vpop.permute.xlu0 %2476
        %v2478 = vsel %vm1983, %v2475, 0
        %v2480 = vsel %vm1983, %v2477, 0
        %2482 = vmatprep.subr.mxu0 0.0
        %2483 = vmatpush1.xpose.msra.mxu0 %v2480
        %2484 = vmatprep.subr.mxu0 0.0
        %2485 = vmatpush1.xpose.msra.mxu0 0.0
        %2486 = vmatprep.subr.mxu0 0.0
        %2487 = vmatpush1.xpose.msra.mxu0 0.0
        %2488 = vmatprep.subr.mxu0 0.0
        %2489 = vmatpush1.xpose.msra.mxu0 0.0
        %2490 = vmatprep.subr.mxu0 0.0
        %2491 = vmatpush1.xpose.msra.mxu0 0.0
        %2492 = vmatprep.subr.mxu0 0.0
        %2493 = vmatpush1.xpose.msra.mxu0 0.0
        %2494 = vmatprep.subr.mxu0 0.0
        %2495 = vmatpush1.xpose.msra.mxu0 0.0
        %2496 = vmatprep.subr.mxu0 0.0
        %2497 = vmatpush1.xpose.msra.mxu0 0.0
        %2498 = vmatprep.subr.mxu0 0.0
        %2499 = vmatpush1.xpose.msra.mxu0 0.0
        %2500 = vmatprep.subr.mxu0 0.0
        %2501 = vmatpush1.xpose.msra.mxu0 0.0
        %2502 = vmatprep.subr.mxu0 0.0
        %2503 = vmatpush1.xpose.msra.mxu0 0.0
        %2504 = vmatprep.subr.mxu0 0.0
        %2505 = vmatpush1.xpose.msra.mxu0 0.0
        %2506 = vmatprep.subr.mxu0 0.0
        %2507 = vmatpush1.xpose.msra.mxu0 0.0
        %2508 = vmatprep.subr.mxu0 0.0
        %2509 = vmatpush1.xpose.msra.mxu0 0.0
        %2510 = vmatprep.subr.mxu0 0.0
        %2511 = vmatpush1.xpose.msra.mxu0 0.0
        %2512 = vmatprep.subr.mxu0 0.0
        %2513 = vmatpush1.xpose.msra.mxu0 0.0
        %2514 = vmatprep.subr.mxu0 0.0
        %2515 = vmatpush1.xpose.msra.mxu0 0.0
        %2516 = vmatprep.subr.mxu0 0.0
        %2517 = vmatpush1.xpose.msra.mxu0 0.0
        %2518 = vmatprep.subr.mxu0 0.0
        %2519 = vmatpush1.xpose.msra.mxu0 0.0
        %2520 = vmatprep.subr.mxu0 0.0
        %2521 = vmatpush1.xpose.msra.mxu0 0.0
        %2522 = vmatprep.subr.mxu0 0.0
        %2523 = vmatpush1.xpose.msra.mxu0 0.0
        %2524 = vmatprep.subr.mxu0 0.0
        %2525 = vmatpush1.xpose.msra.mxu0 0.0
        %2526 = vmatprep.subr.mxu0 0.0
        %2527 = vmatpush1.xpose.msra.mxu0 0.0
        %2528 = vmatprep.subr.mxu0 0.0
        %2529 = vmatpush1.xpose.msra.mxu0 0.0
        %2530 = vmatprep.subr.mxu0 0.0
        %2531 = vmatpush1.xpose.msra.mxu0 0.0
        %2532 = vmatprep.subr.mxu0 0.0
        %2533 = vmatpush1.xpose.msra.mxu0 0.0
        %2534 = vmatprep.subr.mxu0 0.0
        %2535 = vmatpush1.xpose.msra.mxu0 0.0
        %2536 = vmatprep.subr.mxu0 0.0
        %2537 = vmatpush1.xpose.msra.mxu0 0.0
        %2538 = vmatprep.subr.mxu0 0.0
        %2539 = vmatpush1.xpose.msra.mxu0 0.0
        %2540 = vmatprep.subr.mxu0 0.0
        %2541 = vmatpush1.xpose.msra.mxu0 0.0
        %2542 = vmatprep.subr.mxu0 0.0
        %2543 = vmatpush1.xpose.msra.mxu0 0.0
        %2544 = vmatprep.subr.mxu0 0.0
        %2545 = vmatpush1.xpose.msra.mxu0 0.0
        %2546 = vmatprep.mubr.f32.mxu0 0.0
        %2547 = vmatmul.mubr.f32.gmra.mrb[0].mxu0 %v2478
        %v2548 = vpop.f32.mrb[0].mxu0
        %v2549 = vadd.f32 0.0, %v2548
        %v2550 = vpop.f32.mrb[0].mxu0
        %2551 = vdwg.mxu0
        %v2552 = vmul.f32 %v2549, 0.125
        %v2553 = vsel %vm2061, %v2552, -inf
        %2554 = vmax.xlane.f32.xlu0 %v2553
        %v2555 = vpop.xlane.xlu0 %2554
        %v2556 = vsub.f32 %v2552, %v2555
        %v2557 = vmul.f32 %v2556, 1.442695
        %v2558 = vpow.pop %v2557
        %v2559 = vsel %vm2061, %v2558, 0.0
        %2560 = vadd.xlane.f32.xlu0 %v2559
        %v2561 = vpop.xlane.xlu0 %2560
        %v2562 = vrcp.pop %v2561
        %v2563 = vmul.f32 %v2558, %v2562
        %2565 = vrot.lane.b32.xlu0 %v1839, 64
        %v2566 = vpop.permute.xlu0 %2565
        %v2569 = vsel %vm2061, %v2563, 0
        %2571 = vmatprep.subr.mxu0 0.0
        %2572 = vmatpush1.msra.mxu0 %v2566
        %2573 = vmatprep.subr.mxu0 0.0
        %2574 = vmatpush1.msra.mxu0 0.0
        %2575 = vmatprep.subr.mxu0 0.0
        %2576 = vmatpush1.msra.mxu0 0.0
        %2577 = vmatprep.subr.mxu0 0.0
        %2578 = vmatpush1.msra.mxu0 0.0
        %2579 = vmatprep.subr.mxu0 0.0
        %2580 = vmatpush1.msra.mxu0 0.0
        %2581 = vmatprep.subr.mxu0 0.0
        %2582 = vmatpush1.msra.mxu0 0.0
        %2583 = vmatprep.subr.mxu0 0.0
        %2584 = vmatpush1.msra.mxu0 0.0
        %2585 = vmatprep.subr.mxu0 0.0
        %2586 = vmatpush1.msra.mxu0 0.0
        %2587 = vmatprep.subr.mxu0 0.0
        %2588 = vmatpush1.msra.mxu0 0.0
        %2589 = vmatprep.subr.mxu0 0.0
        %2590 = vmatpush1.msra.mxu0 0.0
        %2591 = vmatprep.subr.mxu0 0.0
        %2592 = vmatpush1.msra.mxu0 0.0
        %2593 = vmatprep.subr.mxu0 0.0
        %2594 = vmatpush1.msra.mxu0 0.0
        %2595 = vmatprep.subr.mxu0 0.0
        %2596 = vmatpush1.msra.mxu0 0.0
        %2597 = vmatprep.subr.mxu0 0.0
        %2598 = vmatpush1.msra.mxu0 0.0
        %2599 = vmatprep.subr.mxu0 0.0
        %2600 = vmatpush1.msra.mxu0 0.0
        %2601 = vmatprep.subr.mxu0 0.0
        %2602 = vmatpush1.msra.mxu0 0.0
        %2603 = vmatprep.subr.mxu0 0.0
        %2604 = vmatpush1.msra.mxu0 0.0
        %2605 = vmatprep.subr.mxu0 0.0
        %2606 = vmatpush1.msra.mxu0 0.0
        %2607 = vmatprep.subr.mxu0 0.0
        %2608 = vmatpush1.msra.mxu0 0.0
        %2609 = vmatprep.subr.mxu0 0.0
        %2610 = vmatpush1.msra.mxu0 0.0
        %2611 = vmatprep.subr.mxu0 0.0
        %2612 = vmatpush1.msra.mxu0 0.0
        %2613 = vmatprep.subr.mxu0 0.0
        %2614 = vmatpush1.msra.mxu0 0.0
        %2615 = vmatprep.subr.mxu0 0.0
        %2616 = vmatpush1.msra.mxu0 0.0
        %2617 = vmatprep.subr.mxu0 0.0
        %2618 = vmatpush1.msra.mxu0 0.0
        %2619 = vmatprep.subr.mxu0 0.0
        %2620 = vmatpush1.msra.mxu0 0.0
        %2621 = vmatprep.subr.mxu0 0.0
        %2622 = vmatpush1.msra.mxu0 0.0
        %2623 = vmatprep.subr.mxu0 0.0
        %2624 = vmatpush1.msra.mxu0 0.0
        %2625 = vmatprep.subr.mxu0 0.0
        %2626 = vmatpush1.msra.mxu0 0.0
        %2627 = vmatprep.subr.mxu0 0.0
        %2628 = vmatpush1.msra.mxu0 0.0
        %2629 = vmatprep.subr.mxu0 0.0
        %2630 = vmatpush1.msra.mxu0 0.0
        %2631 = vmatprep.subr.mxu0 0.0
        %2632 = vmatpush1.msra.mxu0 0.0
        %2633 = vmatprep.subr.mxu0 0.0
        %2634 = vmatpush1.msra.mxu0 0.0
        %2635 = vmatprep.mubr.f32.mxu0 0.0
        %2636 = vmatmul.mubr.f32.gmra.mrb[0].mxu0 %v2569
        %v2637 = vpop.f32.mrb[0].mxu0
        %v2638 = vadd.f32 0.0, %v2637
        %v2639 = vpop.f32.mrb[0].mxu0
        %2640 = vdwg.mxu0
        %v2642 = vsel %vm1983, %v1411, 0
        %v2645 = vsel %vm1983, %v1695, 0
        %2647 = vmatprep.subr.mxu0 0.0
        %2648 = vmatpush1.xpose.msra.mxu0 %v2645
        %2649 = vmatprep.subr.mxu0 0.0
        %2650 = vmatpush1.xpose.msra.mxu0 0.0
        %2651 = vmatprep.subr.mxu0 0.0
        %2652 = vmatpush1.xpose.msra.mxu0 0.0
        %2653 = vmatprep.subr.mxu0 0.0
        %2654 = vmatpush1.xpose.msra.mxu0 0.0
        %2655 = vmatprep.subr.mxu0 0.0
        %2656 = vmatpush1.xpose.msra.mxu0 0.0
        %2657 = vmatprep.subr.mxu0 0.0
        %2658 = vmatpush1.xpose.msra.mxu0 0.0
        %2659 = vmatprep.subr.mxu0 0.0
        %2660 = vmatpush1.xpose.msra.mxu0 0.0
        %2661 = vmatprep.subr.mxu0 0.0
        %2662 = vmatpush1.xpose.msra.mxu0 0.0
        %2663 = vmatprep.subr.mxu0 0.0
        %2664 = vmatpush1.xpose.msra.mxu0 0.0
        %2665 = vmatprep.subr.mxu0 0.0
        %2666 = vmatpush1.xpose.msra.mxu0 0.0
        %2667 = vmatprep.subr.mxu0 0.0
        %2668 = vmatpush1.xpose.msra.mxu0 0.0
        %2669 = vmatprep.subr.mxu0 0.0
        %2670 = vmatpush1.xpose.msra.mxu0 0.0
        %2671 = vmatprep.subr.mxu0 0.0
        %2672 = vmatpush1.xpose.msra.mxu0 0.0
        %2673 = vmatprep.subr.mxu0 0.0
        %2674 = vmatpush1.xpose.msra.mxu0 0.0
        %2675 = vmatprep.subr.mxu0 0.0
        %2676 = vmatpush1.xpose.msra.mxu0 0.0
        %2677 = vmatprep.subr.mxu0 0.0
        %2678 = vmatpush1.xpose.msra.mxu0 0.0
        %2679 = vmatprep.subr.mxu0 0.0
        %2680 = vmatpush1.xpose.msra.mxu0 0.0
        %2681 = vmatprep.subr.mxu0 0.0
        %2682 = vmatpush1.xpose.msra.mxu0 0.0
        %2683 = vmatprep.subr.mxu0 0.0
        %2684 = vmatpush1.xpose.msra.mxu0 0.0
        %2685 = vmatprep.subr.mxu0 0.0
        %2686 = vmatpush1.xpose.msra.mxu0 0.0
        %2687 = vmatprep.subr.mxu0 0.0
        %2688 = vmatpush1.xpose.msra.mxu0 0.0
        %2689 = vmatprep.subr.mxu0 0.0
        %2690 = vmatpush1.xpose.msra.mxu0 0.0
        %2691 = vmatprep.subr.mxu0 0.0
        %2692 = vmatpush1.xpose.msra.mxu0 0.0
        %2693 = vmatprep.subr.mxu0 0.0
        %2694 = vmatpush1.xpose.msra.mxu0 0.0
        %2695 = vmatprep.subr.mxu0 0.0
        %2696 = vmatpush1.xpose.msra.mxu0 0.0
        %2697 = vmatprep.subr.mxu0 0.0
        %2698 = vmatpush1.xpose.msra.mxu0 0.0
        %2699 = vmatprep.subr.mxu0 0.0
        %2700 = vmatpush1.xpose.msra.mxu0 0.0
        %2701 = vmatprep.subr.mxu0 0.0
        %2702 = vmatpush1.xpose.msra.mxu0 0.0
        %2703 = vmatprep.subr.mxu0 0.0
        %2704 = vmatpush1.xpose.msra.mxu0 0.0
        %2705 = vmatprep.subr.mxu0 0.0
        %2706 = vmatpush1.xpose.msra.mxu0 0.0
        %2707 = vmatprep.subr.mxu0 0.0
        %2708 = vmatpush1.xpose.msra.mxu0 0.0
        %2709 = vmatprep.subr.mxu0 0.0
        %2710 = vmatpush1.xpose.msra.mxu0 0.0
        %2711 = vmatprep.mubr.f32.mxu0 0.0
        %2712 = vmatmul.mubr.f32.gmra.mrb[0].mxu0 %v2642
        %v2713 = vpop.f32.mrb[0].mxu0
        %v2714 = vadd.f32 0.0, %v2713
        %v2715 = vpop.f32.mrb[0].mxu0
        %2716 = vdwg.mxu0
        %v2717 = vmul.f32 %v2714, 0.125
        %v2718 = vsel %vm2061, %v2717, -inf
        %2719 = vmax.xlane.f32.xlu0 %v2718
        %v2720 = vpop.xlane.xlu0 %2719
        %v2721 = vsub.f32 %v2717, %v2720
        %v2722 = vmul.f32 %v2721, 1.442695
        %v2723 = vpow.pop %v2722
        %v2724 = vsel %vm2061, %v2723, 0.0
        %2725 = vadd.xlane.f32.xlu0 %v2724
        %v2726 = vpop.xlane.xlu0 %2725
        %v2727 = vrcp.pop %v2726
        %v2728 = vmul.f32 %v2723, %v2727
        %v2730 = vsel %vm2061, %v2728, 0
        %2732 = vmatprep.subr.mxu0 0.0
        %2733 = vmatpush1.msra.mxu0 %v1979
        %2734 = vmatprep.subr.mxu0 0.0
        %2735 = vmatpush1.msra.mxu0 0.0
        %2736 = vmatprep.subr.mxu0 0.0
        %2737 = vmatpush1.msra.mxu0 0.0
        %2738 = vmatprep.subr.mxu0 0.0
        %2739 = vmatpush1.msra.mxu0 0.0
        %2740 = vmatprep.subr.mxu0 0.0
        %2741 = vmatpush1.msra.mxu0 0.0
        %2742 = vmatprep.subr.mxu0 0.0
        %2743 = vmatpush1.msra.mxu0 0.0
        %2744 = vmatprep.subr.mxu0 0.0
        %2745 = vmatpush1.msra.mxu0 0.0
        %2746 = vmatprep.subr.mxu0 0.0
        %2747 = vmatpush1.msra.mxu0 0.0
        %2748 = vmatprep.subr.mxu0 0.0
        %2749 = vmatpush1.msra.mxu0 0.0
        %2750 = vmatprep.subr.mxu0 0.0
        %2751 = vmatpush1.msra.mxu0 0.0
        %2752 = vmatprep.subr.mxu0 0.0
        %2753 = vmatpush1.msra.mxu0 0.0
        %2754 = vmatprep.subr.mxu0 0.0
        %2755 = vmatpush1.msra.mxu0 0.0
        %2756 = vmatprep.subr.mxu0 0.0
        %2757 = vmatpush1.msra.mxu0 0.0
        %2758 = vmatprep.subr.mxu0 0.0
        %2759 = vmatpush1.msra.mxu0 0.0
        %2760 = vmatprep.subr.mxu0 0.0
        %2761 = vmatpush1.msra.mxu0 0.0
        %2762 = vmatprep.subr.mxu0 0.0
        %2763 = vmatpush1.msra.mxu0 0.0
        %2764 = vmatprep.subr.mxu0 0.0
        %2765 = vmatpush1.msra.mxu0 0.0
        %2766 = vmatprep.subr.mxu0 0.0
        %2767 = vmatpush1.msra.mxu0 0.0
        %2768 = vmatprep.subr.mxu0 0.0
        %2769 = vmatpush1.msra.mxu0 0.0
        %2770 = vmatprep.subr.mxu0 0.0
        %2771 = vmatpush1.msra.mxu0 0.0
        %2772 = vmatprep.subr.mxu0 0.0
        %2773 = vmatpush1.msra.mxu0 0.0
        %2774 = vmatprep.subr.mxu0 0.0
        %2775 = vmatpush1.msra.mxu0 0.0
        %2776 = vmatprep.subr.mxu0 0.0
        %2777 = vmatpush1.msra.mxu0 0.0
        %2778 = vmatprep.subr.mxu0 0.0
        %2779 = vmatpush1.msra.mxu0 0.0
        %2780 = vmatprep.subr.mxu0 0.0
        %2781 = vmatpush1.msra.mxu0 0.0
        %2782 = vmatprep.subr.mxu0 0.0
        %2783 = vmatpush1.msra.mxu0 0.0
        %2784 = vmatprep.subr.mxu0 0.0
        %2785 = vmatpush1.msra.mxu0 0.0
        %2786 = vmatprep.subr.mxu0 0.0
        %2787 = vmatpush1.msra.mxu0 0.0
        %2788 = vmatprep.subr.mxu0 0.0
        %2789 = vmatpush1.msra.mxu0 0.0
        %2790 = vmatprep.subr.mxu0 0.0
        %2791 = vmatpush1.msra.mxu0 0.0
        %2792 = vmatprep.subr.mxu0 0.0
        %2793 = vmatpush1.msra.mxu0 0.0
        %2794 = vmatprep.subr.mxu0 0.0
        %2795 = vmatpush1.msra.mxu0 0.0
        %2796 = vmatprep.mubr.f32.mxu0 0.0
        %2797 = vmatmul.mubr.f32.gmra.mrb[0].mxu0 %v2730
        %v2798 = vpop.f32.mrb[0].mxu0
        %v2799 = vadd.f32 0.0, %v2798
        %v2800 = vpop.f32.mrb[0].mxu0
        %2801 = vdwg.mxu0
        %2802 = vrot.lane.b32.xlu0 %v1411, 64
        %v2803 = vpop.permute.xlu0 %2802
        %2804 = vrot.lane.b32.xlu0 %v1695, 64
        %v2805 = vpop.permute.xlu0 %2804
        %v2806 = vsel %vm1983, %v2803, 0
        %v2808 = vsel %vm1983, %v2805, 0
        %2810 = vmatprep.subr.mxu0 0.0
        %2811 = vmatpush1.xpose.msra.mxu0 %v2808
        %2812 = vmatprep.subr.mxu0 0.0
        %2813 = vmatpush1.xpose.msra.mxu0 0.0
        %2814 = vmatprep.subr.mxu0 0.0
        %2815 = vmatpush1.xpose.msra.mxu0 0.0
        %2816 = vmatprep.subr.mxu0 0.0
        %2817 = vmatpush1.xpose.msra.mxu0 0.0
        %2818 = vmatprep.subr.mxu0 0.0
        %2819 = vmatpush1.xpose.msra.mxu0 0.0
        %2820 = vmatprep.subr.mxu0 0.0
        %2821 = vmatpush1.xpose.msra.mxu0 0.0
        %2822 = vmatprep.subr.mxu0 0.0
        %2823 = vmatpush1.xpose.msra.mxu0 0.0
        %2824 = vmatprep.subr.mxu0 0.0
        %2825 = vmatpush1.xpose.msra.mxu0 0.0
        %2826 = vmatprep.subr.mxu0 0.0
        %2827 = vmatpush1.xpose.msra.mxu0 0.0
        %2828 = vmatprep.subr.mxu0 0.0
        %2829 = vmatpush1.xpose.msra.mxu0 0.0
        %2830 = vmatprep.subr.mxu0 0.0
        %2831 = vmatpush1.xpose.msra.mxu0 0.0
        %2832 = vmatprep.subr.mxu0 0.0
        %2833 = vmatpush1.xpose.msra.mxu0 0.0
        %2834 = vmatprep.subr.mxu0 0.0
        %2835 = vmatpush1.xpose.msra.mxu0 0.0
        %2836 = vmatprep.subr.mxu0 0.0
        %2837 = vmatpush1.xpose.msra.mxu0 0.0
        %2838 = vmatprep.subr.mxu0 0.0
        %2839 = vmatpush1.xpose.msra.mxu0 0.0
        %2840 = vmatprep.subr.mxu0 0.0
        %2841 = vmatpush1.xpose.msra.mxu0 0.0
        %2842 = vmatprep.subr.mxu0 0.0
        %2843 = vmatpush1.xpose.msra.mxu0 0.0
        %2844 = vmatprep.subr.mxu0 0.0
        %2845 = vmatpush1.xpose.msra.mxu0 0.0
        %2846 = vmatprep.subr.mxu0 0.0
        %2847 = vmatpush1.xpose.msra.mxu0 0.0
        %2848 = vmatprep.subr.mxu0 0.0
        %2849 = vmatpush1.xpose.msra.mxu0 0.0
        %2850 = vmatprep.subr.mxu0 0.0
        %2851 = vmatpush1.xpose.msra.mxu0 0.0
        %2852 = vmatprep.subr.mxu0 0.0
        %2853 = vmatpush1.xpose.msra.mxu0 0.0
        %2854 = vmatprep.subr.mxu0 0.0
        %2855 = vmatpush1.xpose.msra.mxu0 0.0
        %2856 = vmatprep.subr.mxu0 0.0
        %2857 = vmatpush1.xpose.msra.mxu0 0.0
        %2858 = vmatprep.subr.mxu0 0.0
        %2859 = vmatpush1.xpose.msra.mxu0 0.0
        %2860 = vmatprep.subr.mxu0 0.0
        %2861 = vmatpush1.xpose.msra.mxu0 0.0
        %2862 = vmatprep.subr.mxu0 0.0
        %2863 = vmatpush1.xpose.msra.mxu0 0.0
        %2864 = vmatprep.subr.mxu0 0.0
        %2865 = vmatpush1.xpose.msra.mxu0 0.0
        %2866 = vmatprep.subr.mxu0 0.0
        %2867 = vmatpush1.xpose.msra.mxu0 0.0
        %2868 = vmatprep.subr.mxu0 0.0
        %2869 = vmatpush1.xpose.msra.mxu0 0.0
        %2870 = vmatprep.subr.mxu0 0.0
        %2871 = vmatpush1.xpose.msra.mxu0 0.0
        %2872 = vmatprep.subr.mxu0 0.0
        %2873 = vmatpush1.xpose.msra.mxu0 0.0
        %2874 = vmatprep.mubr.f32.mxu0 0.0
        %2875 = vmatmul.mubr.f32.gmra.mrb[0].mxu0 %v2806
        %v2876 = vpop.f32.mrb[0].mxu0
        %v2877 = vadd.f32 0.0, %v2876
        %v2878 = vpop.f32.mrb[0].mxu0
        %2879 = vdwg.mxu0
        %v2880 = vmul.f32 %v2877, 0.125
        %v2881 = vsel %vm2061, %v2880, -inf
        %2882 = vmax.xlane.f32.xlu0 %v2881
        %v2883 = vpop.xlane.xlu0 %2882
        %v2884 = vsub.f32 %v2880, %v2883
        %v2885 = vmul.f32 %v2884, 1.442695
        %v2886 = vpow.pop %v2885
        %v2887 = vsel %vm2061, %v2886, 0.0
        %2888 = vadd.xlane.f32.xlu0 %v2887
        %v2889 = vpop.xlane.xlu0 %2888
        %v2890 = vrcp.pop %v2889
        %v2891 = vmul.f32 %v2886, %v2890
        %2893 = vrot.lane.b32.xlu0 %v1979, 64
        %v2894 = vpop.permute.xlu0 %2893
        %v2897 = vsel %vm2061, %v2891, 0
        %2899 = vmatprep.subr.mxu0 0.0
        %2900 = vmatpush1.msra.mxu0 %v2894
        %2901 = vmatprep.subr.mxu0 0.0
        %2902 = vmatpush1.msra.mxu0 0.0
        %2903 = vmatprep.subr.mxu0 0.0
        %2904 = vmatpush1.msra.mxu0 0.0
        %2905 = vmatprep.subr.mxu0 0.0
        %2906 = vmatpush1.msra.mxu0 0.0
        %2907 = vmatprep.subr.mxu0 0.0
        %2908 = vmatpush1.msra.mxu0 0.0
        %2909 = vmatprep.subr.mxu0 0.0
        %2910 = vmatpush1.msra.mxu0 0.0
        %2911 = vmatprep.subr.mxu0 0.0
        %2912 = vmatpush1.msra.mxu0 0.0
        %2913 = vmatprep.subr.mxu0 0.0
        %2914 = vmatpush1.msra.mxu0 0.0
        %2915 = vmatprep.subr.mxu0 0.0
        %2916 = vmatpush1.msra.mxu0 0.0
        %2917 = vmatprep.subr.mxu0 0.0
        %2918 = vmatpush1.msra.mxu0 0.0
        %2919 = vmatprep.subr.mxu0 0.0
        %2920 = vmatpush1.msra.mxu0 0.0
        %2921 = vmatprep.subr.mxu0 0.0
        %2922 = vmatpush1.msra.mxu0 0.0
        %2923 = vmatprep.subr.mxu0 0.0
        %2924 = vmatpush1.msra.mxu0 0.0
        %2925 = vmatprep.subr.mxu0 0.0
        %2926 = vmatpush1.msra.mxu0 0.0
        %2927 = vmatprep.subr.mxu0 0.0
        %2928 = vmatpush1.msra.mxu0 0.0
        %2929 = vmatprep.subr.mxu0 0.0
        %2930 = vmatpush1.msra.mxu0 0.0
        %2931 = vmatprep.subr.mxu0 0.0
        %2932 = vmatpush1.msra.mxu0 0.0
        %2933 = vmatprep.subr.mxu0 0.0
        %2934 = vmatpush1.msra.mxu0 0.0
        %2935 = vmatprep.subr.mxu0 0.0
        %2936 = vmatpush1.msra.mxu0 0.0
        %2937 = vmatprep.subr.mxu0 0.0
        %2938 = vmatpush1.msra.mxu0 0.0
        %2939 = vmatprep.subr.mxu0 0.0
        %2940 = vmatpush1.msra.mxu0 0.0
        %2941 = vmatprep.subr.mxu0 0.0
        %2942 = vmatpush1.msra.mxu0 0.0
        %2943 = vmatprep.subr.mxu0 0.0
        %2944 = vmatpush1.msra.mxu0 0.0
        %2945 = vmatprep.subr.mxu0 0.0
        %2946 = vmatpush1.msra.mxu0 0.0
        %2947 = vmatprep.subr.mxu0 0.0
        %2948 = vmatpush1.msra.mxu0 0.0
        %2949 = vmatprep.subr.mxu0 0.0
        %2950 = vmatpush1.msra.mxu0 0.0
        %2951 = vmatprep.subr.mxu0 0.0
        %2952 = vmatpush1.msra.mxu0 0.0
        %2953 = vmatprep.subr.mxu0 0.0
        %2954 = vmatpush1.msra.mxu0 0.0
        %2955 = vmatprep.subr.mxu0 0.0
        %2956 = vmatpush1.msra.mxu0 0.0
        %2957 = vmatprep.subr.mxu0 0.0
        %2958 = vmatpush1.msra.mxu0 0.0
        %2959 = vmatprep.subr.mxu0 0.0
        %2960 = vmatpush1.msra.mxu0 0.0
        %2961 = vmatprep.subr.mxu0 0.0
        %2962 = vmatpush1.msra.mxu0 0.0
        %2963 = vmatprep.mubr.f32.mxu0 0.0
        %2964 = vmatmul.mubr.f32.gmra.mrb[0].mxu0 %v2897
        %v2965 = vpop.f32.mrb[0].mxu0
        %v2966 = vadd.f32 0.0, %v2965
        %v2967 = vpop.f32.mrb[0].mxu0
        %2968 = vdwg.mxu0
        %v2970 = vsel %vm1983, %v1413, 0
        %v2973 = vsel %vm1983, %v1697, 0
        %2975 = vmatprep.subr.mxu0 0.0
        %2976 = vmatpush1.xpose.msra.mxu0 %v2973
        %2977 = vmatprep.subr.mxu0 0.0
        %2978 = vmatpush1.xpose.msra.mxu0 0.0
        %2979 = vmatprep.subr.mxu0 0.0
        %2980 = vmatpush1.xpose.msra.mxu0 0.0
        %2981 = vmatprep.subr.mxu0 0.0
        %2982 = vmatpush1.xpose.msra.mxu0 0.0
        %2983 = vmatprep.subr.mxu0 0.0
        %2984 = vmatpush1.xpose.msra.mxu0 0.0
        %2985 = vmatprep.subr.mxu0 0.0
        %2986 = vmatpush1.xpose.msra.mxu0 0.0
        %2987 = vmatprep.subr.mxu0 0.0
        %2988 = vmatpush1.xpose.msra.mxu0 0.0
        %2989 = vmatprep.subr.mxu0 0.0
        %2990 = vmatpush1.xpose.msra.mxu0 0.0
        %2991 = vmatprep.subr.mxu0 0.0
        %2992 = vmatpush1.xpose.msra.mxu0 0.0
        %2993 = vmatprep.subr.mxu0 0.0
        %2994 = vmatpush1.xpose.msra.mxu0 0.0
        %2995 = vmatprep.subr.mxu0 0.0
        %2996 = vmatpush1.xpose.msra.mxu0 0.0
        %2997 = vmatprep.subr.mxu0 0.0
        %2998 = vmatpush1.xpose.msra.mxu0 0.0
        %2999 = vmatprep.subr.mxu0 0.0
        %3000 = vmatpush1.xpose.msra.mxu0 0.0
        %3001 = vmatprep.subr.mxu0 0.0
        %3002 = vmatpush1.xpose.msra.mxu0 0.0
        %3003 = vmatprep.subr.mxu0 0.0
        %3004 = vmatpush1.xpose.msra.mxu0 0.0
        %3005 = vmatprep.subr.mxu0 0.0
        %3006 = vmatpush1.xpose.msra.mxu0 0.0
        %3007 = vmatprep.subr.mxu0 0.0
        %3008 = vmatpush1.xpose.msra.mxu0 0.0
        %3009 = vmatprep.subr.mxu0 0.0
        %3010 = vmatpush1.xpose.msra.mxu0 0.0
        %3011 = vmatprep.subr.mxu0 0.0
        %3012 = vmatpush1.xpose.msra.mxu0 0.0
        %3013 = vmatprep.subr.mxu0 0.0
        %3014 = vmatpush1.xpose.msra.mxu0 0.0
        %3015 = vmatprep.subr.mxu0 0.0
        %3016 = vmatpush1.xpose.msra.mxu0 0.0
        %3017 = vmatprep.subr.mxu0 0.0
        %3018 = vmatpush1.xpose.msra.mxu0 0.0
        %3019 = vmatprep.subr.mxu0 0.0
        %3020 = vmatpush1.xpose.msra.mxu0 0.0
        %3021 = vmatprep.subr.mxu0 0.0
        %3022 = vmatpush1.xpose.msra.mxu0 0.0
        %3023 = vmatprep.subr.mxu0 0.0
        %3024 = vmatpush1.xpose.msra.mxu0 0.0
        %3025 = vmatprep.subr.mxu0 0.0
        %3026 = vmatpush1.xpose.msra.mxu0 0.0
        %3027 = vmatprep.subr.mxu0 0.0
        %3028 = vmatpush1.xpose.msra.mxu0 0.0
        %3029 = vmatprep.subr.mxu0 0.0
        %3030 = vmatpush1.xpose.msra.mxu0 0.0
        %3031 = vmatprep.subr.mxu0 0.0
        %3032 = vmatpush1.xpose.msra.mxu0 0.0
        %3033 = vmatprep.subr.mxu0 0.0
        %3034 = vmatpush1.xpose.msra.mxu0 0.0
        %3035 = vmatprep.subr.mxu0 0.0
        %3036 = vmatpush1.xpose.msra.mxu0 0.0
        %3037 = vmatprep.subr.mxu0 0.0
        %3038 = vmatpush1.xpose.msra.mxu0 0.0
        %3039 = vmatprep.mubr.f32.mxu0 0.0
        %3040 = vmatmul.mubr.f32.gmra.mrb[0].mxu0 %v2970
        %v3041 = vpop.f32.mrb[0].mxu0
        %v3042 = vadd.f32 0.0, %v3041
        %v3043 = vpop.f32.mrb[0].mxu0
        %3044 = vdwg.mxu0
        %v3045 = vmul.f32 %v3042, 0.125
        %v3046 = vsel %vm2061, %v3045, -inf
        %3047 = vmax.xlane.f32.xlu0 %v3046
        %v3048 = vpop.xlane.xlu0 %3047
        %v3049 = vsub.f32 %v3045, %v3048
        %v3050 = vmul.f32 %v3049, 1.442695
        %v3051 = vpow.pop %v3050
        %v3052 = vsel %vm2061, %v3051, 0.0
        %3053 = vadd.xlane.f32.xlu0 %v3052
        %v3054 = vpop.xlane.xlu0 %3053
        %v3055 = vrcp.pop %v3054
        %v3056 = vmul.f32 %v3051, %v3055
        %v3058 = vsel %vm2061, %v3056, 0
        %3060 = vmatprep.subr.mxu0 0.0
        %3061 = vmatpush1.msra.mxu0 %v1981
        %3062 = vmatprep.subr.mxu0 0.0
        %3063 = vmatpush1.msra.mxu0 0.0
        %3064 = vmatprep.subr.mxu0 0.0
        %3065 = vmatpush1.msra.mxu0 0.0
        %3066 = vmatprep.subr.mxu0 0.0
        %3067 = vmatpush1.msra.mxu0 0.0
        %3068 = vmatprep.subr.mxu0 0.0
        %3069 = vmatpush1.msra.mxu0 0.0
        %3070 = vmatprep.subr.mxu0 0.0
        %3071 = vmatpush1.msra.mxu0 0.0
        %3072 = vmatprep.subr.mxu0 0.0
        %3073 = vmatpush1.msra.mxu0 0.0
        %3074 = vmatprep.subr.mxu0 0.0
        %3075 = vmatpush1.msra.mxu0 0.0
        %3076 = vmatprep.subr.mxu0 0.0
        %3077 = vmatpush1.msra.mxu0 0.0
        %3078 = vmatprep.subr.mxu0 0.0
        %3079 = vmatpush1.msra.mxu0 0.0
        %3080 = vmatprep.subr.mxu0 0.0
        %3081 = vmatpush1.msra.mxu0 0.0
        %3082 = vmatprep.subr.mxu0 0.0
        %3083 = vmatpush1.msra.mxu0 0.0
        %3084 = vmatprep.subr.mxu0 0.0
        %3085 = vmatpush1.msra.mxu0 0.0
        %3086 = vmatprep.subr.mxu0 0.0
        %3087 = vmatpush1.msra.mxu0 0.0
        %3088 = vmatprep.subr.mxu0 0.0
        %3089 = vmatpush1.msra.mxu0 0.0
        %3090 = vmatprep.subr.mxu0 0.0
        %3091 = vmatpush1.msra.mxu0 0.0
        %3092 = vmatprep.subr.mxu0 0.0
        %3093 = vmatpush1.msra.mxu0 0.0
        %3094 = vmatprep.subr.mxu0 0.0
        %3095 = vmatpush1.msra.mxu0 0.0
        %3096 = vmatprep.subr.mxu0 0.0
        %3097 = vmatpush1.msra.mxu0 0.0
        %3098 = vmatprep.subr.mxu0 0.0
        %3099 = vmatpush1.msra.mxu0 0.0
        %3100 = vmatprep.subr.mxu0 0.0
        %3101 = vmatpush1.msra.mxu0 0.0
        %3102 = vmatprep.subr.mxu0 0.0
        %3103 = vmatpush1.msra.mxu0 0.0
        %3104 = vmatprep.subr.mxu0 0.0
        %3105 = vmatpush1.msra.mxu0 0.0
        %3106 = vmatprep.subr.mxu0 0.0
        %3107 = vmatpush1.msra.mxu0 0.0
        %3108 = vmatprep.subr.mxu0 0.0
        %3109 = vmatpush1.msra.mxu0 0.0
        %3110 = vmatprep.subr.mxu0 0.0
        %3111 = vmatpush1.msra.mxu0 0.0
        %3112 = vmatprep.subr.mxu0 0.0
        %3113 = vmatpush1.msra.mxu0 0.0
        %3114 = vmatprep.subr.mxu0 0.0
        %3115 = vmatpush1.msra.mxu0 0.0
        %3116 = vmatprep.subr.mxu0 0.0
        %3117 = vmatpush1.msra.mxu0 0.0
        %3118 = vmatprep.subr.mxu0 0.0
        %3119 = vmatpush1.msra.mxu0 0.0
        %3120 = vmatprep.subr.mxu0 0.0
        %3121 = vmatpush1.msra.mxu0 0.0
        %3122 = vmatprep.subr.mxu0 0.0
        %3123 = vmatpush1.msra.mxu0 0.0
        %3124 = vmatprep.mubr.f32.mxu0 0.0
        %3125 = vmatmul.mubr.f32.gmra.mrb[0].mxu0 %v3058
        %v3126 = vpop.f32.mrb[0].mxu0
        %v3127 = vadd.f32 0.0, %v3126
        %v3128 = vpop.f32.mrb[0].mxu0
        %3129 = vdwg.mxu0
        %3130 = vrot.lane.b32.xlu0 %v1413, 64
        %v3131 = vpop.permute.xlu0 %3130
        %3132 = vrot.lane.b32.xlu0 %v1697, 64
        %v3133 = vpop.permute.xlu0 %3132
        %v3134 = vsel %vm1983, %v3131, 0
        %v3136 = vsel %vm1983, %v3133, 0
        %3138 = vmatprep.subr.mxu0 0.0
        %3139 = vmatpush1.xpose.msra.mxu0 %v3136
        %3140 = vmatprep.subr.mxu0 0.0
        %3141 = vmatpush1.xpose.msra.mxu0 0.0
        %3142 = vmatprep.subr.mxu0 0.0
        %3143 = vmatpush1.xpose.msra.mxu0 0.0
        %3144 = vmatprep.subr.mxu0 0.0
        %3145 = vmatpush1.xpose.msra.mxu0 0.0
        %3146 = vmatprep.subr.mxu0 0.0
        %3147 = vmatpush1.xpose.msra.mxu0 0.0
        %3148 = vmatprep.subr.mxu0 0.0
        %3149 = vmatpush1.xpose.msra.mxu0 0.0
        %3150 = vmatprep.subr.mxu0 0.0
        %3151 = vmatpush1.xpose.msra.mxu0 0.0
        %3152 = vmatprep.subr.mxu0 0.0
        %3153 = vmatpush1.xpose.msra.mxu0 0.0
        %3154 = vmatprep.subr.mxu0 0.0
        %3155 = vmatpush1.xpose.msra.mxu0 0.0
        %3156 = vmatprep.subr.mxu0 0.0
        %3157 = vmatpush1.xpose.msra.mxu0 0.0
        %3158 = vmatprep.subr.mxu0 0.0
        %3159 = vmatpush1.xpose.msra.mxu0 0.0
        %3160 = vmatprep.subr.mxu0 0.0
        %3161 = vmatpush1.xpose.msra.mxu0 0.0
        %3162 = vmatprep.subr.mxu0 0.0
        %3163 = vmatpush1.xpose.msra.mxu0 0.0
        %3164 = vmatprep.subr.mxu0 0.0
        %3165 = vmatpush1.xpose.msra.mxu0 0.0
        %3166 = vmatprep.subr.mxu0 0.0
        %3167 = vmatpush1.xpose.msra.mxu0 0.0
        %3168 = vmatprep.subr.mxu0 0.0
        %3169 = vmatpush1.xpose.msra.mxu0 0.0
        %3170 = vmatprep.subr.mxu0 0.0
        %3171 = vmatpush1.xpose.msra.mxu0 0.0
        %3172 = vmatprep.subr.mxu0 0.0
        %3173 = vmatpush1.xpose.msra.mxu0 0.0
        %3174 = vmatprep.subr.mxu0 0.0
        %3175 = vmatpush1.xpose.msra.mxu0 0.0
        %3176 = vmatprep.subr.mxu0 0.0
        %3177 = vmatpush1.xpose.msra.mxu0 0.0
        %3178 = vmatprep.subr.mxu0 0.0
        %3179 = vmatpush1.xpose.msra.mxu0 0.0
        %3180 = vmatprep.subr.mxu0 0.0
        %3181 = vmatpush1.xpose.msra.mxu0 0.0
        %3182 = vmatprep.subr.mxu0 0.0
        %3183 = vmatpush1.xpose.msra.mxu0 0.0
        %3184 = vmatprep.subr.mxu0 0.0
        %3185 = vmatpush1.xpose.msra.mxu0 0.0
        %3186 = vmatprep.subr.mxu0 0.0
        %3187 = vmatpush1.xpose.msra.mxu0 0.0
        %3188 = vmatprep.subr.mxu0 0.0
        %3189 = vmatpush1.xpose.msra.mxu0 0.0
        %3190 = vmatprep.subr.mxu0 0.0
        %3191 = vmatpush1.xpose.msra.mxu0 0.0
        %3192 = vmatprep.subr.mxu0 0.0
        %3193 = vmatpush1.xpose.msra.mxu0 0.0
        %3194 = vmatprep.subr.mxu0 0.0
        %3195 = vmatpush1.xpose.msra.mxu0 0.0
        %3196 = vmatprep.subr.mxu0 0.0
        %3197 = vmatpush1.xpose.msra.mxu0 0.0
        %3198 = vmatprep.subr.mxu0 0.0
        %3199 = vmatpush1.xpose.msra.mxu0 0.0
        %3200 = vmatprep.subr.mxu0 0.0
        %3201 = vmatpush1.xpose.msra.mxu0 0.0
        %3202 = vmatprep.mubr.f32.mxu0 0.0
        %3203 = vmatmul.mubr.f32.gmra.mrb[0].mxu0 %v3134
        %v3204 = vpop.f32.mrb[0].mxu0
        %v3205 = vadd.f32 0.0, %v3204
        %v3206 = vpop.f32.mrb[0].mxu0
        %3207 = vdwg.mxu0
        %v3208 = vmul.f32 %v3205, 0.125
        %v3209 = vsel %vm2061, %v3208, -inf
        %3210 = vmax.xlane.f32.xlu0 %v3209
        %v3211 = vpop.xlane.xlu0 %3210
        %v3212 = vsub.f32 %v3208, %v3211
        %v3213 = vmul.f32 %v3212, 1.442695
        %v3214 = vpow.pop %v3213
        %v3215 = vsel %vm2061, %v3214, 0.0
        %3216 = vadd.xlane.f32.xlu0 %v3215
        %v3217 = vpop.xlane.xlu0 %3216
        %v3218 = vrcp.pop %v3217
        %v3219 = vmul.f32 %v3214, %v3218
        %3221 = vrot.lane.b32.xlu0 %v1981, 64
        %v3222 = vpop.permute.xlu0 %3221
        %v3225 = vsel %vm2061, %v3219, 0
        %3227 = vmatprep.subr.mxu0 0.0
        %3228 = vmatpush1.msra.mxu0 %v3222
        %3229 = vmatprep.subr.mxu0 0.0
        %3230 = vmatpush1.msra.mxu0 0.0
        %3231 = vmatprep.subr.mxu0 0.0
        %3232 = vmatpush1.msra.mxu0 0.0
        %3233 = vmatprep.subr.mxu0 0.0
        %3234 = vmatpush1.msra.mxu0 0.0
        %3235 = vmatprep.subr.mxu0 0.0
        %3236 = vmatpush1.msra.mxu0 0.0
        %3237 = vmatprep.subr.mxu0 0.0
        %3238 = vmatpush1.msra.mxu0 0.0
        %3239 = vmatprep.subr.mxu0 0.0
        %3240 = vmatpush1.msra.mxu0 0.0
        %3241 = vmatprep.subr.mxu0 0.0
        %3242 = vmatpush1.msra.mxu0 0.0
        %3243 = vmatprep.subr.mxu0 0.0
        %3244 = vmatpush1.msra.mxu0 0.0
        %3245 = vmatprep.subr.mxu0 0.0
        %3246 = vmatpush1.msra.mxu0 0.0
        %3247 = vmatprep.subr.mxu0 0.0
        %3248 = vmatpush1.msra.mxu0 0.0
        %3249 = vmatprep.subr.mxu0 0.0
        %3250 = vmatpush1.msra.mxu0 0.0
        %3251 = vmatprep.subr.mxu0 0.0
        %3252 = vmatpush1.msra.mxu0 0.0
        %3253 = vmatprep.subr.mxu0 0.0
        %3254 = vmatpush1.msra.mxu0 0.0
        %3255 = vmatprep.subr.mxu0 0.0
        %3256 = vmatpush1.msra.mxu0 0.0
        %3257 = vmatprep.subr.mxu0 0.0
        %3258 = vmatpush1.msra.mxu0 0.0
        %3259 = vmatprep.subr.mxu0 0.0
        %3260 = vmatpush1.msra.mxu0 0.0
        %3261 = vmatprep.subr.mxu0 0.0
        %3262 = vmatpush1.msra.mxu0 0.0
        %3263 = vmatprep.subr.mxu0 0.0
        %3264 = vmatpush1.msra.mxu0 0.0
        %3265 = vmatprep.subr.mxu0 0.0
        %3266 = vmatpush1.msra.mxu0 0.0
        %3267 = vmatprep.subr.mxu0 0.0
        %3268 = vmatpush1.msra.mxu0 0.0
        %3269 = vmatprep.subr.mxu0 0.0
        %3270 = vmatpush1.msra.mxu0 0.0
        %3271 = vmatprep.subr.mxu0 0.0
        %3272 = vmatpush1.msra.mxu0 0.0
        %3273 = vmatprep.subr.mxu0 0.0
        %3274 = vmatpush1.msra.mxu0 0.0
        %3275 = vmatprep.subr.mxu0 0.0
        %3276 = vmatpush1.msra.mxu0 0.0
        %3277 = vmatprep.subr.mxu0 0.0
        %3278 = vmatpush1.msra.mxu0 0.0
        %3279 = vmatprep.subr.mxu0 0.0
        %3280 = vmatpush1.msra.mxu0 0.0
        %3281 = vmatprep.subr.mxu0 0.0
        %3282 = vmatpush1.msra.mxu0 0.0
        %3283 = vmatprep.subr.mxu0 0.0
        %3284 = vmatpush1.msra.mxu0 0.0
        %3285 = vmatprep.subr.mxu0 0.0
        %3286 = vmatpush1.msra.mxu0 0.0
        %3287 = vmatprep.subr.mxu0 0.0
        %3288 = vmatpush1.msra.mxu0 0.0
        %3289 = vmatprep.subr.mxu0 0.0
        %3290 = vmatpush1.msra.mxu0 0.0
        %3291 = vmatprep.mubr.f32.mxu0 0.0
        %3292 = vmatmul.mubr.f32.gmra.mrb[0].mxu0 %v3225
        %v3293 = vpop.f32.mrb[0].mxu0
        %v3294 = vadd.f32 0.0, %v3293
        %v3295 = vpop.f32.mrb[0].mxu0
        %3296 = vdwg.mxu0
        %3298 = vrot.lane.b32.xlu0 %v2310, 64
        %v3299 = vpop.permute.xlu0 %3298
        %3302 = vrot.lane.b32.xlu0 %v2638, 64
        %v3303 = vpop.permute.xlu0 %3302
        %3306 = vrot.lane.b32.xlu0 %v2966, 64
        %v3307 = vpop.permute.xlu0 %3306
        %3310 = vrot.lane.b32.xlu0 %v3294, 64
        %v3311 = vpop.permute.xlu0 %3310
        %v3313 = vsel %vm1983, %v2143, %v3299
        %v3314 = vsel %vm1983, %v2471, %v3303
        %v3315 = vsel %vm1983, %v2799, %v3307
        %v3316 = vsel %vm1983, %v3127, %v3311
        %v3317 = vld [vmem:[#allocation8] sm:$0xff]
        %v3318 = vld [vmem:[#allocation8 + $0x8] sm:$0xff]
        %v3319 = vld [vmem:[#allocation8 + $0x10] sm:$0xff]
        %v3320 = vld [vmem:[#allocation8 + $0x18] sm:$0xff]
        %v3321 = vld [vmem:[#allocation8 + $0x20] sm:$0xff]
        %v3322 = vld [vmem:[#allocation8 + $0x28] sm:$0xff]
        %v3323 = vld [vmem:[#allocation8 + $0x30] sm:$0xff]
        %v3324 = vld [vmem:[#allocation8 + $0x38] sm:$0xff]
        %v3325 = vld [vmem:[#allocation8 + $0x40] sm:$0xff]
        %v3326 = vld [vmem:[#allocation8 + $0x48] sm:$0xff]
        %v3327 = vld [vmem:[#allocation8 + $0x50] sm:$0xff]
        %v3328 = vld [vmem:[#allocation8 + $0x58] sm:$0xff]
        %v3329 = vld [vmem:[#allocation8 + $0x60] sm:$0xff]
        %v3330 = vld [vmem:[#allocation8 + $0x68] sm:$0xff]
        %v3331 = vld [vmem:[#allocation8 + $0x70] sm:$0xff]
        %v3332 = vld [vmem:[#allocation8 + $0x78] sm:$0xff]
        %v3333 = vld [vmem:[#allocation8 + $0x80] sm:$0xff]
        %v3334 = vld [vmem:[#allocation8 + $0x88] sm:$0xff]
        %v3335 = vld [vmem:[#allocation8 + $0x90] sm:$0xff]
        %v3336 = vld [vmem:[#allocation8 + $0x98] sm:$0xff]
        %v3337 = vld [vmem:[#allocation8 + $0xa0] sm:$0xff]
        %v3338 = vld [vmem:[#allocation8 + $0xa8] sm:$0xff]
        %v3339 = vld [vmem:[#allocation8 + $0xb0] sm:$0xff]
        %v3340 = vld [vmem:[#allocation8 + $0xb8] sm:$0xff]
        %v3341 = vld [vmem:[#allocation8 + $0xc0] sm:$0xff]
        %v3342 = vld [vmem:[#allocation8 + $0xc8] sm:$0xff]
        %v3343 = vld [vmem:[#allocation8 + $0xd0] sm:$0xff]
        %v3344 = vld [vmem:[#allocation8 + $0xd8] sm:$0xff]
        %v3345 = vld [vmem:[#allocation8 + $0xe0] sm:$0xff]
        %v3346 = vld [vmem:[#allocation8 + $0xe8] sm:$0xff]
        %v3347 = vld [vmem:[#allocation8 + $0xf0] sm:$0xff]
        %v3348 = vld [vmem:[#allocation8 + $0xf8] sm:$0xff]
        %v3349 = vld [vmem:[#allocation8 + $0x100] sm:$0xff]
        %v3350 = vld [vmem:[#allocation8 + $0x108] sm:$0xff]
        %v3351 = vld [vmem:[#allocation8 + $0x110] sm:$0xff]
        %v3352 = vld [vmem:[#allocation8 + $0x118] sm:$0xff]
        %v3353 = vld [vmem:[#allocation8 + $0x120] sm:$0xff]
        %v3354 = vld [vmem:[#allocation8 + $0x128] sm:$0xff]
        %v3355 = vld [vmem:[#allocation8 + $0x130] sm:$0xff]
        %v3356 = vld [vmem:[#allocation8 + $0x138] sm:$0xff]
        %v3357 = vld [vmem:[#allocation8 + $0x140] sm:$0xff]
        %v3358 = vld [vmem:[#allocation8 + $0x148] sm:$0xff]
        %v3359 = vld [vmem:[#allocation8 + $0x150] sm:$0xff]
        %v3360 = vld [vmem:[#allocation8 + $0x158] sm:$0xff]
        %v3361 = vld [vmem:[#allocation8 + $0x160] sm:$0xff]
        %v3362 = vld [vmem:[#allocation8 + $0x168] sm:$0xff]
        %v3363 = vld [vmem:[#allocation8 + $0x170] sm:$0xff]
        %v3364 = vld [vmem:[#allocation8 + $0x178] sm:$0xff]
        %v3365 = vld [vmem:[#allocation8 + $0x180] sm:$0xff]
        %v3366 = vld [vmem:[#allocation8 + $0x188] sm:$0xff]
        %v3367 = vld [vmem:[#allocation8 + $0x190] sm:$0xff]
        %v3368 = vld [vmem:[#allocation8 + $0x198] sm:$0xff]
        %v3369 = vld [vmem:[#allocation8 + $0x1a0] sm:$0xff]
        %v3370 = vld [vmem:[#allocation8 + $0x1a8] sm:$0xff]
        %v3371 = vld [vmem:[#allocation8 + $0x1b0] sm:$0xff]
        %v3372 = vld [vmem:[#allocation8 + $0x1b8] sm:$0xff]
        %v3373 = vld [vmem:[#allocation8 + $0x1c0] sm:$0xff]
        %v3374 = vld [vmem:[#allocation8 + $0x1c8] sm:$0xff]
        %v3375 = vld [vmem:[#allocation8 + $0x1d0] sm:$0xff]
        %v3376 = vld [vmem:[#allocation8 + $0x1d8] sm:$0xff]
        %v3377 = vld [vmem:[#allocation8 + $0x1e0] sm:$0xff]
        %v3378 = vld [vmem:[#allocation8 + $0x1e8] sm:$0xff]
        %v3379 = vld [vmem:[#allocation8 + $0x1f0] sm:$0xff]
        %v3380 = vld [vmem:[#allocation8 + $0x1f8] sm:$0xff]
        %v3381 = vld [vmem:[#allocation8 + $0x200] sm:$0xff]
        %v3382 = vld [vmem:[#allocation8 + $0x208] sm:$0xff]
        %v3383 = vld [vmem:[#allocation8 + $0x210] sm:$0xff]
        %v3384 = vld [vmem:[#allocation8 + $0x218] sm:$0xff]
        %v3385 = vld [vmem:[#allocation8 + $0x220] sm:$0xff]
        %v3386 = vld [vmem:[#allocation8 + $0x228] sm:$0xff]
        %v3387 = vld [vmem:[#allocation8 + $0x230] sm:$0xff]
        %v3388 = vld [vmem:[#allocation8 + $0x238] sm:$0xff]
        %v3389 = vld [vmem:[#allocation8 + $0x240] sm:$0xff]
        %v3390 = vld [vmem:[#allocation8 + $0x248] sm:$0xff]
        %v3391 = vld [vmem:[#allocation8 + $0x250] sm:$0xff]
        %v3392 = vld [vmem:[#allocation8 + $0x258] sm:$0xff]
        %v3393 = vld [vmem:[#allocation8 + $0x260] sm:$0xff]
        %v3394 = vld [vmem:[#allocation8 + $0x268] sm:$0xff]
        %v3395 = vld [vmem:[#allocation8 + $0x270] sm:$0xff]
        %v3396 = vld [vmem:[#allocation8 + $0x278] sm:$0xff]
        %v3397 = vld [vmem:[#allocation8 + $0x280] sm:$0xff]
        %v3398 = vld [vmem:[#allocation8 + $0x288] sm:$0xff]
        %v3399 = vld [vmem:[#allocation8 + $0x290] sm:$0xff]
        %v3400 = vld [vmem:[#allocation8 + $0x298] sm:$0xff]
        %v3401 = vld [vmem:[#allocation8 + $0x2a0] sm:$0xff]
        %v3402 = vld [vmem:[#allocation8 + $0x2a8] sm:$0xff]
        %v3403 = vld [vmem:[#allocation8 + $0x2b0] sm:$0xff]
        %v3404 = vld [vmem:[#allocation8 + $0x2b8] sm:$0xff]
        %v3405 = vld [vmem:[#allocation8 + $0x2c0] sm:$0xff]
        %v3406 = vld [vmem:[#allocation8 + $0x2c8] sm:$0xff]
        %v3407 = vld [vmem:[#allocation8 + $0x2d0] sm:$0xff]
        %v3408 = vld [vmem:[#allocation8 + $0x2d8] sm:$0xff]
        %v3409 = vld [vmem:[#allocation8 + $0x2e0] sm:$0xff]
        %v3410 = vld [vmem:[#allocation8 + $0x2e8] sm:$0xff]
        %v3411 = vld [vmem:[#allocation8 + $0x2f0] sm:$0xff]
        %v3412 = vld [vmem:[#allocation8 + $0x2f8] sm:$0xff]
        %v3413 = vld [vmem:[#allocation8 + $0x300] sm:$0xff]
        %v3414 = vld [vmem:[#allocation8 + $0x308] sm:$0xff]
        %v3415 = vld [vmem:[#allocation8 + $0x310] sm:$0xff]
        %v3416 = vld [vmem:[#allocation8 + $0x318] sm:$0xff]
        %v3417 = vld [vmem:[#allocation8 + $0x320] sm:$0xff]
        %v3418 = vld [vmem:[#allocation8 + $0x328] sm:$0xff]
        %v3419 = vld [vmem:[#allocation8 + $0x330] sm:$0xff]
        %v3420 = vld [vmem:[#allocation8 + $0x338] sm:$0xff]
        %v3421 = vld [vmem:[#allocation8 + $0x340] sm:$0xff]
        %v3422 = vld [vmem:[#allocation8 + $0x348] sm:$0xff]
        %v3423 = vld [vmem:[#allocation8 + $0x350] sm:$0xff]
        %v3424 = vld [vmem:[#allocation8 + $0x358] sm:$0xff]
        %v3425 = vld [vmem:[#allocation8 + $0x360] sm:$0xff]
        %v3426 = vld [vmem:[#allocation8 + $0x368] sm:$0xff]
        %v3427 = vld [vmem:[#allocation8 + $0x370] sm:$0xff]
        %v3428 = vld [vmem:[#allocation8 + $0x378] sm:$0xff]
        %v3429 = vld [vmem:[#allocation8 + $0x380] sm:$0xff]
        %v3430 = vld [vmem:[#allocation8 + $0x388] sm:$0xff]
        %v3431 = vld [vmem:[#allocation8 + $0x390] sm:$0xff]
        %v3432 = vld [vmem:[#allocation8 + $0x398] sm:$0xff]
        %v3433 = vld [vmem:[#allocation8 + $0x3a0] sm:$0xff]
        %v3434 = vld [vmem:[#allocation8 + $0x3a8] sm:$0xff]
        %v3435 = vld [vmem:[#allocation8 + $0x3b0] sm:$0xff]
        %v3436 = vld [vmem:[#allocation8 + $0x3b8] sm:$0xff]
        %v3437 = vld [vmem:[#allocation8 + $0x3c0] sm:$0xff]
        %v3438 = vld [vmem:[#allocation8 + $0x3c8] sm:$0xff]
        %v3439 = vld [vmem:[#allocation8 + $0x3d0] sm:$0xff]
        %v3440 = vld [vmem:[#allocation8 + $0x3d8] sm:$0xff]
        %v3441 = vld [vmem:[#allocation8 + $0x3e0] sm:$0xff]
        %v3442 = vld [vmem:[#allocation8 + $0x3e8] sm:$0xff]
        %v3443 = vld [vmem:[#allocation8 + $0x3f0] sm:$0xff]
        %v3444 = vld [vmem:[#allocation8 + $0x3f8] sm:$0xff]
        %v3445 = vld [vmem:[#allocation8 + $0x400] sm:$0xff]
        %v3446 = vld [vmem:[#allocation8 + $0x408] sm:$0xff]
        %v3447 = vld [vmem:[#allocation8 + $0x410] sm:$0xff]
        %v3448 = vld [vmem:[#allocation8 + $0x418] sm:$0xff]
        %v3449 = vld [vmem:[#allocation8 + $0x420] sm:$0xff]
        %v3450 = vld [vmem:[#allocation8 + $0x428] sm:$0xff]
        %v3451 = vld [vmem:[#allocation8 + $0x430] sm:$0xff]
        %v3452 = vld [vmem:[#allocation8 + $0x438] sm:$0xff]
        %v3453 = vld [vmem:[#allocation8 + $0x440] sm:$0xff]
        %v3454 = vld [vmem:[#allocation8 + $0x448] sm:$0xff]
        %v3455 = vld [vmem:[#allocation8 + $0x450] sm:$0xff]
        %v3456 = vld [vmem:[#allocation8 + $0x458] sm:$0xff]
        %v3457 = vld [vmem:[#allocation8 + $0x460] sm:$0xff]
        %v3458 = vld [vmem:[#allocation8 + $0x468] sm:$0xff]
        %v3459 = vld [vmem:[#allocation8 + $0x470] sm:$0xff]
        %v3460 = vld [vmem:[#allocation8 + $0x478] sm:$0xff]
        %v3461 = vld [vmem:[#allocation8 + $0x480] sm:$0xff]
        %v3462 = vld [vmem:[#allocation8 + $0x488] sm:$0xff]
        %v3463 = vld [vmem:[#allocation8 + $0x490] sm:$0xff]
        %v3464 = vld [vmem:[#allocation8 + $0x498] sm:$0xff]
        %v3465 = vld [vmem:[#allocation8 + $0x4a0] sm:$0xff]
        %v3466 = vld [vmem:[#allocation8 + $0x4a8] sm:$0xff]
        %v3467 = vld [vmem:[#allocation8 + $0x4b0] sm:$0xff]
        %v3468 = vld [vmem:[#allocation8 + $0x4b8] sm:$0xff]
        %v3469 = vld [vmem:[#allocation8 + $0x4c0] sm:$0xff]
        %v3470 = vld [vmem:[#allocation8 + $0x4c8] sm:$0xff]
        %v3471 = vld [vmem:[#allocation8 + $0x4d0] sm:$0xff]
        %v3472 = vld [vmem:[#allocation8 + $0x4d8] sm:$0xff]
        %v3473 = vld [vmem:[#allocation8 + $0x4e0] sm:$0xff]
        %v3474 = vld [vmem:[#allocation8 + $0x4e8] sm:$0xff]
        %v3475 = vld [vmem:[#allocation8 + $0x4f0] sm:$0xff]
        %v3476 = vld [vmem:[#allocation8 + $0x4f8] sm:$0xff]
        %v3477 = vld [vmem:[#allocation8 + $0x500] sm:$0xff]
        %v3478 = vld [vmem:[#allocation8 + $0x508] sm:$0xff]
        %v3479 = vld [vmem:[#allocation8 + $0x510] sm:$0xff]
        %v3480 = vld [vmem:[#allocation8 + $0x518] sm:$0xff]
        %v3481 = vld [vmem:[#allocation8 + $0x520] sm:$0xff]
        %v3482 = vld [vmem:[#allocation8 + $0x528] sm:$0xff]
        %v3483 = vld [vmem:[#allocation8 + $0x530] sm:$0xff]
        %v3484 = vld [vmem:[#allocation8 + $0x538] sm:$0xff]
        %v3485 = vld [vmem:[#allocation8 + $0x540] sm:$0xff]
        %v3486 = vld [vmem:[#allocation8 + $0x548] sm:$0xff]
        %v3487 = vld [vmem:[#allocation8 + $0x550] sm:$0xff]
        %v3488 = vld [vmem:[#allocation8 + $0x558] sm:$0xff]
        %v3489 = vld [vmem:[#allocation8 + $0x560] sm:$0xff]
        %v3490 = vld [vmem:[#allocation8 + $0x568] sm:$0xff]
        %v3491 = vld [vmem:[#allocation8 + $0x570] sm:$0xff]
        %v3492 = vld [vmem:[#allocation8 + $0x578] sm:$0xff]
        %v3493 = vld [vmem:[#allocation8 + $0x580] sm:$0xff]
        %v3494 = vld [vmem:[#allocation8 + $0x588] sm:$0xff]
        %v3495 = vld [vmem:[#allocation8 + $0x590] sm:$0xff]
        %v3496 = vld [vmem:[#allocation8 + $0x598] sm:$0xff]
        %v3497 = vld [vmem:[#allocation8 + $0x5a0] sm:$0xff]
        %v3498 = vld [vmem:[#allocation8 + $0x5a8] sm:$0xff]
        %v3499 = vld [vmem:[#allocation8 + $0x5b0] sm:$0xff]
        %v3500 = vld [vmem:[#allocation8 + $0x5b8] sm:$0xff]
        %v3501 = vld [vmem:[#allocation8 + $0x5c0] sm:$0xff]
        %v3502 = vld [vmem:[#allocation8 + $0x5c8] sm:$0xff]
        %v3503 = vld [vmem:[#allocation8 + $0x5d0] sm:$0xff]
        %v3504 = vld [vmem:[#allocation8 + $0x5d8] sm:$0xff]
        %v3505 = vld [vmem:[#allocation8 + $0x5e0] sm:$0xff]
        %v3506 = vld [vmem:[#allocation8 + $0x5e8] sm:$0xff]
        %v3507 = vld [vmem:[#allocation8 + $0x5f0] sm:$0xff]
        %v3508 = vld [vmem:[#allocation8 + $0x5f8] sm:$0xff]
        %v3509 = vld [vmem:[#allocation8 + $0x600] sm:$0xff]
        %v3510 = vld [vmem:[#allocation8 + $0x608] sm:$0xff]
        %v3511 = vld [vmem:[#allocation8 + $0x610] sm:$0xff]
        %v3512 = vld [vmem:[#allocation8 + $0x618] sm:$0xff]
        %v3513 = vld [vmem:[#allocation8 + $0x620] sm:$0xff]
        %v3514 = vld [vmem:[#allocation8 + $0x628] sm:$0xff]
        %v3515 = vld [vmem:[#allocation8 + $0x630] sm:$0xff]
        %v3516 = vld [vmem:[#allocation8 + $0x638] sm:$0xff]
        %v3517 = vld [vmem:[#allocation8 + $0x640] sm:$0xff]
        %v3518 = vld [vmem:[#allocation8 + $0x648] sm:$0xff]
        %v3519 = vld [vmem:[#allocation8 + $0x650] sm:$0xff]
        %v3520 = vld [vmem:[#allocation8 + $0x658] sm:$0xff]
        %v3521 = vld [vmem:[#allocation8 + $0x660] sm:$0xff]
        %v3522 = vld [vmem:[#allocation8 + $0x668] sm:$0xff]
        %v3523 = vld [vmem:[#allocation8 + $0x670] sm:$0xff]
        %v3524 = vld [vmem:[#allocation8 + $0x678] sm:$0xff]
        %v3525 = vld [vmem:[#allocation8 + $0x680] sm:$0xff]
        %v3526 = vld [vmem:[#allocation8 + $0x688] sm:$0xff]
        %v3527 = vld [vmem:[#allocation8 + $0x690] sm:$0xff]
        %v3528 = vld [vmem:[#allocation8 + $0x698] sm:$0xff]
        %v3529 = vld [vmem:[#allocation8 + $0x6a0] sm:$0xff]
        %v3530 = vld [vmem:[#allocation8 + $0x6a8] sm:$0xff]
        %v3531 = vld [vmem:[#allocation8 + $0x6b0] sm:$0xff]
        %v3532 = vld [vmem:[#allocation8 + $0x6b8] sm:$0xff]
        %v3533 = vld [vmem:[#allocation8 + $0x6c0] sm:$0xff]
        %v3534 = vld [vmem:[#allocation8 + $0x6c8] sm:$0xff]
        %v3535 = vld [vmem:[#allocation8 + $0x6d0] sm:$0xff]
        %v3536 = vld [vmem:[#allocation8 + $0x6d8] sm:$0xff]
        %v3537 = vld [vmem:[#allocation8 + $0x6e0] sm:$0xff]
        %v3538 = vld [vmem:[#allocation8 + $0x6e8] sm:$0xff]
        %v3539 = vld [vmem:[#allocation8 + $0x6f0] sm:$0xff]
        %v3540 = vld [vmem:[#allocation8 + $0x6f8] sm:$0xff]
        %v3541 = vld [vmem:[#allocation8 + $0x700] sm:$0xff]
        %v3542 = vld [vmem:[#allocation8 + $0x708] sm:$0xff]
        %v3543 = vld [vmem:[#allocation8 + $0x710] sm:$0xff]
        %v3544 = vld [vmem:[#allocation8 + $0x718] sm:$0xff]
        %v3545 = vld [vmem:[#allocation8 + $0x720] sm:$0xff]
        %v3546 = vld [vmem:[#allocation8 + $0x728] sm:$0xff]
        %v3547 = vld [vmem:[#allocation8 + $0x730] sm:$0xff]
        %v3548 = vld [vmem:[#allocation8 + $0x738] sm:$0xff]
        %v3549 = vld [vmem:[#allocation8 + $0x740] sm:$0xff]
        %v3550 = vld [vmem:[#allocation8 + $0x748] sm:$0xff]
        %v3551 = vld [vmem:[#allocation8 + $0x750] sm:$0xff]
        %v3552 = vld [vmem:[#allocation8 + $0x758] sm:$0xff]
        %v3553 = vld [vmem:[#allocation8 + $0x760] sm:$0xff]
        %v3554 = vld [vmem:[#allocation8 + $0x768] sm:$0xff]
        %v3555 = vld [vmem:[#allocation8 + $0x770] sm:$0xff]
        %v3556 = vld [vmem:[#allocation8 + $0x778] sm:$0xff]
        %v3557 = vld [vmem:[#allocation8 + $0x780] sm:$0xff]
        %v3558 = vld [vmem:[#allocation8 + $0x788] sm:$0xff]
        %v3559 = vld [vmem:[#allocation8 + $0x790] sm:$0xff]
        %v3560 = vld [vmem:[#allocation8 + $0x798] sm:$0xff]
        %v3561 = vld [vmem:[#allocation8 + $0x7a0] sm:$0xff]
        %v3562 = vld [vmem:[#allocation8 + $0x7a8] sm:$0xff]
        %v3563 = vld [vmem:[#allocation8 + $0x7b0] sm:$0xff]
        %v3564 = vld [vmem:[#allocation8 + $0x7b8] sm:$0xff]
        %v3565 = vld [vmem:[#allocation8 + $0x7c0] sm:$0xff]
        %v3566 = vld [vmem:[#allocation8 + $0x7c8] sm:$0xff]
        %v3567 = vld [vmem:[#allocation8 + $0x7d0] sm:$0xff]
        %v3568 = vld [vmem:[#allocation8 + $0x7d8] sm:$0xff]
        %v3569 = vld [vmem:[#allocation8 + $0x7e0] sm:$0xff]
        %v3570 = vld [vmem:[#allocation8 + $0x7e8] sm:$0xff]
        %v3571 = vld [vmem:[#allocation8 + $0x7f0] sm:$0xff]
        %v3572 = vld [vmem:[#allocation8 + $0x7f8] sm:$0xff]
        %v3573 = vld [vmem:[#allocation10] sm:$0xf]
        %v3575 = vlaneseq
        %v3576 = vshrl.u32 %v3575, 7
        %v3577 = vsub.s32 0, %v3576
        %v3578 = vrot.slane %v3573, %v3577
        %v3579 = vlaneseq
        %v3580 = vshrl.u32 %v3579, 7
        %v3581 = vsub.s32 1, %v3580
        %v3582 = vrot.slane %v3573, %v3581
        %v3583 = vlaneseq
        %v3584 = vshrl.u32 %v3583, 7
        %v3585 = vsub.s32 2, %v3584
        %v3586 = vrot.slane %v3573, %v3585
        %v3587 = vlaneseq
        %v3588 = vshrl.u32 %v3587, 7
        %v3589 = vsub.s32 3, %v3588
        %v3590 = vrot.slane %v3573, %v3589
        %3595 = vmatprep.subr.mxu0 %v3318
        %3596 = vmatpush1.msra.mxu0 %v3317
        %3597 = vmatprep.subr.mxu0 %v3322
        %3598 = vmatpush1.msra.mxu0 %v3321
        %3599 = vmatprep.subr.mxu0 %v3326
        %3600 = vmatpush1.msra.mxu0 %v3325
        %3601 = vmatprep.subr.mxu0 %v3330
        %3602 = vmatpush1.msra.mxu0 %v3329
        %3603 = vmatprep.subr.mxu0 %v3334
        %3604 = vmatpush1.msra.mxu0 %v3333
        %3605 = vmatprep.subr.mxu0 %v3338
        %3606 = vmatpush1.msra.mxu0 %v3337
        %3607 = vmatprep.subr.mxu0 %v3342
        %3608 = vmatpush1.msra.mxu0 %v3341
        %3609 = vmatprep.subr.mxu0 %v3346
        %3610 = vmatpush1.msra.mxu0 %v3345
        %3611 = vmatprep.subr.mxu0 %v3350
        %3612 = vmatpush1.msra.mxu0 %v3349
        %3613 = vmatprep.subr.mxu0 %v3354
        %3614 = vmatpush1.msra.mxu0 %v3353
        %3615 = vmatprep.subr.mxu0 %v3358
        %3616 = vmatpush1.msra.mxu0 %v3357
        %3617 = vmatprep.subr.mxu0 %v3362
        %3618 = vmatpush1.msra.mxu0 %v3361
        %3619 = vmatprep.subr.mxu0 %v3366
        %3620 = vmatpush1.msra.mxu0 %v3365
        %3621 = vmatprep.subr.mxu0 %v3370
        %3622 = vmatpush1.msra.mxu0 %v3369
        %3623 = vmatprep.subr.mxu0 %v3374
        %3624 = vmatpush1.msra.mxu0 %v3373
        %3625 = vmatprep.subr.mxu0 %v3378
        %3626 = vmatpush1.msra.mxu0 %v3377
        %3627 = vmatprep.subr.mxu0 %v3382
        %3628 = vmatpush1.msra.mxu0 %v3381
        %3629 = vmatprep.subr.mxu0 %v3386
        %3630 = vmatpush1.msra.mxu0 %v3385
        %3631 = vmatprep.subr.mxu0 %v3390
        %3632 = vmatpush1.msra.mxu0 %v3389
        %3633 = vmatprep.subr.mxu0 %v3394
        %3634 = vmatpush1.msra.mxu0 %v3393
        %3635 = vmatprep.subr.mxu0 %v3398
        %3636 = vmatpush1.msra.mxu0 %v3397
        %3637 = vmatprep.subr.mxu0 %v3402
        %3638 = vmatpush1.msra.mxu0 %v3401
        %3639 = vmatprep.subr.mxu0 %v3406
        %3640 = vmatpush1.msra.mxu0 %v3405
        %3641 = vmatprep.subr.mxu0 %v3410
        %3642 = vmatpush1.msra.mxu0 %v3409
        %3643 = vmatprep.subr.mxu0 %v3414
        %3644 = vmatpush1.msra.mxu0 %v3413
        %3645 = vmatprep.subr.mxu0 %v3418
        %3646 = vmatpush1.msra.mxu0 %v3417
        %3647 = vmatprep.subr.mxu0 %v3422
        %3648 = vmatpush1.msra.mxu0 %v3421
        %3649 = vmatprep.subr.mxu0 %v3426
        %3650 = vmatpush1.msra.mxu0 %v3425
        %3651 = vmatprep.subr.mxu0 %v3430
        %3652 = vmatpush1.msra.mxu0 %v3429
        %3653 = vmatprep.subr.mxu0 %v3434
        %3654 = vmatpush1.msra.mxu0 %v3433
        %3655 = vmatprep.subr.mxu0 %v3438
        %3656 = vmatpush1.msra.mxu0 %v3437
        %3657 = vmatprep.subr.mxu0 %v3442
        %3658 = vmatpush1.msra.mxu0 %v3441
        %3659 = vmatprep.mubr.f32.mxu0 %v3314
        %3660 = vmatmul.mubr.f32.gmra.mrb[0].mxu0 %v3313
        %v3661 = vpop.f32.mrb[0].mxu0
        %v3662 = vadd.f32 %v3578, %v3661
        %v3663 = vpop.f32.mrb[0].mxu0
        %v3664 = vadd.f32 %v3582, %v3663
        %3665 = vdwg.mxu0
        %3666 = vmatprep.subr.mxu0 %v3446
        %3667 = vmatpush1.msra.mxu0 %v3445
        %3668 = vmatprep.subr.mxu0 %v3450
        %3669 = vmatpush1.msra.mxu0 %v3449
        %3670 = vmatprep.subr.mxu0 %v3454
        %3671 = vmatpush1.msra.mxu0 %v3453
        %3672 = vmatprep.subr.mxu0 %v3458
        %3673 = vmatpush1.msra.mxu0 %v3457
        %3674 = vmatprep.subr.mxu0 %v3462
        %3675 = vmatpush1.msra.mxu0 %v3461
        %3676 = vmatprep.subr.mxu0 %v3466
        %3677 = vmatpush1.msra.mxu0 %v3465
        %3678 = vmatprep.subr.mxu0 %v3470
        %3679 = vmatpush1.msra.mxu0 %v3469
        %3680 = vmatprep.subr.mxu0 %v3474
        %3681 = vmatpush1.msra.mxu0 %v3473
        %3682 = vmatprep.subr.mxu0 %v3478
        %3683 = vmatpush1.msra.mxu0 %v3477
        %3684 = vmatprep.subr.mxu0 %v3482
        %3685 = vmatpush1.msra.mxu0 %v3481
        %3686 = vmatprep.subr.mxu0 %v3486
        %3687 = vmatpush1.msra.mxu0 %v3485
        %3688 = vmatprep.subr.mxu0 %v3490
        %3689 = vmatpush1.msra.mxu0 %v3489
        %3690 = vmatprep.subr.mxu0 %v3494
        %3691 = vmatpush1.msra.mxu0 %v3493
        %3692 = vmatprep.subr.mxu0 %v3498
        %3693 = vmatpush1.msra.mxu0 %v3497
        %3694 = vmatprep.subr.mxu0 %v3502
        %3695 = vmatpush1.msra.mxu0 %v3501
        %3696 = vmatprep.subr.mxu0 %v3506
        %3697 = vmatpush1.msra.mxu0 %v3505
        %3698 = vmatprep.subr.mxu0 %v3510
        %3699 = vmatpush1.msra.mxu0 %v3509
        %3700 = vmatprep.subr.mxu0 %v3514
        %3701 = vmatpush1.msra.mxu0 %v3513
        %3702 = vmatprep.subr.mxu0 %v3518
        %3703 = vmatpush1.msra.mxu0 %v3517
        %3704 = vmatprep.subr.mxu0 %v3522
        %3705 = vmatpush1.msra.mxu0 %v3521
        %3706 = vmatprep.subr.mxu0 %v3526
        %3707 = vmatpush1.msra.mxu0 %v3525
        %3708 = vmatprep.subr.mxu0 %v3530
        %3709 = vmatpush1.msra.mxu0 %v3529
        %3710 = vmatprep.subr.mxu0 %v3534
        %3711 = vmatpush1.msra.mxu0 %v3533
        %3712 = vmatprep.subr.mxu0 %v3538
        %3713 = vmatpush1.msra.mxu0 %v3537
        %3714 = vmatprep.subr.mxu0 %v3542
        %3715 = vmatpush1.msra.mxu0 %v3541
        %3716 = vmatprep.subr.mxu0 %v3546
        %3717 = vmatpush1.msra.mxu0 %v3545
        %3718 = vmatprep.subr.mxu0 %v3550
        %3719 = vmatpush1.msra.mxu0 %v3549
        %3720 = vmatprep.subr.mxu0 %v3554
        %3721 = vmatpush1.msra.mxu0 %v3553
        %3722 = vmatprep.subr.mxu0 %v3558
        %3723 = vmatpush1.msra.mxu0 %v3557
        %3724 = vmatprep.subr.mxu0 %v3562
        %3725 = vmatpush1.msra.mxu0 %v3561
        %3726 = vmatprep.subr.mxu0 %v3566
        %3727 = vmatpush1.msra.mxu0 %v3565
        %3728 = vmatprep.subr.mxu0 %v3570
        %3729 = vmatpush1.msra.mxu0 %v3569
        %3730 = vmatprep.mubr.f32.mxu0 %v3316
        %3731 = vmatmul.mubr.f32.gmra.mrb[0].mxu0 %v3315
        %v3732 = vpop.f32.mrb[0].mxu0
        %v3733 = vadd.f32 %v3662, %v3732
        %v3734 = vpop.f32.mrb[0].mxu0
        %v3735 = vadd.f32 %v3664, %v3734
        %3736 = vdwg.mxu0
        %3737 = vmatprep.subr.mxu0 %v3320
        %3738 = vmatpush1.msra.mxu0 %v3319
        %3739 = vmatprep.subr.mxu0 %v3324
        %3740 = vmatpush1.msra.mxu0 %v3323
        %3741 = vmatprep.subr.mxu0 %v3328
        %3742 = vmatpush1.msra.mxu0 %v3327
        %3743 = vmatprep.subr.mxu0 %v3332
        %3744 = vmatpush1.msra.mxu0 %v3331
        %3745 = vmatprep.subr.mxu0 %v3336
        %3746 = vmatpush1.msra.mxu0 %v3335
        %3747 = vmatprep.subr.mxu0 %v3340
        %3748 = vmatpush1.msra.mxu0 %v3339
        %3749 = vmatprep.subr.mxu0 %v3344
        %3750 = vmatpush1.msra.mxu0 %v3343
        %3751 = vmatprep.subr.mxu0 %v3348
        %3752 = vmatpush1.msra.mxu0 %v3347
        %3753 = vmatprep.subr.mxu0 %v3352
        %3754 = vmatpush1.msra.mxu0 %v3351
        %3755 = vmatprep.subr.mxu0 %v3356
        %3756 = vmatpush1.msra.mxu0 %v3355
        %3757 = vmatprep.subr.mxu0 %v3360
        %3758 = vmatpush1.msra.mxu0 %v3359
        %3759 = vmatprep.subr.mxu0 %v3364
        %3760 = vmatpush1.msra.mxu0 %v3363
        %3761 = vmatprep.subr.mxu0 %v3368
        %3762 = vmatpush1.msra.mxu0 %v3367
        %3763 = vmatprep.subr.mxu0 %v3372
        %3764 = vmatpush1.msra.mxu0 %v3371
        %3765 = vmatprep.subr.mxu0 %v3376
        %3766 = vmatpush1.msra.mxu0 %v3375
        %3767 = vmatprep.subr.mxu0 %v3380
        %3768 = vmatpush1.msra.mxu0 %v3379
        %3769 = vmatprep.subr.mxu0 %v3384
        %3770 = vmatpush1.msra.mxu0 %v3383
        %3771 = vmatprep.subr.mxu0 %v3388
        %3772 = vmatpush1.msra.mxu0 %v3387
        %3773 = vmatprep.subr.mxu0 %v3392
        %3774 = vmatpush1.msra.mxu0 %v3391
        %3775 = vmatprep.subr.mxu0 %v3396
        %3776 = vmatpush1.msra.mxu0 %v3395
        %3777 = vmatprep.subr.mxu0 %v3400
        %3778 = vmatpush1.msra.mxu0 %v3399
        %3779 = vmatprep.subr.mxu0 %v3404
        %3780 = vmatpush1.msra.mxu0 %v3403
        %3781 = vmatprep.subr.mxu0 %v3408
        %3782 = vmatpush1.msra.mxu0 %v3407
        %3783 = vmatprep.subr.mxu0 %v3412
        %3784 = vmatpush1.msra.mxu0 %v3411
        %3785 = vmatprep.subr.mxu0 %v3416
        %3786 = vmatpush1.msra.mxu0 %v3415
        %3787 = vmatprep.subr.mxu0 %v3420
        %3788 = vmatpush1.msra.mxu0 %v3419
        %3789 = vmatprep.subr.mxu0 %v3424
        %3790 = vmatpush1.msra.mxu0 %v3423
        %3791 = vmatprep.subr.mxu0 %v3428
        %3792 = vmatpush1.msra.mxu0 %v3427
        %3793 = vmatprep.subr.mxu0 %v3432
        %3794 = vmatpush1.msra.mxu0 %v3431
        %3795 = vmatprep.subr.mxu0 %v3436
        %3796 = vmatpush1.msra.mxu0 %v3435
        %3797 = vmatprep.subr.mxu0 %v3440
        %3798 = vmatpush1.msra.mxu0 %v3439
        %3799 = vmatprep.subr.mxu0 %v3444
        %3800 = vmatpush1.msra.mxu0 %v3443
        %3801 = vmatprep.mubr.f32.mxu0 %v3314
        %3802 = vmatmul.mubr.f32.gmra.mrb[0].mxu0 %v3313
        %v3803 = vpop.f32.mrb[0].mxu0
        %v3804 = vadd.f32 %v3586, %v3803
        %v3805 = vpop.f32.mrb[0].mxu0
        %v3806 = vadd.f32 %v3590, %v3805
        %3807 = vdwg.mxu0
        %3808 = vmatprep.subr.mxu0 %v3448
        %3809 = vmatpush1.msra.mxu0 %v3447
        %3810 = vmatprep.subr.mxu0 %v3452
        %3811 = vmatpush1.msra.mxu0 %v3451
        %3812 = vmatprep.subr.mxu0 %v3456
        %3813 = vmatpush1.msra.mxu0 %v3455
        %3814 = vmatprep.subr.mxu0 %v3460
        %3815 = vmatpush1.msra.mxu0 %v3459
        %3816 = vmatprep.subr.mxu0 %v3464
        %3817 = vmatpush1.msra.mxu0 %v3463
        %3818 = vmatprep.subr.mxu0 %v3468
        %3819 = vmatpush1.msra.mxu0 %v3467
        %3820 = vmatprep.subr.mxu0 %v3472
        %3821 = vmatpush1.msra.mxu0 %v3471
        %3822 = vmatprep.subr.mxu0 %v3476
        %3823 = vmatpush1.msra.mxu0 %v3475
        %3824 = vmatprep.subr.mxu0 %v3480
        %3825 = vmatpush1.msra.mxu0 %v3479
        %3826 = vmatprep.subr.mxu0 %v3484
        %3827 = vmatpush1.msra.mxu0 %v3483
        %3828 = vmatprep.subr.mxu0 %v3488
        %3829 = vmatpush1.msra.mxu0 %v3487
        %3830 = vmatprep.subr.mxu0 %v3492
        %3831 = vmatpush1.msra.mxu0 %v3491
        %3832 = vmatprep.subr.mxu0 %v3496
        %3833 = vmatpush1.msra.mxu0 %v3495
        %3834 = vmatprep.subr.mxu0 %v3500
        %3835 = vmatpush1.msra.mxu0 %v3499
        %3836 = vmatprep.subr.mxu0 %v3504
        %3837 = vmatpush1.msra.mxu0 %v3503
        %3838 = vmatprep.subr.mxu0 %v3508
        %3839 = vmatpush1.msra.mxu0 %v3507
        %3840 = vmatprep.subr.mxu0 %v3512
        %3841 = vmatpush1.msra.mxu0 %v3511
        %3842 = vmatprep.subr.mxu0 %v3516
        %3843 = vmatpush1.msra.mxu0 %v3515
        %3844 = vmatprep.subr.mxu0 %v3520
        %3845 = vmatpush1.msra.mxu0 %v3519
        %3846 = vmatprep.subr.mxu0 %v3524
        %3847 = vmatpush1.msra.mxu0 %v3523
        %3848 = vmatprep.subr.mxu0 %v3528
        %3849 = vmatpush1.msra.mxu0 %v3527
        %3850 = vmatprep.subr.mxu0 %v3532
        %3851 = vmatpush1.msra.mxu0 %v3531
        %3852 = vmatprep.subr.mxu0 %v3536
        %3853 = vmatpush1.msra.mxu0 %v3535
        %3854 = vmatprep.subr.mxu0 %v3540
        %3855 = vmatpush1.msra.mxu0 %v3539
        %3856 = vmatprep.subr.mxu0 %v3544
        %3857 = vmatpush1.msra.mxu0 %v3543
        %3858 = vmatprep.subr.mxu0 %v3548
        %3859 = vmatpush1.msra.mxu0 %v3547
        %3860 = vmatprep.subr.mxu0 %v3552
        %3861 = vmatpush1.msra.mxu0 %v3551
        %3862 = vmatprep.subr.mxu0 %v3556
        %3863 = vmatpush1.msra.mxu0 %v3555
        %3864 = vmatprep.subr.mxu0 %v3560
        %3865 = vmatpush1.msra.mxu0 %v3559
        %3866 = vmatprep.subr.mxu0 %v3564
        %3867 = vmatpush1.msra.mxu0 %v3563
        %3868 = vmatprep.subr.mxu0 %v3568
        %3869 = vmatpush1.msra.mxu0 %v3567
        %3870 = vmatprep.subr.mxu0 %v3572
        %3871 = vmatpush1.msra.mxu0 %v3571
        %3872 = vmatprep.mubr.f32.mxu0 %v3316
        %3873 = vmatmul.mubr.f32.gmra.mrb[0].mxu0 %v3315
        %v3874 = vpop.f32.mrb[0].mxu0
        %v3875 = vadd.f32 %v3804, %v3874
        %v3876 = vpop.f32.mrb[0].mxu0
        %v3877 = vadd.f32 %v3806, %v3876
        %3878 = vdwg.mxu0
        %3879 = vst [vmem:[%s294] sm:$0xff] %v3733
        %3880 = vst [vmem:[%s294 + $0x8] sm:$0xff] %v3735
        %3881 = vst [vmem:[%s294 + $0x10] sm:$0xff] %v3875
        %3882 = vst [vmem:[%s294 + $0x18] sm:$0xff] %v3877
        %s3883 = sand.u32 %s142, 1
        %s3884 = scalar_lea.sflag [#allocation4], %s3883
        %s3885 = sand.u32 %s142, 1
        %s3886 = smul.addr %s3885, 32
        %s3887 = scalar_lea.vmem [#allocation11], %s3886
        // Predicated region
        $region61: #{tpu_custom_call.1} parent=39 // pred_check
          %p3888 = pneg %p152
        $region62: #{tpu_custom_call.1} parent=39 // pred_check_branch
          %3890 = sbr.rel (%p3888) target = $region64
        $region63: #{tpu_custom_call.1} parent=39 // pred_region
          %s3892 = ssub.s32 512, 512
          %3893 = vsyncadd %s3884, %s3892
          %s3894 = smul.addr %s24, 4
          %s3895 = smul.addr %s3894, 128
          %s3896 = scalar_lea.hbm %s5, %s3895
          %s3898 = sshll.u32 %s3887, 4
          %s3899 = int_to_ptr.vmem [resolvable:$true] %s3898
          %3901 = dma.vmem_to_hbm [thread:$0]  %s3899, 512, %s3896, %s3884
        $region64: #{tpu_custom_call.1} parent=39 // pred_fallthru
          _
      $region40: #{tpu_custom_call.1} parent=5 // pred_fallthru
        _
      %p3902 = scmp.le.s32.totalorder 2, %s19
      // Predicated region
      $region65: #{tpu_custom_call.1} parent=5 // pred_check
        %p3903 = pneg %p3902
      $region66: #{tpu_custom_call.1} parent=5 // pred_check_branch
        %3905 = sbr.rel (%p3903) target = $region68
      $region67: #{tpu_custom_call.1} parent=5 // pred_region
        %s3906 = ssub.s32 %s19, 2
        // Predicated region
        $region69: #{tpu_custom_call.1} parent=67 // pred_check
          %p3907 = pneg %p158
        $region70: #{tpu_custom_call.1} parent=67 // pred_check_branch
          %3909 = sbr.rel (%p3907) target = $region72
        $region71: #{tpu_custom_call.1} parent=67 // pred_region
          %s3910 = sand.u32 %s143, 1
          %s3911 = scalar_lea.sflag [#allocation4], %s3910
          %s3912 = sand.u32 %s143, 1
          %s3913 = smul.addr %s3912, 32
          %s3914 = scalar_lea.vmem [#allocation11], %s3913
          %3915 = dma.done %s3911, 512
        $region72: #{tpu_custom_call.1} parent=67 // pred_fallthru
          _
      $region68: #{tpu_custom_call.1} parent=5 // pred_fallthru
        _
    $region6: #{tpu_custom_call.1} parent=1 // loop_footer
      %s23 = sadd.s32 1, %s19
    $region7: #{tpu_custom_call.1} parent=1 // loop_footer_branch
      %18 = sbr.rel target = $region3
    $region8: #{tpu_custom_call.1} parent=1 // loop_exit
      _
    %3916 = vsyncpa [#allocation3], 1
    %s3917 = scalar_lea.sflag [#allocation3], 1
    %3918 = vsyncpa %s3917, 1
    %3919 = vsyncpa [#allocation6], 1
    %3920 = vsyncpa [#allocation9], 1
    %3921 = vsyncpa [#allocation4], 1
    %s3922 = scalar_lea.sflag [#allocation4], 1
    %3923 = vsyncpa %s3922, 1

</llo_original>
